<compile_context>
chip_gen: v7x
topology: tpu7x:2x2x1
jax: 0.10.0
libtpu: 0.0.40
codegen_flags: <defaults>
</compile_context>

<pallas_src>
import functools

import jax
import jax.numpy as jnp
from jax import lax
from jax.experimental import pallas as pl
from jax.experimental.pallas import tpu as pltpu

_LEAKY_SLOPE = 0.1
_HALO = 8  # top/left halo; sublane-aligned and >= 6 (needed by the 5->9->13 cascade)


def _round_up(x, m):
    return (x + m - 1) // m * m


def _vmem_limit_bytes():
    """Generation-aware scoped-VMEM limit (~75% of physical VMEM)."""
    try:
        cap = pltpu.get_tpu_info().vmem_capacity_bytes
    except Exception:  # conservative fallback if the query is unavailable
        cap = 64 * 1024 * 1024
    return int(min(cap * 3 // 4, 100 * 1024 * 1024))


# ----------------------------------------------------------------------------
# Fused kernel: cv1 (1x1 conv + folded BN + LeakyReLU) -> cascaded max pools
# (5, 9, 13, stride 1, 'same') -> concat-fused cv2 (split-weight matmul).
# ----------------------------------------------------------------------------
def _spp_fused_kernel(x_ref, w1_ref, b1_ref, w2a_ref, w2b_ref, w2c_ref,
                      w2d_ref, b2_ref, o_ref, slab_ref, *, H, W, Hp, Wp):
    c_ = w1_ref.shape[1]
    HW = H * W
    n = Hp * Wp

    # ---- cv1: bf16 matmul (BN folded into weights) + bias + LeakyReLU -------
    x = x_ref[0].astype(jnp.bfloat16)                              # (HW, c1)
    y = jnp.dot(x, w1_ref[...], preferred_element_type=jnp.float32)
    y = y + b1_ref[...]
    y = jnp.maximum(y, _LEAKY_SLOPE * y)                           # LeakyReLU(0.1)

    # ---- -inf padded slab in VMEM (interior at sublane-aligned offset 8) ----
    slab_ref[...] = jnp.full(slab_ref.shape, -jnp.inf, slab_ref.dtype)
    slab_ref[_HALO:_HALO + H, _HALO:_HALO + W, :] = y.reshape(H, W, c_)
    flat = slab_ref[...].reshape(n, c_)                            # (Hp*Wp, c_)

    # ---- cascaded 5x5 'same' max pools, entirely in VMEM ---------------------
    def shifted_max(t, dists):
        r = t
        for d in dists:
            r = jnp.maximum(r, pltpu.roll(t, (-d) % n, axis=0))    # neighbour +d
            r = jnp.maximum(r, pltpu.roll(t, d % n, axis=0))       # neighbour -d
        return r

    def pool5(t):
        # Separable 5x5 max: width (sublane rolls +-1,+-2) then height
        # (rolls +-Wp,+-2*Wp; Wp % 8 == 0 so these are 8-aligned and cheap).
        return shifted_max(shifted_max(t, (1, 2)), (Wp, 2 * Wp))

    def interior(t):
        t3 = t.reshape(Hp, Wp, c_)
        return t3[_HALO:_HALO + H, _HALO:_HALO + W, :].reshape(HW, c_)

    p5 = pool5(flat)       # == maxpool5_same(y)  on the slab coordinates
    p9 = pool5(p5)         # == maxpool9_same(y)
    p13 = pool5(p9)        # == maxpool13_same(y)

    # ---- cv2: concat fused away via 4-way split-weight bf16 matmul ----------
    def bdot(a, w_ref):
        return jnp.dot(a.astype(jnp.bfloat16), w_ref[...],
                       preferred_element_type=jnp.float32)

    acc = bdot(y, w2a_ref)
    acc += bdot(interior(p5), w2b_ref)
    acc += bdot(interior(p9), w2c_ref)
    acc += bdot(interior(p13), w2d_ref)
    acc += b2_ref[...]
    o_ref[0] = jnp.maximum(acc, _LEAKY_SLOPE * acc).astype(o_ref.dtype)


def spp_forward(x_nchw, kp, k=(5, 9, 13)):
    assert tuple(k) == (5, 9, 13), "fused kernel is specialized to k=(5, 9, 13)"
    n, c1, h, w = x_nchw.shape
    c_ = kp["w1"].shape[1]
    c2 = kp["b2"].shape[-1]
    hw = h * w

    x = jnp.transpose(x_nchw, (0, 2, 3, 1)).reshape(n, hw, c1)     # NCHW -> (N, HW, C)

    hp = h + 2 * _HALO
    wp = _round_up(w + 2 * _HALO, 8)   # keep the slab's sublane width 8-aligned

    kernel = functools.partial(_spp_fused_kernel, H=h, W=w, Hp=hp, Wp=wp)

    def row_spec(c):
        return pl.BlockSpec((1, hw, c), lambda b: (b, 0, 0))

    def const_spec(r, c):
        return pl.BlockSpec((r, c), lambda b: (0, 0))

    z = pl.pallas_call(
        kernel,
        out_shape=jax.ShapeDtypeStruct((n, hw, c2), jnp.float32),
        grid=(n,),
        in_specs=[
            row_spec(c1),
            const_spec(c1, c_), const_spec(1, c_),
            const_spec(c_, c2), const_spec(c_, c2),
            const_spec(c_, c2), const_spec(c_, c2),
            const_spec(1, c2),
        ],
        out_specs=row_spec(c2),
        scratch_shapes=[pltpu.VMEM((hp, wp, c_), jnp.float32)],
        compiler_params=pltpu.CompilerParams(
            dimension_semantics=("parallel",),
            vmem_limit_bytes=_vmem_limit_bytes(),
        ),
    )(x, kp["w1"], kp["b1"], kp["w2a"], kp["w2b"], kp["w2c"], kp["w2d"], kp["b2"])

    return jnp.transpose(z.reshape(n, h, w, c2), (0, 3, 1, 2))     # -> NCHW


# ----------------------------------------------------------------------------
# Parameter init (deterministic, synthetic), BN folding, host-side kernel prep
# ----------------------------------------------------------------------------
def _fold_bn(gamma, beta, mean, var, eps=1e-5):
    scale = gamma / jnp.sqrt(var + eps)
    bias = beta - mean * scale
    return scale, bias


def init_spp_params(key, c1, c2, k=(5, 9, 13)):
    c_ = c1 // 2
    cin2 = c_ * (len(k) + 1)
    keys = jax.random.split(key, 10)

    w1 = 0.1 * jax.random.normal(keys[0], (c1, c_), jnp.float32)
    g1 = 1.0 + 0.1 * jax.random.normal(keys[1], (c_,), jnp.float32)
    b1 = 0.1 * jax.random.normal(keys[2], (c_,), jnp.float32)
    m1 = 0.1 * jax.random.normal(keys[3], (c_,), jnp.float32)
    v1 = jnp.abs(jax.random.normal(keys[4], (c_,), jnp.float32)) + 0.5

    w2 = 0.1 * jax.random.normal(keys[5], (cin2, c2), jnp.float32)
    g2 = 1.0 + 0.1 * jax.random.normal(keys[6], (c2,), jnp.float32)
    b2 = 0.1 * jax.random.normal(keys[7], (c2,), jnp.float32)
    m2 = 0.1 * jax.random.normal(keys[8], (c2,), jnp.float32)
    v2 = jnp.abs(jax.random.normal(keys[9], (c2,), jnp.float32)) + 0.5

    s1, bb1 = _fold_bn(g1, b1, m1, v1)
    s2, bb2 = _fold_bn(g2, b2, m2, v2)
    return {"w1": w1, "s1": s1, "b1": bb1, "w2": w2, "s2": s2, "b2": bb2}


def fold_for_kernels(params, c_):
    """Fold BN scale into the conv weights (cast to bf16 for the MXU) and split
    cv2's weight row-wise so the channel concat can be fused into the matmul."""
    w1 = (params["w1"] * params["s1"][None, :]).astype(jnp.bfloat16)
    w2 = (params["w2"] * params["s2"][None, :]).astype(jnp.bfloat16)
    return {
        "w1": w1,
        "b1": params["b1"].reshape(1, -1).astype(jnp.float32),
        "w2a": w2[0 * c_:1 * c_], "w2b": w2[1 * c_:2 * c_],
        "w2c": w2[2 * c_:3 * c_], "w2d": w2[3 * c_:4 * c_],
        "b2": params["b2"].reshape(1, -1).astype(jnp.float32),
    }


# ----------------------------------------------------------------------------
# Pure-JAX f32 reference (unfused, unquantized)
# ----------------------------------------------------------------------------
def spp_reference(x_nchw, params, k=(5, 9, 13)):
    x = jnp.transpose(x_nchw, (0, 2, 3, 1))

    def conv_bn_act(t, w, s, b):
        y = jnp.einsum("nhwc,cd->nhwd", t, w) * s + b
        return jnp.where(y > 0, y, 0.1 * y)

    def mp(t, kk):
        p = kk // 2
        return lax.reduce_window(
            t, -jnp.inf, lax.max, (1, kk, kk, 1), (1, 1, 1, 1),
            [(0, 0), (p, p), (p, p), (0, 0)],
        )

    y = conv_bn_act(x, params["w1"], params["s1"], params["b1"])
    cat = jnp.concatenate([y] + [mp(y, kk) for kk in k], axis=-1)
    z = conv_bn_act(cat, params["w2"], params["s2"], params["b2"])
    return jnp.transpose(z, (0, 3, 1, 2))


if __name__ == "__main__":
    key = jax.random.PRNGKey(0)
    k_x, k_p = jax.random.split(key)

    N, C1, H, W = 2, 4, 16, 16
    C2 = 8
    x = jax.random.normal(k_x, (N, C1, H, W), jnp.float32)
    params = init_spp_params(k_p, C1, C2)
    kp = fold_for_kernels(params, C1 // 2)

    fwd = jax.jit(spp_forward)
    out = jax.block_until_ready(fwd(x, kp))

    ref = jax.block_until_ready(spp_reference(x, params))
    assert out.shape == (N, C2, H, W), out.shape
    # bf16 matmuls (bf16 weights + bf16 activation casts) vs the f32 reference.
    assert jnp.allclose(out, ref, atol=5e-2, rtol=5e-2), (
        float(jnp.max(jnp.abs(out - ref)))
    )
    print("KERNEL_OK")
</pallas_src>

<mosaic_0001>
module attributes {stable_mosaic.version = 11 : i64} {
  func.func @_spp_fused_kernel(%arg0: i32, %arg1: memref<1x256x4xf32, #tpu.memory_space<vmem>>, %arg2: memref<4x2xbf16, #tpu.memory_space<vmem>>, %arg3: memref<1x2xf32, #tpu.memory_space<vmem>>, %arg4: memref<2x8xbf16, #tpu.memory_space<vmem>>, %arg5: memref<2x8xbf16, #tpu.memory_space<vmem>>, %arg6: memref<2x8xbf16, #tpu.memory_space<vmem>>, %arg7: memref<2x8xbf16, #tpu.memory_space<vmem>>, %arg8: memref<1x8xf32, #tpu.memory_space<vmem>>, %arg9: memref<1x256x8xf32, #tpu.memory_space<vmem>>, %arg10: memref<32x32x2xf32, #tpu.memory_space<vmem>>) attributes {dimension_semantics = [#tpu.dimension_semantics<parallel>], iteration_bounds = array<i64: 2>, scalar_prefetch = 0 : i64, scratch_operands = 1 : i64, tpu.core_type = #tpu.core_type<tc>, window_params = [{transform_indices = @transform_0, window_bounds = array<i64: 1, 256, 4>}, {pipeline_mode = #tpu.pipeline_mode<synchronous>, transform_indices = @transform_1, window_bounds = array<i64: 4, 2>}, {pipeline_mode = #tpu.pipeline_mode<synchronous>, transform_indices = @transform_2, window_bounds = array<i64: 1, 2>}, {pipeline_mode = #tpu.pipeline_mode<synchronous>, transform_indices = @transform_3, window_bounds = array<i64: 2, 8>}, {pipeline_mode = #tpu.pipeline_mode<synchronous>, transform_indices = @transform_4, window_bounds = array<i64: 2, 8>}, {pipeline_mode = #tpu.pipeline_mode<synchronous>, transform_indices = @transform_5, window_bounds = array<i64: 2, 8>}, {pipeline_mode = #tpu.pipeline_mode<synchronous>, transform_indices = @transform_6, window_bounds = array<i64: 2, 8>}, {pipeline_mode = #tpu.pipeline_mode<synchronous>, transform_indices = @transform_7, window_bounds = array<i64: 1, 8>}, {transform_indices = @transform_8, window_bounds = array<i64: 1, 256, 8>}]} {
    %c0 = arith.constant 0 : index
    %c0_0 = arith.constant 0 : index
    %c0_1 = arith.constant 0 : index
    %0 = vector.load %arg1[%c0, %c0_0, %c0_1] : memref<1x256x4xf32, #tpu.memory_space<vmem>>, vector<1x256x4xf32>
    %1 = vector.shape_cast %0 : vector<1x256x4xf32> to vector<256x4xf32>
    %2 = arith.truncf %1 : vector<256x4xf32> to vector<256x4xbf16>
    %c0_2 = arith.constant 0 : index
    %c0_3 = arith.constant 0 : index
    %3 = vector.load %arg2[%c0_2, %c0_3] : memref<4x2xbf16, #tpu.memory_space<vmem>>, vector<4x2xbf16>
    %cst = arith.constant dense<0.000000e+00> : vector<256x2xf32>
    %4 = tpu.matmul %2, %3, %cst {dimension_numbers = #tpu.dot_dimension_numbers<[1], [0], [0], [1], [0, 0, 1, 1], [], []>} : vector<256x4xbf16>, vector<4x2xbf16>, vector<256x2xf32> -> vector<256x2xf32>
    %c0_4 = arith.constant 0 : index
    %c0_5 = arith.constant 0 : index
    %5 = vector.load %arg3[%c0_4, %c0_5] : memref<1x2xf32, #tpu.memory_space<vmem>>, vector<1x2xf32>
    %6 = vector.broadcast %5 : vector<1x2xf32> to vector<256x2xf32>
    %7 = arith.addf %4, %6 : vector<256x2xf32>
    %cst_6 = arith.constant 1.000000e-01 : f32
    %8 = vector.broadcast %cst_6 : f32 to vector<256x2xf32>
    %9 = arith.mulf %8, %7 : vector<256x2xf32>
    %10 = arith.maximumf %7, %9 : vector<256x2xf32>
    %cst_7 = arith.constant 0xFF800000 : f32
    %11 = vector.broadcast %cst_7 : f32 to vector<32x32x2xf32>
    %c0_8 = arith.constant 0 : index
    %c0_9 = arith.constant 0 : index
    %c0_10 = arith.constant 0 : index
    %12 = vector.load %arg10[%c0_8, %c0_9, %c0_10] : memref<32x32x2xf32, #tpu.memory_space<vmem>>, vector<32x32x2xf32>
    tpu.vector_store %arg10[%c0_8, %c0_9, %c0_10], %11 {strides = array<i32>} : memref<32x32x2xf32, #tpu.memory_space<vmem>>, vector<32x32x2xf32>,
    %13 = vector.shape_cast %10 : vector<256x2xf32> to vector<16x16x2xf32>
    %c8 = arith.constant 8 : index
    %c8_11 = arith.constant 8 : index
    %c0_12 = arith.constant 0 : index
    %14 = vector.load %arg10[%c8, %c8_11, %c0_12] : memref<32x32x2xf32, #tpu.memory_space<vmem>>, vector<16x16x2xf32>
    tpu.vector_store %arg10[%c8, %c8_11, %c0_12], %13 {strides = array<i32>} : memref<32x32x2xf32, #tpu.memory_space<vmem>>, vector<16x16x2xf32>,
    %c0_13 = arith.constant 0 : index
    %c0_14 = arith.constant 0 : index
    %c0_15 = arith.constant 0 : index
    %15 = vector.load %arg10[%c0_13, %c0_14, %c0_15] : memref<32x32x2xf32, #tpu.memory_space<vmem>>, vector<32x32x2xf32>
    %16 = vector.shape_cast %15 : vector<32x32x2xf32> to vector<1024x2xf32>
    %c1023_i32 = arith.constant 1023 : i32
    %17 = tpu.dynamic_rotate %16 by %c1023_i32 dim 0 : vector<1024x2xf32>, i32 -> vector<1024x2xf32>
    %18 = arith.maximumf %16, %17 : vector<1024x2xf32>
    %c1_i32 = arith.constant 1 : i32
    %19 = tpu.dynamic_rotate %16 by %c1_i32 dim 0 : vector<1024x2xf32>, i32 -> vector<1024x2xf32>
    %20 = arith.maximumf %18, %19 : vector<1024x2xf32>
    %c1022_i32 = arith.constant 1022 : i32
    %21 = tpu.dynamic_rotate %16 by %c1022_i32 dim 0 : vector<1024x2xf32>, i32 -> vector<1024x2xf32>
    %22 = arith.maximumf %20, %21 : vector<1024x2xf32>
    %c2_i32 = arith.constant 2 : i32
    %23 = tpu.dynamic_rotate %16 by %c2_i32 dim 0 : vector<1024x2xf32>, i32 -> vector<1024x2xf32>
    %24 = arith.maximumf %22, %23 : vector<1024x2xf32>
    %c992_i32 = arith.constant 992 : i32
    %25 = tpu.dynamic_rotate %24 by %c992_i32 dim 0 : vector<1024x2xf32>, i32 -> vector<1024x2xf32>
    %26 = arith.maximumf %24, %25 : vector<1024x2xf32>
    %c32_i32 = arith.constant 32 : i32
    %27 = tpu.dynamic_rotate %24 by %c32_i32 dim 0 : vector<1024x2xf32>, i32 -> vector<1024x2xf32>
    %28 = arith.maximumf %26, %27 : vector<1024x2xf32>
    %c960_i32 = arith.constant 960 : i32
    %29 = tpu.dynamic_rotate %24 by %c960_i32 dim 0 : vector<1024x2xf32>, i32 -> vector<1024x2xf32>
    %30 = arith.maximumf %28, %29 : vector<1024x2xf32>
    %c64_i32 = arith.constant 64 : i32
    %31 = tpu.dynamic_rotate %24 by %c64_i32 dim 0 : vector<1024x2xf32>, i32 -> vector<1024x2xf32>
    %32 = arith.maximumf %30, %31 : vector<1024x2xf32>
    %c1023_i32_16 = arith.constant 1023 : i32
    %33 = tpu.dynamic_rotate %32 by %c1023_i32_16 dim 0 : vector<1024x2xf32>, i32 -> vector<1024x2xf32>
    %34 = arith.maximumf %32, %33 : vector<1024x2xf32>
    %c1_i32_17 = arith.constant 1 : i32
    %35 = tpu.dynamic_rotate %32 by %c1_i32_17 dim 0 : vector<1024x2xf32>, i32 -> vector<1024x2xf32>
    %36 = arith.maximumf %34, %35 : vector<1024x2xf32>
    %c1022_i32_18 = arith.constant 1022 : i32
    %37 = tpu.dynamic_rotate %32 by %c1022_i32_18 dim 0 : vector<1024x2xf32>, i32 -> vector<1024x2xf32>
    %38 = arith.maximumf %36, %37 : vector<1024x2xf32>
    %c2_i32_19 = arith.constant 2 : i32
    %39 = tpu.dynamic_rotate %32 by %c2_i32_19 dim 0 : vector<1024x2xf32>, i32 -> vector<1024x2xf32>
    %40 = arith.maximumf %38, %39 : vector<1024x2xf32>
    %c992_i32_20 = arith.constant 992 : i32
    %41 = tpu.dynamic_rotate %40 by %c992_i32_20 dim 0 : vector<1024x2xf32>, i32 -> vector<1024x2xf32>
    %42 = arith.maximumf %40, %41 : vector<1024x2xf32>
    %c32_i32_21 = arith.constant 32 : i32
    %43 = tpu.dynamic_rotate %40 by %c32_i32_21 dim 0 : vector<1024x2xf32>, i32 -> vector<1024x2xf32>
    %44 = arith.maximumf %42, %43 : vector<1024x2xf32>
    %c960_i32_22 = arith.constant 960 : i32
    %45 = tpu.dynamic_rotate %40 by %c960_i32_22 dim 0 : vector<1024x2xf32>, i32 -> vector<1024x2xf32>
    %46 = arith.maximumf %44, %45 : vector<1024x2xf32>
    %c64_i32_23 = arith.constant 64 : i32
    %47 = tpu.dynamic_rotate %40 by %c64_i32_23 dim 0 : vector<1024x2xf32>, i32 -> vector<1024x2xf32>
    %48 = arith.maximumf %46, %47 : vector<1024x2xf32>
    %c1023_i32_24 = arith.constant 1023 : i32
    %49 = tpu.dynamic_rotate %48 by %c1023_i32_24 dim 0 : vector<1024x2xf32>, i32 -> vector<1024x2xf32>
    %50 = arith.maximumf %48, %49 : vector<1024x2xf32>
    %c1_i32_25 = arith.constant 1 : i32
    %51 = tpu.dynamic_rotate %48 by %c1_i32_25 dim 0 : vector<1024x2xf32>, i32 -> vector<1024x2xf32>
    %52 = arith.maximumf %50, %51 : vector<1024x2xf32>
    %c1022_i32_26 = arith.constant 1022 : i32
    %53 = tpu.dynamic_rotate %48 by %c1022_i32_26 dim 0 : vector<1024x2xf32>, i32 -> vector<1024x2xf32>
    %54 = arith.maximumf %52, %53 : vector<1024x2xf32>
    %c2_i32_27 = arith.constant 2 : i32
    %55 = tpu.dynamic_rotate %48 by %c2_i32_27 dim 0 : vector<1024x2xf32>, i32 -> vector<1024x2xf32>
    %56 = arith.maximumf %54, %55 : vector<1024x2xf32>
    %c992_i32_28 = arith.constant 992 : i32
    %57 = tpu.dynamic_rotate %56 by %c992_i32_28 dim 0 : vector<1024x2xf32>, i32 -> vector<1024x2xf32>
    %58 = arith.maximumf %56, %57 : vector<1024x2xf32>
    %c32_i32_29 = arith.constant 32 : i32
    %59 = tpu.dynamic_rotate %56 by %c32_i32_29 dim 0 : vector<1024x2xf32>, i32 -> vector<1024x2xf32>
    %60 = arith.maximumf %58, %59 : vector<1024x2xf32>
    %c960_i32_30 = arith.constant 960 : i32
    %61 = tpu.dynamic_rotate %56 by %c960_i32_30 dim 0 : vector<1024x2xf32>, i32 -> vector<1024x2xf32>
    %62 = arith.maximumf %60, %61 : vector<1024x2xf32>
    %c64_i32_31 = arith.constant 64 : i32
    %63 = tpu.dynamic_rotate %56 by %c64_i32_31 dim 0 : vector<1024x2xf32>, i32 -> vector<1024x2xf32>
    %64 = arith.maximumf %62, %63 : vector<1024x2xf32>
    %65 = arith.truncf %10 : vector<256x2xf32> to vector<256x2xbf16>
    %c0_32 = arith.constant 0 : index
    %c0_33 = arith.constant 0 : index
    %66 = vector.load %arg4[%c0_32, %c0_33] : memref<2x8xbf16, #tpu.memory_space<vmem>>, vector<2x8xbf16>
    %cst_34 = arith.constant dense<0.000000e+00> : vector<256x8xf32>
    %67 = tpu.matmul %65, %66, %cst_34 {dimension_numbers = #tpu.dot_dimension_numbers<[1], [0], [0], [1], [0, 0, 1, 1], [], []>} : vector<256x2xbf16>, vector<2x8xbf16>, vector<256x8xf32> -> vector<256x8xf32>
    %68 = vector.shape_cast %32 : vector<1024x2xf32> to vector<32x32x2xf32>
    %69 = vector.extract_strided_slice %68 {offsets = [8, 8, 0], sizes = [16, 16, 2], strides = [1, 1, 1]} : vector<32x32x2xf32> to vector<16x16x2xf32>
    %70 = vector.shape_cast %69 : vector<16x16x2xf32> to vector<256x2xf32>
    %71 = arith.truncf %70 : vector<256x2xf32> to vector<256x2xbf16>
    %c0_35 = arith.constant 0 : index
    %c0_36 = arith.constant 0 : index
    %72 = vector.load %arg5[%c0_35, %c0_36] : memref<2x8xbf16, #tpu.memory_space<vmem>>, vector<2x8xbf16>
    %cst_37 = arith.constant dense<0.000000e+00> : vector<256x8xf32>
    %73 = tpu.matmul %71, %72, %cst_37 {dimension_numbers = #tpu.dot_dimension_numbers<[1], [0], [0], [1], [0, 0, 1, 1], [], []>} : vector<256x2xbf16>, vector<2x8xbf16>, vector<256x8xf32> -> vector<256x8xf32>
    %74 = arith.addf %67, %73 : vector<256x8xf32>
    %75 = vector.shape_cast %48 : vector<1024x2xf32> to vector<32x32x2xf32>
    %76 = vector.extract_strided_slice %75 {offsets = [8, 8, 0], sizes = [16, 16, 2], strides = [1, 1, 1]} : vector<32x32x2xf32> to vector<16x16x2xf32>
    %77 = vector.shape_cast %76 : vector<16x16x2xf32> to vector<256x2xf32>
    %78 = arith.truncf %77 : vector<256x2xf32> to vector<256x2xbf16>
    %c0_38 = arith.constant 0 : index
    %c0_39 = arith.constant 0 : index
    %79 = vector.load %arg6[%c0_38, %c0_39] : memref<2x8xbf16, #tpu.memory_space<vmem>>, vector<2x8xbf16>
    %cst_40 = arith.constant dense<0.000000e+00> : vector<256x8xf32>
    %80 = tpu.matmul %78, %79, %cst_40 {dimension_numbers = #tpu.dot_dimension_numbers<[1], [0], [0], [1], [0, 0, 1, 1], [], []>} : vector<256x2xbf16>, vector<2x8xbf16>, vector<256x8xf32> -> vector<256x8xf32>
    %81 = arith.addf %74, %80 : vector<256x8xf32>
    %82 = vector.shape_cast %64 : vector<1024x2xf32> to vector<32x32x2xf32>
    %83 = vector.extract_strided_slice %82 {offsets = [8, 8, 0], sizes = [16, 16, 2], strides = [1, 1, 1]} : vector<32x32x2xf32> to vector<16x16x2xf32>
    %84 = vector.shape_cast %83 : vector<16x16x2xf32> to vector<256x2xf32>
    %85 = arith.truncf %84 : vector<256x2xf32> to vector<256x2xbf16>
    %c0_41 = arith.constant 0 : index
    %c0_42 = arith.constant 0 : index
    %86 = vector.load %arg7[%c0_41, %c0_42] : memref<2x8xbf16, #tpu.memory_space<vmem>>, vector<2x8xbf16>
    %cst_43 = arith.constant dense<0.000000e+00> : vector<256x8xf32>
    %87 = tpu.matmul %85, %86, %cst_43 {dimension_numbers = #tpu.dot_dimension_numbers<[1], [0], [0], [1], [0, 0, 1, 1], [], []>} : vector<256x2xbf16>, vector<2x8xbf16>, vector<256x8xf32> -> vector<256x8xf32>
    %88 = arith.addf %81, %87 : vector<256x8xf32>
    %c0_44 = arith.constant 0 : index
    %c0_45 = arith.constant 0 : index
    %89 = vector.load %arg8[%c0_44, %c0_45] : memref<1x8xf32, #tpu.memory_space<vmem>>, vector<1x8xf32>
    %90 = vector.broadcast %89 : vector<1x8xf32> to vector<256x8xf32>
    %91 = arith.addf %88, %90 : vector<256x8xf32>
    %cst_46 = arith.constant 1.000000e-01 : f32
    %92 = vector.broadcast %cst_46 : f32 to vector<256x8xf32>
    %93 = arith.mulf %92, %91 : vector<256x8xf32>
    %94 = arith.maximumf %91, %93 : vector<256x8xf32>
    %c0_47 = arith.constant 0 : index
    %c0_48 = arith.constant 0 : index
    %c0_49 = arith.constant 0 : index
    %95 = vector.load %arg9[%c0_47, %c0_48, %c0_49] : memref<1x256x8xf32, #tpu.memory_space<vmem>>, vector<1x256x8xf32>
    %96 = vector.shape_cast %95 : vector<1x256x8xf32> to vector<256x8xf32>
    %97 = vector.shape_cast %94 : vector<256x8xf32> to vector<1x256x8xf32>
    tpu.vector_store %arg9[%c0_47, %c0_48, %c0_49], %97 {strides = array<i32>} : memref<1x256x8xf32, #tpu.memory_space<vmem>>, vector<1x256x8xf32>,
    return
  }
  func.func @transform_0(%arg0: i32) -> (i32, i32, i32) {
    %c0_i32 = arith.constant 0 : i32
    %c0_i32_0 = arith.constant 0 : i32
    %c0_i32_1 = arith.constant 0 : i32
    return %arg0, %c0_i32, %c0_i32_0 : i32, i32, i32
  }
  func.func @transform_1(%arg0: i32) -> (i32, i32) {
    %c0_i32 = arith.constant 0 : i32
    %c0_i32_0 = arith.constant 0 : i32
    %c0_i32_1 = arith.constant 0 : i32
    return %c0_i32, %c0_i32_0 : i32, i32
  }
  func.func @transform_2(%arg0: i32) -> (i32, i32) {
    %c0_i32 = arith.constant 0 : i32
    %c0_i32_0 = arith.constant 0 : i32
    %c0_i32_1 = arith.constant 0 : i32
    return %c0_i32, %c0_i32_0 : i32, i32
  }
  func.func @transform_3(%arg0: i32) -> (i32, i32) {
    %c0_i32 = arith.constant 0 : i32
    %c0_i32_0 = arith.constant 0 : i32
    %c0_i32_1 = arith.constant 0 : i32
    return %c0_i32, %c0_i32_0 : i32, i32
  }
  func.func @transform_4(%arg0: i32) -> (i32, i32) {
    %c0_i32 = arith.constant 0 : i32
    %c0_i32_0 = arith.constant 0 : i32
    %c0_i32_1 = arith.constant 0 : i32
    return %c0_i32, %c0_i32_0 : i32, i32
  }
  func.func @transform_5(%arg0: i32) -> (i32, i32) {
    %c0_i32 = arith.constant 0 : i32
    %c0_i32_0 = arith.constant 0 : i32
    %c0_i32_1 = arith.constant 0 : i32
    return %c0_i32, %c0_i32_0 : i32, i32
  }
  func.func @transform_6(%arg0: i32) -> (i32, i32) {
    %c0_i32 = arith.constant 0 : i32
    %c0_i32_0 = arith.constant 0 : i32
    %c0_i32_1 = arith.constant 0 : i32
    return %c0_i32, %c0_i32_0 : i32, i32
  }
  func.func @transform_7(%arg0: i32) -> (i32, i32) {
    %c0_i32 = arith.constant 0 : i32
    %c0_i32_0 = arith.constant 0 : i32
    %c0_i32_1 = arith.constant 0 : i32
    return %c0_i32, %c0_i32_0 : i32, i32
  }
  func.func @transform_8(%arg0: i32) -> (i32, i32, i32) {
    %c0_i32 = arith.constant 0 : i32
    %c0_i32_0 = arith.constant 0 : i32
    %c0_i32_1 = arith.constant 0 : i32
    return %arg0, %c0_i32, %c0_i32_0 : i32, i32, i32
  }
}

</mosaic_0001>

<llo_original>
// kernel: spp_forward.1
$region0: #{spp_forward.1}
  #allocation0 [shape = 'u32[]', space=smem, size = 0x4, offset = 0x4, fixed_abs, tag = 'smem constant byte address 0x4 - core index']
  #allocation1 [shape = 'u32[144,128]{1,0:T(1,128)}', space=vmem, size = 0x12000, scoped, tag = 'internal scratch']
  #allocation2 [shape = 'f32[32,32,2]{2,1,0:T(8,128)}', space=vmem, size = 0x80000, scoped, tag = 'scratch operand']
  %s0 = inlined_call_operand.vmem [shape: f32[2,256,4], index: 0, kind: input, shape index: {}]
  %s1 = inlined_call_operand.vmem [shape: bf16[4,2], index: 1, kind: input, shape index: {}]
  %s2 = inlined_call_operand.vmem [shape: f32[1,2], index: 2, kind: input, shape index: {}]
  %s3 = inlined_call_operand.vmem [shape: bf16[2,8], index: 3, kind: input, shape index: {}]
  %s4 = inlined_call_operand.vmem [shape: bf16[2,8], index: 4, kind: input, shape index: {}]
  %s5 = inlined_call_operand.vmem [shape: bf16[2,8], index: 5, kind: input, shape index: {}]
  %s6 = inlined_call_operand.vmem [shape: bf16[2,8], index: 6, kind: input, shape index: {}]
  %s7 = inlined_call_operand.vmem [shape: f32[1,8], index: 7, kind: input, shape index: {}]
  %s8 = inlined_call_operand.vmem [shape: f32[2,256,8], index: 8, kind: output, shape index: {}]
  %s9 = sld [smem:[#allocation0]]
  $region65: #{spp_forward.1} parent=0
    _
  %s11 = ssub.s32 1, %s9
  %s12 = scalar_select 0, %s11, %s9
  loop: start=0, step=1, limit=4
  $region2: #{spp_forward.1} parent=0 // loop_pre_header
    _
  $region3: #{spp_forward.1} parent=0 // loop_header
    %s14 = sphi 0, %s18
    %p15 = scmp.ge.s32.totalorder %s14, 4
    %s24 = sphi 0, %s26
    %s27 = sphi 0, %s24
    %s28 = sphi 0, %s27
    %s44 = sphi 0, %s28
    %s48 = sphi 0, %s48
    %s50 = sphi 0, %s48
    %s51 = sphi 0, %s50
    %s65 = sphi 0, %s51
    %s69 = sphi 0, %s69
    %s71 = sphi 0, %s69
    %s72 = sphi 0, %s71
    %s86 = sphi 0, %s72
    %s90 = sphi 0, %s90
    %s92 = sphi 0, %s90
    %s93 = sphi 0, %s92
    %s107 = sphi 0, %s93
    %s111 = sphi 0, %s111
    %s113 = sphi 0, %s111
    %s114 = sphi 0, %s113
    %s128 = sphi 0, %s114
    %s132 = sphi 0, %s132
    %s134 = sphi 0, %s132
    %s135 = sphi 0, %s134
    %s149 = sphi 0, %s135
    %s153 = sphi 0, %s153
    %s155 = sphi 0, %s153
    %s156 = sphi 0, %s155
    %s170 = sphi 0, %s156
    %s174 = sphi 0, %s174
    %s176 = sphi 0, %s174
    %s177 = sphi 0, %s176
    %s191 = sphi 0, %s177
    %s197 = sphi 0, %s199
    %s200 = sphi 0, %s197
    %s201 = sphi 0, %s200
    %s217 = sphi 0, %s201
  $region4: #{spp_forward.1} parent=0 // loop_header_branch
    %17 = sbr.rel (%p15) target = $region8
  $region5: #{spp_forward.1} parent=0 // loop_body
    %s19 = ssub.s32 %s14, 1
    %s20 = ssub.s32 %s14, 2
    %s21 = sadd.s32 %s14, 1
    %s22 = ssub.s32 %s14, %s21
    %p23 = scmp.eq.s32.totalorder %s22, 0
    %s25 = sadd.s32 %s24, 1
    %s26 = scalar_select %p23, %s24, %s25
    %p29 = pneg %p23
    %p30 = scmp.eq.s32.totalorder %s14, 1
    %p31 = por %p29, %p30
    %p32 = scmp.ne.s32.totalorder %s24, %s27
    %p33 = scmp.eq.s32.totalorder %s14, 0
    %p34 = por %p32, %p33
    %p35 = scmp.ne.s32.totalorder %s24, %s27
    %p36 = scmp.eq.s32.totalorder %s19, 1
    %p37 = por %p35, %p36
    %p38 = scmp.ne.s32.totalorder %s27, %s28
    %p39 = scmp.eq.s32.totalorder %s19, 0
    %p40 = por %p38, %p39
    %p41 = scmp.ne.s32.totalorder %s27, %s28
    %p42 = scmp.eq.s32.totalorder %s20, 1
    %p43 = por %p41, %p42
    %p45 = scmp.ne.s32.totalorder %s28, %s44
    %p46 = scmp.eq.s32.totalorder %s20, 0
    %p47 = por %p45, %p46
    %s49 = sadd.s32 %s48, 1
    %p52 = scmp.eq.s32.totalorder %s14, 1
    %p53 = scmp.ne.s32.totalorder %s48, %s50
    %p54 = scmp.eq.s32.totalorder %s14, 0
    %p55 = por %p53, %p54
    %p56 = scmp.ne.s32.totalorder %s48, %s50
    %p57 = scmp.eq.s32.totalorder %s19, 1
    %p58 = por %p56, %p57
    %p59 = scmp.ne.s32.totalorder %s50, %s51
    %p60 = scmp.eq.s32.totalorder %s19, 0
    %p61 = por %p59, %p60
    %p62 = scmp.ne.s32.totalorder %s50, %s51
    %p63 = scmp.eq.s32.totalorder %s20, 1
    %p64 = por %p62, %p63
    %p66 = scmp.ne.s32.totalorder %s51, %s65
    %p67 = scmp.eq.s32.totalorder %s20, 0
    %p68 = por %p66, %p67
    %s70 = sadd.s32 %s69, 1
    %p73 = scmp.eq.s32.totalorder %s14, 1
    %p74 = scmp.ne.s32.totalorder %s69, %s71
    %p75 = scmp.eq.s32.totalorder %s14, 0
    %p76 = por %p74, %p75
    %p77 = scmp.ne.s32.totalorder %s69, %s71
    %p78 = scmp.eq.s32.totalorder %s19, 1
    %p79 = por %p77, %p78
    %p80 = scmp.ne.s32.totalorder %s71, %s72
    %p81 = scmp.eq.s32.totalorder %s19, 0
    %p82 = por %p80, %p81
    %p83 = scmp.ne.s32.totalorder %s71, %s72
    %p84 = scmp.eq.s32.totalorder %s20, 1
    %p85 = por %p83, %p84
    %p87 = scmp.ne.s32.totalorder %s72, %s86
    %p88 = scmp.eq.s32.totalorder %s20, 0
    %p89 = por %p87, %p88
    %s91 = sadd.s32 %s90, 1
    %p94 = scmp.eq.s32.totalorder %s14, 1
    %p95 = scmp.ne.s32.totalorder %s90, %s92
    %p96 = scmp.eq.s32.totalorder %s14, 0
    %p97 = por %p95, %p96
    %p98 = scmp.ne.s32.totalorder %s90, %s92
    %p99 = scmp.eq.s32.totalorder %s19, 1
    %p100 = por %p98, %p99
    %p101 = scmp.ne.s32.totalorder %s92, %s93
    %p102 = scmp.eq.s32.totalorder %s19, 0
    %p103 = por %p101, %p102
    %p104 = scmp.ne.s32.totalorder %s92, %s93
    %p105 = scmp.eq.s32.totalorder %s20, 1
    %p106 = por %p104, %p105
    %p108 = scmp.ne.s32.totalorder %s93, %s107
    %p109 = scmp.eq.s32.totalorder %s20, 0
    %p110 = por %p108, %p109
    %s112 = sadd.s32 %s111, 1
    %p115 = scmp.eq.s32.totalorder %s14, 1
    %p116 = scmp.ne.s32.totalorder %s111, %s113
    %p117 = scmp.eq.s32.totalorder %s14, 0
    %p118 = por %p116, %p117
    %p119 = scmp.ne.s32.totalorder %s111, %s113
    %p120 = scmp.eq.s32.totalorder %s19, 1
    %p121 = por %p119, %p120
    %p122 = scmp.ne.s32.totalorder %s113, %s114
    %p123 = scmp.eq.s32.totalorder %s19, 0
    %p124 = por %p122, %p123
    %p125 = scmp.ne.s32.totalorder %s113, %s114
    %p126 = scmp.eq.s32.totalorder %s20, 1
    %p127 = por %p125, %p126
    %p129 = scmp.ne.s32.totalorder %s114, %s128
    %p130 = scmp.eq.s32.totalorder %s20, 0
    %p131 = por %p129, %p130
    %s133 = sadd.s32 %s132, 1
    %p136 = scmp.eq.s32.totalorder %s14, 1
    %p137 = scmp.ne.s32.totalorder %s132, %s134
    %p138 = scmp.eq.s32.totalorder %s14, 0
    %p139 = por %p137, %p138
    %p140 = scmp.ne.s32.totalorder %s132, %s134
    %p141 = scmp.eq.s32.totalorder %s19, 1
    %p142 = por %p140, %p141
    %p143 = scmp.ne.s32.totalorder %s134, %s135
    %p144 = scmp.eq.s32.totalorder %s19, 0
    %p145 = por %p143, %p144
    %p146 = scmp.ne.s32.totalorder %s134, %s135
    %p147 = scmp.eq.s32.totalorder %s20, 1
    %p148 = por %p146, %p147
    %p150 = scmp.ne.s32.totalorder %s135, %s149
    %p151 = scmp.eq.s32.totalorder %s20, 0
    %p152 = por %p150, %p151
    %s154 = sadd.s32 %s153, 1
    %p157 = scmp.eq.s32.totalorder %s14, 1
    %p158 = scmp.ne.s32.totalorder %s153, %s155
    %p159 = scmp.eq.s32.totalorder %s14, 0
    %p160 = por %p158, %p159
    %p161 = scmp.ne.s32.totalorder %s153, %s155
    %p162 = scmp.eq.s32.totalorder %s19, 1
    %p163 = por %p161, %p162
    %p164 = scmp.ne.s32.totalorder %s155, %s156
    %p165 = scmp.eq.s32.totalorder %s19, 0
    %p166 = por %p164, %p165
    %p167 = scmp.ne.s32.totalorder %s155, %s156
    %p168 = scmp.eq.s32.totalorder %s20, 1
    %p169 = por %p167, %p168
    %p171 = scmp.ne.s32.totalorder %s156, %s170
    %p172 = scmp.eq.s32.totalorder %s20, 0
    %p173 = por %p171, %p172
    %s175 = sadd.s32 %s174, 1
    %p178 = scmp.eq.s32.totalorder %s14, 1
    %p179 = scmp.ne.s32.totalorder %s174, %s176
    %p180 = scmp.eq.s32.totalorder %s14, 0
    %p181 = por %p179, %p180
    %p182 = scmp.ne.s32.totalorder %s174, %s176
    %p183 = scmp.eq.s32.totalorder %s19, 1
    %p184 = por %p182, %p183
    %p185 = scmp.ne.s32.totalorder %s176, %s177
    %p186 = scmp.eq.s32.totalorder %s19, 0
    %p187 = por %p185, %p186
    %p188 = scmp.ne.s32.totalorder %s176, %s177
    %p189 = scmp.eq.s32.totalorder %s20, 1
    %p190 = por %p188, %p189
    %p192 = scmp.ne.s32.totalorder %s177, %s191
    %p193 = scmp.eq.s32.totalorder %s20, 0
    %p194 = por %p192, %p193
    %s195 = ssub.s32 %s14, %s21
    %p196 = scmp.eq.s32.totalorder %s195, 0
    %s198 = sadd.s32 %s197, 1
    %s199 = scalar_select %p196, %s197, %s198
    %p202 = pneg %p196
    %p203 = scmp.eq.s32.totalorder %s14, 1
    %p204 = por %p202, %p203
    %p205 = scmp.ne.s32.totalorder %s197, %s200
    %p206 = scmp.eq.s32.totalorder %s14, 0
    %p207 = por %p205, %p206
    %p208 = scmp.ne.s32.totalorder %s197, %s200
    %p209 = scmp.eq.s32.totalorder %s19, 1
    %p210 = por %p208, %p209
    %p211 = scmp.ne.s32.totalorder %s200, %s201
    %p212 = scmp.eq.s32.totalorder %s19, 0
    %p213 = por %p211, %p212
    %p214 = scmp.ne.s32.totalorder %s200, %s201
    %p215 = scmp.eq.s32.totalorder %s20, 1
    %p216 = por %p214, %p215
    %p218 = scmp.ne.s32.totalorder %s201, %s217
    %p219 = scmp.eq.s32.totalorder %s20, 0
    %p220 = por %p218, %p219
    %p221 = scmp.le.s32.totalorder 1, %s14
    %p222 = scmp.lt.s32.totalorder %s14, 3
    %p223 = pnand %p221, %p222
    %p224 = pneg %p223
    // Predicated region
    $region9: #{spp_forward.1} parent=5 // pred_check
      _
    $region10: #{spp_forward.1} parent=5 // pred_check_branch
      %226 = sbr.rel (%p223) target = $region12
    $region11: #{spp_forward.1} parent=5 // pred_region
      %s227 = ssub.s32 %s14, 1
      // Predicated region
      $region13: #{spp_forward.1} parent=11 // pred_check
        %p228 = pneg %p61
      $region14: #{spp_forward.1} parent=11 // pred_check_branch
        %230 = sbr.rel (%p228) target = $region16
      $region15: #{spp_forward.1} parent=11 // pred_region
        _
      $region16: #{spp_forward.1} parent=11 // pred_fallthru
        _
      // Predicated region
      $region17: #{spp_forward.1} parent=11 // pred_check
        %p231 = pneg %p82
      $region18: #{spp_forward.1} parent=11 // pred_check_branch
        %233 = sbr.rel (%p231) target = $region20
      $region19: #{spp_forward.1} parent=11 // pred_region
        _
      $region20: #{spp_forward.1} parent=11 // pred_fallthru
        _
      // Predicated region
      $region21: #{spp_forward.1} parent=11 // pred_check
        %p234 = pneg %p103
      $region22: #{spp_forward.1} parent=11 // pred_check_branch
        %236 = sbr.rel (%p234) target = $region24
      $region23: #{spp_forward.1} parent=11 // pred_region
        _
      $region24: #{spp_forward.1} parent=11 // pred_fallthru
        _
      // Predicated region
      $region25: #{spp_forward.1} parent=11 // pred_check
        %p237 = pneg %p124
      $region26: #{spp_forward.1} parent=11 // pred_check_branch
        %239 = sbr.rel (%p237) target = $region28
      $region27: #{spp_forward.1} parent=11 // pred_region
        _
      $region28: #{spp_forward.1} parent=11 // pred_fallthru
        _
      // Predicated region
      $region29: #{spp_forward.1} parent=11 // pred_check
        %p240 = pneg %p145
      $region30: #{spp_forward.1} parent=11 // pred_check_branch
        %242 = sbr.rel (%p240) target = $region32
      $region31: #{spp_forward.1} parent=11 // pred_region
        _
      $region32: #{spp_forward.1} parent=11 // pred_fallthru
        _
      // Predicated region
      $region33: #{spp_forward.1} parent=11 // pred_check
        %p243 = pneg %p166
      $region34: #{spp_forward.1} parent=11 // pred_check_branch
        %245 = sbr.rel (%p243) target = $region36
      $region35: #{spp_forward.1} parent=11 // pred_region
        _
      $region36: #{spp_forward.1} parent=11 // pred_fallthru
        _
      // Predicated region
      $region37: #{spp_forward.1} parent=11 // pred_check
        %p246 = pneg %p187
      $region38: #{spp_forward.1} parent=11 // pred_check_branch
        %248 = sbr.rel (%p246) target = $region40
      $region39: #{spp_forward.1} parent=11 // pred_region
        _
      $region40: #{spp_forward.1} parent=11 // pred_fallthru
        _
    $region12: #{spp_forward.1} parent=5 // pred_fallthru
      _
    %p249 = scmp.lt.s32.totalorder %s14, 2
    // Predicated region
    $region41: #{spp_forward.1} parent=5 // pred_check
      %p250 = pneg %p249
    $region42: #{spp_forward.1} parent=5 // pred_check_branch
      %252 = sbr.rel (%p250) target = $region44
    $region43: #{spp_forward.1} parent=5 // pred_region
      // Predicated region
      $region45: #{spp_forward.1} parent=43 // pred_check
        %p253 = pneg %p34
      $region46: #{spp_forward.1} parent=43 // pred_check_branch
        %255 = sbr.rel (%p253) target = $region48
      $region47: #{spp_forward.1} parent=43 // pred_region
        %p256 = scmp.lt.s32.totalorder %s14, 1
        %s257 = scalar_select %p256, %s14, 1
        %s258 = smul.addr %s257, 32
        %s259 = smul.addr %s258, 8
        %s260 = scalar_lea.vmem %s0, %s259
      $region48: #{spp_forward.1} parent=43 // pred_fallthru
        _
    $region44: #{spp_forward.1} parent=5 // pred_fallthru
      _
    %p261 = scmp.le.s32.totalorder 1, %s14
    %p262 = scmp.lt.s32.totalorder %s14, 3
    %p263 = pnand %p261, %p262
    %p264 = pneg %p263
    // Predicated region
    $region49: #{spp_forward.1} parent=5 // pred_check
      _
    $region50: #{spp_forward.1} parent=5 // pred_check_branch
      %266 = sbr.rel (%p263) target = $region52
    $region51: #{spp_forward.1} parent=5 // pred_region
      %s267 = ssub.s32 %s14, 1
      %p268 = scmp.lt.s32.totalorder %s19, 1
      %s269 = scalar_select %p268, %s19, 1
      %s270 = smul.addr %s269, 32
      %s271 = smul.addr %s270, 8
      %s272 = scalar_lea.vmem %s0, %s271
      %p273 = pneg %p40
      %p274 = pneg %p37
      %p275 = pneg %p61
      %p276 = pneg %p58
      %p277 = pneg %p82
      %p278 = pneg %p79
      %p279 = pneg %p103
      %p280 = pneg %p100
      %p281 = pneg %p124
      %p282 = pneg %p121
      %p283 = pneg %p145
      %p284 = pneg %p142
      %p285 = pneg %p166
      %p286 = pneg %p163
      %p287 = pneg %p187
      %p288 = pneg %p184
      %p289 = pneg %p213
      %p290 = pneg %p210
      %p291 = scmp.lt.s32.totalorder %s19, 1
      %s292 = scalar_select %p291, %s19, 1
      %s293 = smul.addr %s292, 32
      %s294 = smul.addr %s293, 8
      %s295 = scalar_lea.vmem %s8, %s294
      %p296 = scmp.lt.s32.totalorder %s19, 1
      %s297 = scalar_select %p296, %s19, 1
      %s298 = smul.addr %s297, 32
      %s299 = smul.addr %s298, 8
      %s300 = scalar_lea.vmem %s0, %s299
      %p301 = scmp.lt.s32.totalorder %s19, 1
      %s302 = scalar_select %p301, %s19, 1
      %s303 = smul.addr %s302, 32
      %s304 = smul.addr %s303, 8
      %s305 = scalar_lea.vmem %s8, %s304
      %v307 = vld [vmem:[%s300] sm:$0xff]
      %v308 = vld [vmem:[%s300 + $0x8] sm:$0xff]
      %v309 = vld [vmem:[%s300 + $0x10] sm:$0xff]
      %v310 = vld [vmem:[%s300 + $0x18] sm:$0xff]
      %v311 = vld [vmem:[%s300 + $0x20] sm:$0xff]
      %v312 = vld [vmem:[%s300 + $0x28] sm:$0xff]
      %v313 = vld [vmem:[%s300 + $0x30] sm:$0xff]
      %v314 = vld [vmem:[%s300 + $0x38] sm:$0xff]
      %v315 = vld [vmem:[%s300 + $0x40] sm:$0xff]
      %v316 = vld [vmem:[%s300 + $0x48] sm:$0xff]
      %v317 = vld [vmem:[%s300 + $0x50] sm:$0xff]
      %v318 = vld [vmem:[%s300 + $0x58] sm:$0xff]
      %v319 = vld [vmem:[%s300 + $0x60] sm:$0xff]
      %v320 = vld [vmem:[%s300 + $0x68] sm:$0xff]
      %v321 = vld [vmem:[%s300 + $0x70] sm:$0xff]
      %v322 = vld [vmem:[%s300 + $0x78] sm:$0xff]
      %v323 = vld [vmem:[%s300 + $0x80] sm:$0xff]
      %v324 = vld [vmem:[%s300 + $0x88] sm:$0xff]
      %v325 = vld [vmem:[%s300 + $0x90] sm:$0xff]
      %v326 = vld [vmem:[%s300 + $0x98] sm:$0xff]
      %v327 = vld [vmem:[%s300 + $0xa0] sm:$0xff]
      %v328 = vld [vmem:[%s300 + $0xa8] sm:$0xff]
      %v329 = vld [vmem:[%s300 + $0xb0] sm:$0xff]
      %v330 = vld [vmem:[%s300 + $0xb8] sm:$0xff]
      %v331 = vld [vmem:[%s300 + $0xc0] sm:$0xff]
      %v332 = vld [vmem:[%s300 + $0xc8] sm:$0xff]
      %v333 = vld [vmem:[%s300 + $0xd0] sm:$0xff]
      %v334 = vld [vmem:[%s300 + $0xd8] sm:$0xff]
      %v335 = vld [vmem:[%s300 + $0xe0] sm:$0xff]
      %v336 = vld [vmem:[%s300 + $0xe8] sm:$0xff]
      %v337 = vld [vmem:[%s300 + $0xf0] sm:$0xff]
      %v338 = vld [vmem:[%s300 + $0xf8] sm:$0xff]
      %v339 = vpack.c.bf16 %v308, %v307
      %v340 = vpack.c.bf16 %v310, %v309
      %v341 = vpack.c.bf16 %v312, %v311
      %v342 = vpack.c.bf16 %v314, %v313
      %v343 = vpack.c.bf16 %v316, %v315
      %v344 = vpack.c.bf16 %v318, %v317
      %v345 = vpack.c.bf16 %v320, %v319
      %v346 = vpack.c.bf16 %v322, %v321
      %v347 = vpack.c.bf16 %v324, %v323
      %v348 = vpack.c.bf16 %v326, %v325
      %v349 = vpack.c.bf16 %v328, %v327
      %v350 = vpack.c.bf16 %v330, %v329
      %v351 = vpack.c.bf16 %v332, %v331
      %v352 = vpack.c.bf16 %v334, %v333
      %v353 = vpack.c.bf16 %v336, %v335
      %v354 = vpack.c.bf16 %v338, %v337
      %v355 = vld [vmem:[%s1] sm:$0x3]
      %v356 = vld [vmem:[%s2] sm:$0x1]
      %v358 = vlaneseq
      %v359 = vshrl.u32 %v358, 7
      %v360 = vsub.s32 0, %v359
      %v361 = vrot.slane %v356, %v360
      %vm363 = vcmask 31744
      %v365 = vsel %vm363, %v339, 0
      %v368 = vsel %vm363, %v340, 0
      %v371 = vsel %vm363, %v341, 0
      %v374 = vsel %vm363, %v342, 0
      %v377 = vsel %vm363, %v343, 0
      %v380 = vsel %vm363, %v344, 0
      %v383 = vsel %vm363, %v345, 0
      %v386 = vsel %vm363, %v346, 0
      %v389 = vsel %vm363, %v347, 0
      %v392 = vsel %vm363, %v348, 0
      %v395 = vsel %vm363, %v349, 0
      %v398 = vsel %vm363, %v350, 0
      %v401 = vsel %vm363, %v351, 0
      %v404 = vsel %vm363, %v352, 0
      %v407 = vsel %vm363, %v353, 0
      %v410 = vsel %vm363, %v354, 0
      %vm412 = vcmask 1041408
      %v414 = vsel %vm412, %v355, 0
      %416 = vmatprep.subr.bf16.mxu0 0
      %417 = vmatpush1.bf16.msra.mxu0 %v414
      %418 = vmatprep.subr.bf16.mxu0 0
      %419 = vmatpush1.bf16.msra.mxu0 0
      %420 = vmatprep.subr.bf16.mxu0 0
      %421 = vmatpush1.bf16.msra.mxu0 0
      %422 = vmatprep.subr.bf16.mxu0 0
      %423 = vmatpush1.bf16.msra.mxu0 0
      %424 = vmatprep.subr.bf16.mxu0 0
      %425 = vmatpush1.bf16.msra.mxu0 0
      %426 = vmatprep.subr.bf16.mxu0 0
      %427 = vmatpush1.bf16.msra.mxu0 0
      %428 = vmatprep.subr.bf16.mxu0 0
      %429 = vmatpush1.bf16.msra.mxu0 0
      %430 = vmatprep.subr.bf16.mxu0 0
      %431 = vmatpush1.bf16.msra.mxu0 0
      %432 = vmatprep.subr.bf16.mxu0 0
      %433 = vmatpush1.bf16.msra.mxu0 0
      %434 = vmatprep.subr.bf16.mxu0 0
      %435 = vmatpush1.bf16.msra.mxu0 0
      %436 = vmatprep.subr.bf16.mxu0 0
      %437 = vmatpush1.bf16.msra.mxu0 0
      %438 = vmatprep.subr.bf16.mxu0 0
      %439 = vmatpush1.bf16.msra.mxu0 0
      %440 = vmatprep.subr.bf16.mxu0 0
      %441 = vmatpush1.bf16.msra.mxu0 0
      %442 = vmatprep.subr.bf16.mxu0 0
      %443 = vmatpush1.bf16.msra.mxu0 0
      %444 = vmatprep.subr.bf16.mxu0 0
      %445 = vmatpush1.bf16.msra.mxu0 0
      %446 = vmatprep.subr.bf16.mxu0 0
      %447 = vmatpush1.bf16.msra.mxu0 0
      %448 = vmatprep.mubr.bf16.mxu0 0
      %449 = vmatmul.mubr.bf16.gmra.mrb[0].mxu0 %v365
      %v450 = vpop.f32.mrb[0].mxu0
      %v451 = vadd.f32 %v361, %v450
      %v452 = vpop.f32.mrb[0].mxu0
      %v453 = vpop.f32.mrb[0].mxu0
      %v454 = vadd.f32 %v361, %v453
      %v455 = vpop.f32.mrb[0].mxu0
      %456 = vmatprep.mubr.bf16.mxu0 0
      %457 = vmatmul.mubr.bf16.gmra.mrb[0].mxu0 %v368
      %v458 = vpop.f32.mrb[0].mxu0
      %v459 = vadd.f32 %v361, %v458
      %v460 = vpop.f32.mrb[0].mxu0
      %v461 = vpop.f32.mrb[0].mxu0
      %v462 = vadd.f32 %v361, %v461
      %v463 = vpop.f32.mrb[0].mxu0
      %464 = vmatprep.mubr.bf16.mxu0 0
      %465 = vmatmul.mubr.bf16.gmra.mrb[0].mxu0 %v371
      %v466 = vpop.f32.mrb[0].mxu0
      %v467 = vadd.f32 %v361, %v466
      %v468 = vpop.f32.mrb[0].mxu0
      %v469 = vpop.f32.mrb[0].mxu0
      %v470 = vadd.f32 %v361, %v469
      %v471 = vpop.f32.mrb[0].mxu0
      %472 = vmatprep.mubr.bf16.mxu0 0
      %473 = vmatmul.mubr.bf16.gmra.mrb[0].mxu0 %v374
      %v474 = vpop.f32.mrb[0].mxu0
      %v475 = vadd.f32 %v361, %v474
      %v476 = vpop.f32.mrb[0].mxu0
      %v477 = vpop.f32.mrb[0].mxu0
      %v478 = vadd.f32 %v361, %v477
      %v479 = vpop.f32.mrb[0].mxu0
      %480 = vmatprep.mubr.bf16.mxu0 0
      %481 = vmatmul.mubr.bf16.gmra.mrb[0].mxu0 %v377
      %v482 = vpop.f32.mrb[0].mxu0
      %v483 = vadd.f32 %v361, %v482
      %v484 = vpop.f32.mrb[0].mxu0
      %v485 = vpop.f32.mrb[0].mxu0
      %v486 = vadd.f32 %v361, %v485
      %v487 = vpop.f32.mrb[0].mxu0
      %488 = vmatprep.mubr.bf16.mxu0 0
      %489 = vmatmul.mubr.bf16.gmra.mrb[0].mxu0 %v380
      %v490 = vpop.f32.mrb[0].mxu0
      %v491 = vadd.f32 %v361, %v490
      %v492 = vpop.f32.mrb[0].mxu0
      %v493 = vpop.f32.mrb[0].mxu0
      %v494 = vadd.f32 %v361, %v493
      %v495 = vpop.f32.mrb[0].mxu0
      %496 = vmatprep.mubr.bf16.mxu0 0
      %497 = vmatmul.mubr.bf16.gmra.mrb[0].mxu0 %v383
      %v498 = vpop.f32.mrb[0].mxu0
      %v499 = vadd.f32 %v361, %v498
      %v500 = vpop.f32.mrb[0].mxu0
      %v501 = vpop.f32.mrb[0].mxu0
      %v502 = vadd.f32 %v361, %v501
      %v503 = vpop.f32.mrb[0].mxu0
      %504 = vmatprep.mubr.bf16.mxu0 0
      %505 = vmatmul.mubr.bf16.gmra.mrb[0].mxu0 %v386
      %v506 = vpop.f32.mrb[0].mxu0
      %v507 = vadd.f32 %v361, %v506
      %v508 = vpop.f32.mrb[0].mxu0
      %v509 = vpop.f32.mrb[0].mxu0
      %v510 = vadd.f32 %v361, %v509
      %v511 = vpop.f32.mrb[0].mxu0
      %512 = vmatprep.mubr.bf16.mxu0 0
      %513 = vmatmul.mubr.bf16.gmra.mrb[0].mxu0 %v389
      %v514 = vpop.f32.mrb[0].mxu0
      %v515 = vadd.f32 %v361, %v514
      %v516 = vpop.f32.mrb[0].mxu0
      %v517 = vpop.f32.mrb[0].mxu0
      %v518 = vadd.f32 %v361, %v517
      %v519 = vpop.f32.mrb[0].mxu0
      %520 = vmatprep.mubr.bf16.mxu0 0
      %521 = vmatmul.mubr.bf16.gmra.mrb[0].mxu0 %v392
      %v522 = vpop.f32.mrb[0].mxu0
      %v523 = vadd.f32 %v361, %v522
      %v524 = vpop.f32.mrb[0].mxu0
      %v525 = vpop.f32.mrb[0].mxu0
      %v526 = vadd.f32 %v361, %v525
      %v527 = vpop.f32.mrb[0].mxu0
      %528 = vmatprep.mubr.bf16.mxu0 0
      %529 = vmatmul.mubr.bf16.gmra.mrb[0].mxu0 %v395
      %v530 = vpop.f32.mrb[0].mxu0
      %v531 = vadd.f32 %v361, %v530
      %v532 = vpop.f32.mrb[0].mxu0
      %v533 = vpop.f32.mrb[0].mxu0
      %v534 = vadd.f32 %v361, %v533
      %v535 = vpop.f32.mrb[0].mxu0
      %536 = vmatprep.mubr.bf16.mxu0 0
      %537 = vmatmul.mubr.bf16.gmra.mrb[0].mxu0 %v398
      %v538 = vpop.f32.mrb[0].mxu0
      %v539 = vadd.f32 %v361, %v538
      %v540 = vpop.f32.mrb[0].mxu0
      %v541 = vpop.f32.mrb[0].mxu0
      %v542 = vadd.f32 %v361, %v541
      %v543 = vpop.f32.mrb[0].mxu0
      %544 = vmatprep.mubr.bf16.mxu0 0
      %545 = vmatmul.mubr.bf16.gmra.mrb[0].mxu0 %v401
      %v546 = vpop.f32.mrb[0].mxu0
      %v547 = vadd.f32 %v361, %v546
      %v548 = vpop.f32.mrb[0].mxu0
      %v549 = vpop.f32.mrb[0].mxu0
      %v550 = vadd.f32 %v361, %v549
      %v551 = vpop.f32.mrb[0].mxu0
      %552 = vmatprep.mubr.bf16.mxu0 0
      %553 = vmatmul.mubr.bf16.gmra.mrb[0].mxu0 %v404
      %v554 = vpop.f32.mrb[0].mxu0
      %v555 = vadd.f32 %v361, %v554
      %v556 = vpop.f32.mrb[0].mxu0
      %v557 = vpop.f32.mrb[0].mxu0
      %v558 = vadd.f32 %v361, %v557
      %v559 = vpop.f32.mrb[0].mxu0
      %560 = vmatprep.mubr.bf16.mxu0 0
      %561 = vmatmul.mubr.bf16.gmra.mrb[0].mxu0 %v407
      %v562 = vpop.f32.mrb[0].mxu0
      %v563 = vadd.f32 %v361, %v562
      %v564 = vpop.f32.mrb[0].mxu0
      %v565 = vpop.f32.mrb[0].mxu0
      %v566 = vadd.f32 %v361, %v565
      %v567 = vpop.f32.mrb[0].mxu0
      %568 = vmatprep.mubr.bf16.mxu0 0
      %569 = vmatmul.mubr.bf16.gmra.mrb[0].mxu0 %v410
      %v570 = vpop.f32.mrb[0].mxu0
      %v571 = vadd.f32 %v361, %v570
      %v572 = vpop.f32.mrb[0].mxu0
      %v573 = vpop.f32.mrb[0].mxu0
      %v574 = vadd.f32 %v361, %v573
      %v575 = vpop.f32.mrb[0].mxu0
      %576 = vdwg.mxu0
      %v577 = vmul.f32 %v451, 0.1
      %v578 = vmul.f32 %v454, 0.1
      %v579 = vmul.f32 %v459, 0.1
      %v580 = vmul.f32 %v462, 0.1
      %v581 = vmul.f32 %v467, 0.1
      %v582 = vmul.f32 %v470, 0.1
      %v583 = vmul.f32 %v475, 0.1
      %v584 = vmul.f32 %v478, 0.1
      %v585 = vmul.f32 %v483, 0.1
      %v586 = vmul.f32 %v486, 0.1
      %v587 = vmul.f32 %v491, 0.1
      %v588 = vmul.f32 %v494, 0.1
      %v589 = vmul.f32 %v499, 0.1
      %v590 = vmul.f32 %v502, 0.1
      %v591 = vmul.f32 %v507, 0.1
      %v592 = vmul.f32 %v510, 0.1
      %v593 = vmul.f32 %v515, 0.1
      %v594 = vmul.f32 %v518, 0.1
      %v595 = vmul.f32 %v523, 0.1
      %v596 = vmul.f32 %v526, 0.1
      %v597 = vmul.f32 %v531, 0.1
      %v598 = vmul.f32 %v534, 0.1
      %v599 = vmul.f32 %v539, 0.1
      %v600 = vmul.f32 %v542, 0.1
      %v601 = vmul.f32 %v547, 0.1
      %v602 = vmul.f32 %v550, 0.1
      %v603 = vmul.f32 %v555, 0.1
      %v604 = vmul.f32 %v558, 0.1
      %v605 = vmul.f32 %v563, 0.1
      %v606 = vmul.f32 %v566, 0.1
      %v607 = vmul.f32 %v571, 0.1
      %v608 = vmul.f32 %v574, 0.1
      %v609 = vmax.f32 %v451, %v577
      %v610 = vmax.f32 %v454, %v578
      %v611 = vmax.f32 %v459, %v579
      %v612 = vmax.f32 %v462, %v580
      %v613 = vmax.f32 %v467, %v581
      %v614 = vmax.f32 %v470, %v582
      %v615 = vmax.f32 %v475, %v583
      %v616 = vmax.f32 %v478, %v584
      %v617 = vmax.f32 %v483, %v585
      %v618 = vmax.f32 %v486, %v586
      %v619 = vmax.f32 %v491, %v587
      %v620 = vmax.f32 %v494, %v588
      %v621 = vmax.f32 %v499, %v589
      %v622 = vmax.f32 %v502, %v590
      %v623 = vmax.f32 %v507, %v591
      %v624 = vmax.f32 %v510, %v592
      %v625 = vmax.f32 %v515, %v593
      %v626 = vmax.f32 %v518, %v594
      %v627 = vmax.f32 %v523, %v595
      %v628 = vmax.f32 %v526, %v596
      %v629 = vmax.f32 %v531, %v597
      %v630 = vmax.f32 %v534, %v598
      %v631 = vmax.f32 %v539, %v599
      %v632 = vmax.f32 %v542, %v600
      %v633 = vmax.f32 %v547, %v601
      %v634 = vmax.f32 %v550, %v602
      %v635 = vmax.f32 %v555, %v603
      %v636 = vmax.f32 %v558, %v604
      %v637 = vmax.f32 %v563, %v605
      %v638 = vmax.f32 %v566, %v606
      %v639 = vmax.f32 %v571, %v607
      %v640 = vmax.f32 %v574, %v608
      %vm641 = vcmask 15360
      %642 = vst.msk [vmem:[#allocation2] sm:$0xff] %vm641, -inf
      %643 = vst.msk [vmem:[#allocation2 + $0x8] sm:$0xff] %vm641, -inf
      %644 = vst.msk [vmem:[#allocation2 + $0x10] sm:$0xff] %vm641, -inf
      %645 = vst.msk [vmem:[#allocation2 + $0x18] sm:$0xff] %vm641, -inf
      %646 = vst.msk [vmem:[#allocation2 + $0x20] sm:$0xff] %vm641, -inf
      %647 = vst.msk [vmem:[#allocation2 + $0x28] sm:$0xff] %vm641, -inf
      %648 = vst.msk [vmem:[#allocation2 + $0x30] sm:$0xff] %vm641, -inf
      %649 = vst.msk [vmem:[#allocation2 + $0x38] sm:$0xff] %vm641, -inf
      %650 = vst.msk [vmem:[#allocation2 + $0x40] sm:$0xff] %vm641, -inf
      %651 = vst.msk [vmem:[#allocation2 + $0x48] sm:$0xff] %vm641, -inf
      %652 = vst.msk [vmem:[#allocation2 + $0x50] sm:$0xff] %vm641, -inf
      %653 = vst.msk [vmem:[#allocation2 + $0x58] sm:$0xff] %vm641, -inf
      %654 = vst.msk [vmem:[#allocation2 + $0x60] sm:$0xff] %vm641, -inf
      %655 = vst.msk [vmem:[#allocation2 + $0x68] sm:$0xff] %vm641, -inf
      %656 = vst.msk [vmem:[#allocation2 + $0x70] sm:$0xff] %vm641, -inf
      %657 = vst.msk [vmem:[#allocation2 + $0x78] sm:$0xff] %vm641, -inf
      %658 = vst.msk [vmem:[#allocation2 + $0x80] sm:$0xff] %vm641, -inf
      %659 = vst.msk [vmem:[#allocation2 + $0x88] sm:$0xff] %vm641, -inf
      %660 = vst.msk [vmem:[#allocation2 + $0x90] sm:$0xff] %vm641, -inf
      %661 = vst.msk [vmem:[#allocation2 + $0x98] sm:$0xff] %vm641, -inf
      %662 = vst.msk [vmem:[#allocation2 + $0xa0] sm:$0xff] %vm641, -inf
      %663 = vst.msk [vmem:[#allocation2 + $0xa8] sm:$0xff] %vm641, -inf
      %664 = vst.msk [vmem:[#allocation2 + $0xb0] sm:$0xff] %vm641, -inf
      %665 = vst.msk [vmem:[#allocation2 + $0xb8] sm:$0xff] %vm641, -inf
      %666 = vst.msk [vmem:[#allocation2 + $0xc0] sm:$0xff] %vm641, -inf
      %667 = vst.msk [vmem:[#allocation2 + $0xc8] sm:$0xff] %vm641, -inf
      %668 = vst.msk [vmem:[#allocation2 + $0xd0] sm:$0xff] %vm641, -inf
      %669 = vst.msk [vmem:[#allocation2 + $0xd8] sm:$0xff] %vm641, -inf
      %670 = vst.msk [vmem:[#allocation2 + $0xe0] sm:$0xff] %vm641, -inf
      %671 = vst.msk [vmem:[#allocation2 + $0xe8] sm:$0xff] %vm641, -inf
      %672 = vst.msk [vmem:[#allocation2 + $0xf0] sm:$0xff] %vm641, -inf
      %673 = vst.msk [vmem:[#allocation2 + $0xf8] sm:$0xff] %vm641, -inf
      %674 = vst.msk [vmem:[#allocation2 + $0x100] sm:$0xff] %vm641, -inf
      %675 = vst.msk [vmem:[#allocation2 + $0x108] sm:$0xff] %vm641, -inf
      %676 = vst.msk [vmem:[#allocation2 + $0x110] sm:$0xff] %vm641, -inf
      %677 = vst.msk [vmem:[#allocation2 + $0x118] sm:$0xff] %vm641, -inf
      %678 = vst.msk [vmem:[#allocation2 + $0x120] sm:$0xff] %vm641, -inf
      %679 = vst.msk [vmem:[#allocation2 + $0x128] sm:$0xff] %vm641, -inf
      %680 = vst.msk [vmem:[#allocation2 + $0x130] sm:$0xff] %vm641, -inf
      %681 = vst.msk [vmem:[#allocation2 + $0x138] sm:$0xff] %vm641, -inf
      %682 = vst.msk [vmem:[#allocation2 + $0x140] sm:$0xff] %vm641, -inf
      %683 = vst.msk [vmem:[#allocation2 + $0x148] sm:$0xff] %vm641, -inf
      %684 = vst.msk [vmem:[#allocation2 + $0x150] sm:$0xff] %vm641, -inf
      %685 = vst.msk [vmem:[#allocation2 + $0x158] sm:$0xff] %vm641, -inf
      %686 = vst.msk [vmem:[#allocation2 + $0x160] sm:$0xff] %vm641, -inf
      %687 = vst.msk [vmem:[#allocation2 + $0x168] sm:$0xff] %vm641, -inf
      %688 = vst.msk [vmem:[#allocation2 + $0x170] sm:$0xff] %vm641, -inf
      %689 = vst.msk [vmem:[#allocation2 + $0x178] sm:$0xff] %vm641, -inf
      %690 = vst.msk [vmem:[#allocation2 + $0x180] sm:$0xff] %vm641, -inf
      %691 = vst.msk [vmem:[#allocation2 + $0x188] sm:$0xff] %vm641, -inf
      %692 = vst.msk [vmem:[#allocation2 + $0x190] sm:$0xff] %vm641, -inf
      %693 = vst.msk [vmem:[#allocation2 + $0x198] sm:$0xff] %vm641, -inf
      %694 = vst.msk [vmem:[#allocation2 + $0x1a0] sm:$0xff] %vm641, -inf
      %695 = vst.msk [vmem:[#allocation2 + $0x1a8] sm:$0xff] %vm641, -inf
      %696 = vst.msk [vmem:[#allocation2 + $0x1b0] sm:$0xff] %vm641, -inf
      %697 = vst.msk [vmem:[#allocation2 + $0x1b8] sm:$0xff] %vm641, -inf
      %698 = vst.msk [vmem:[#allocation2 + $0x1c0] sm:$0xff] %vm641, -inf
      %699 = vst.msk [vmem:[#allocation2 + $0x1c8] sm:$0xff] %vm641, -inf
      %700 = vst.msk [vmem:[#allocation2 + $0x1d0] sm:$0xff] %vm641, -inf
      %701 = vst.msk [vmem:[#allocation2 + $0x1d8] sm:$0xff] %vm641, -inf
      %702 = vst.msk [vmem:[#allocation2 + $0x1e0] sm:$0xff] %vm641, -inf
      %703 = vst.msk [vmem:[#allocation2 + $0x1e8] sm:$0xff] %vm641, -inf
      %704 = vst.msk [vmem:[#allocation2 + $0x1f0] sm:$0xff] %vm641, -inf
      %705 = vst.msk [vmem:[#allocation2 + $0x1f8] sm:$0xff] %vm641, -inf
      %706 = vst.msk [vmem:[#allocation2 + $0x200] sm:$0xff] %vm641, -inf
      %707 = vst.msk [vmem:[#allocation2 + $0x208] sm:$0xff] %vm641, -inf
      %708 = vst.msk [vmem:[#allocation2 + $0x210] sm:$0xff] %vm641, -inf
      %709 = vst.msk [vmem:[#allocation2 + $0x218] sm:$0xff] %vm641, -inf
      %710 = vst.msk [vmem:[#allocation2 + $0x220] sm:$0xff] %vm641, -inf
      %711 = vst.msk [vmem:[#allocation2 + $0x228] sm:$0xff] %vm641, -inf
      %712 = vst.msk [vmem:[#allocation2 + $0x230] sm:$0xff] %vm641, -inf
      %713 = vst.msk [vmem:[#allocation2 + $0x238] sm:$0xff] %vm641, -inf
      %714 = vst.msk [vmem:[#allocation2 + $0x240] sm:$0xff] %vm641, -inf
      %715 = vst.msk [vmem:[#allocation2 + $0x248] sm:$0xff] %vm641, -inf
      %716 = vst.msk [vmem:[#allocation2 + $0x250] sm:$0xff] %vm641, -inf
      %717 = vst.msk [vmem:[#allocation2 + $0x258] sm:$0xff] %vm641, -inf
      %718 = vst.msk [vmem:[#allocation2 + $0x260] sm:$0xff] %vm641, -inf
      %719 = vst.msk [vmem:[#allocation2 + $0x268] sm:$0xff] %vm641, -inf
      %720 = vst.msk [vmem:[#allocation2 + $0x270] sm:$0xff] %vm641, -inf
      %721 = vst.msk [vmem:[#allocation2 + $0x278] sm:$0xff] %vm641, -inf
      %722 = vst.msk [vmem:[#allocation2 + $0x280] sm:$0xff] %vm641, -inf
      %723 = vst.msk [vmem:[#allocation2 + $0x288] sm:$0xff] %vm641, -inf
      %724 = vst.msk [vmem:[#allocation2 + $0x290] sm:$0xff] %vm641, -inf
      %725 = vst.msk [vmem:[#allocation2 + $0x298] sm:$0xff] %vm641, -inf
      %726 = vst.msk [vmem:[#allocation2 + $0x2a0] sm:$0xff] %vm641, -inf
      %727 = vst.msk [vmem:[#allocation2 + $0x2a8] sm:$0xff] %vm641, -inf
      %728 = vst.msk [vmem:[#allocation2 + $0x2b0] sm:$0xff] %vm641, -inf
      %729 = vst.msk [vmem:[#allocation2 + $0x2b8] sm:$0xff] %vm641, -inf
      %730 = vst.msk [vmem:[#allocation2 + $0x2c0] sm:$0xff] %vm641, -inf
      %731 = vst.msk [vmem:[#allocation2 + $0x2c8] sm:$0xff] %vm641, -inf
      %732 = vst.msk [vmem:[#allocation2 + $0x2d0] sm:$0xff] %vm641, -inf
      %733 = vst.msk [vmem:[#allocation2 + $0x2d8] sm:$0xff] %vm641, -inf
      %734 = vst.msk [vmem:[#allocation2 + $0x2e0] sm:$0xff] %vm641, -inf
      %735 = vst.msk [vmem:[#allocation2 + $0x2e8] sm:$0xff] %vm641, -inf
      %736 = vst.msk [vmem:[#allocation2 + $0x2f0] sm:$0xff] %vm641, -inf
      %737 = vst.msk [vmem:[#allocation2 + $0x2f8] sm:$0xff] %vm641, -inf
      %738 = vst.msk [vmem:[#allocation2 + $0x300] sm:$0xff] %vm641, -inf
      %739 = vst.msk [vmem:[#allocation2 + $0x308] sm:$0xff] %vm641, -inf
      %740 = vst.msk [vmem:[#allocation2 + $0x310] sm:$0xff] %vm641, -inf
      %741 = vst.msk [vmem:[#allocation2 + $0x318] sm:$0xff] %vm641, -inf
      %742 = vst.msk [vmem:[#allocation2 + $0x320] sm:$0xff] %vm641, -inf
      %743 = vst.msk [vmem:[#allocation2 + $0x328] sm:$0xff] %vm641, -inf
      %744 = vst.msk [vmem:[#allocation2 + $0x330] sm:$0xff] %vm641, -inf
      %745 = vst.msk [vmem:[#allocation2 + $0x338] sm:$0xff] %vm641, -inf
      %746 = vst.msk [vmem:[#allocation2 + $0x340] sm:$0xff] %vm641, -inf
      %747 = vst.msk [vmem:[#allocation2 + $0x348] sm:$0xff] %vm641, -inf
      %748 = vst.msk [vmem:[#allocation2 + $0x350] sm:$0xff] %vm641, -inf
      %749 = vst.msk [vmem:[#allocation2 + $0x358] sm:$0xff] %vm641, -inf
      %750 = vst.msk [vmem:[#allocation2 + $0x360] sm:$0xff] %vm641, -inf
      %751 = vst.msk [vmem:[#allocation2 + $0x368] sm:$0xff] %vm641, -inf
      %752 = vst.msk [vmem:[#allocation2 + $0x370] sm:$0xff] %vm641, -inf
      %753 = vst.msk [vmem:[#allocation2 + $0x378] sm:$0xff] %vm641, -inf
      %754 = vst.msk [vmem:[#allocation2 + $0x380] sm:$0xff] %vm641, -inf
      %755 = vst.msk [vmem:[#allocation2 + $0x388] sm:$0xff] %vm641, -inf
      %756 = vst.msk [vmem:[#allocation2 + $0x390] sm:$0xff] %vm641, -inf
      %757 = vst.msk [vmem:[#allocation2 + $0x398] sm:$0xff] %vm641, -inf
      %758 = vst.msk [vmem:[#allocation2 + $0x3a0] sm:$0xff] %vm641, -inf
      %759 = vst.msk [vmem:[#allocation2 + $0x3a8] sm:$0xff] %vm641, -inf
      %760 = vst.msk [vmem:[#allocation2 + $0x3b0] sm:$0xff] %vm641, -inf
      %761 = vst.msk [vmem:[#allocation2 + $0x3b8] sm:$0xff] %vm641, -inf
      %762 = vst.msk [vmem:[#allocation2 + $0x3c0] sm:$0xff] %vm641, -inf
      %763 = vst.msk [vmem:[#allocation2 + $0x3c8] sm:$0xff] %vm641, -inf
      %764 = vst.msk [vmem:[#allocation2 + $0x3d0] sm:$0xff] %vm641, -inf
      %765 = vst.msk [vmem:[#allocation2 + $0x3d8] sm:$0xff] %vm641, -inf
      %766 = vst.msk [vmem:[#allocation2 + $0x3e0] sm:$0xff] %vm641, -inf
      %767 = vst.msk [vmem:[#allocation2 + $0x3e8] sm:$0xff] %vm641, -inf
      %768 = vst.msk [vmem:[#allocation2 + $0x3f0] sm:$0xff] %vm641, -inf
      %769 = vst.msk [vmem:[#allocation2 + $0x3f8] sm:$0xff] %vm641, -inf
      %s770 = scalar_lea.vmem [#allocation2], 256
      %771 = vst.msk [vmem:[%s770 + $0x8] sm:$0xff] %vm641, %v609
      %772 = vst.msk [vmem:[%s770 + $0x10] sm:$0xff] %vm641, %v610
      %773 = vst.msk [vmem:[%s770 + $0x28] sm:$0xff] %vm641, %v611
      %774 = vst.msk [vmem:[%s770 + $0x30] sm:$0xff] %vm641, %v612
      %775 = vst.msk [vmem:[%s770 + $0x48] sm:$0xff] %vm641, %v613
      %776 = vst.msk [vmem:[%s770 + $0x50] sm:$0xff] %vm641, %v614
      %777 = vst.msk [vmem:[%s770 + $0x68] sm:$0xff] %vm641, %v615
      %778 = vst.msk [vmem:[%s770 + $0x70] sm:$0xff] %vm641, %v616
      %779 = vst.msk [vmem:[%s770 + $0x88] sm:$0xff] %vm641, %v617
      %780 = vst.msk [vmem:[%s770 + $0x90] sm:$0xff] %vm641, %v618
      %781 = vst.msk [vmem:[%s770 + $0xa8] sm:$0xff] %vm641, %v619
      %782 = vst.msk [vmem:[%s770 + $0xb0] sm:$0xff] %vm641, %v620
      %783 = vst.msk [vmem:[%s770 + $0xc8] sm:$0xff] %vm641, %v621
      %784 = vst.msk [vmem:[%s770 + $0xd0] sm:$0xff] %vm641, %v622
      %785 = vst.msk [vmem:[%s770 + $0xe8] sm:$0xff] %vm641, %v623
      %786 = vst.msk [vmem:[%s770 + $0xf0] sm:$0xff] %vm641, %v624
      %787 = vst.msk [vmem:[%s770 + $0x108] sm:$0xff] %vm641, %v625
      %788 = vst.msk [vmem:[%s770 + $0x110] sm:$0xff] %vm641, %v626
      %789 = vst.msk [vmem:[%s770 + $0x128] sm:$0xff] %vm641, %v627
      %790 = vst.msk [vmem:[%s770 + $0x130] sm:$0xff] %vm641, %v628
      %791 = vst.msk [vmem:[%s770 + $0x148] sm:$0xff] %vm641, %v629
      %792 = vst.msk [vmem:[%s770 + $0x150] sm:$0xff] %vm641, %v630
      %793 = vst.msk [vmem:[%s770 + $0x168] sm:$0xff] %vm641, %v631
      %794 = vst.msk [vmem:[%s770 + $0x170] sm:$0xff] %vm641, %v632
      %795 = vst.msk [vmem:[%s770 + $0x188] sm:$0xff] %vm641, %v633
      %796 = vst.msk [vmem:[%s770 + $0x190] sm:$0xff] %vm641, %v634
      %797 = vst.msk [vmem:[%s770 + $0x1a8] sm:$0xff] %vm641, %v635
      %798 = vst.msk [vmem:[%s770 + $0x1b0] sm:$0xff] %vm641, %v636
      %799 = vst.msk [vmem:[%s770 + $0x1c8] sm:$0xff] %vm641, %v637
      %800 = vst.msk [vmem:[%s770 + $0x1d0] sm:$0xff] %vm641, %v638
      %801 = vst.msk [vmem:[%s770 + $0x1e8] sm:$0xff] %vm641, %v639
      %802 = vst.msk [vmem:[%s770 + $0x1f0] sm:$0xff] %vm641, %v640
      %v803 = vld [vmem:[#allocation2 + $0x30] sm:$0xff]
      %v804 = vld [vmem:[#allocation2 + $0x38] sm:$0xff]
      %v805 = vld [vmem:[#allocation2 + $0x40] sm:$0xff]
      %v806 = vld [vmem:[#allocation2 + $0x48] sm:$0xff]
      %v807 = vld [vmem:[#allocation2 + $0x50] sm:$0xff]
      %v808 = vld [vmem:[#allocation2 + $0x58] sm:$0xff]
      %v809 = vld [vmem:[#allocation2 + $0x60] sm:$0xff]
      %v810 = vld [vmem:[#allocation2 + $0x68] sm:$0xff]
      %v811 = vld [vmem:[#allocation2 + $0x70] sm:$0xff]
      %v812 = vld [vmem:[#allocation2 + $0x78] sm:$0xff]
      %v813 = vld [vmem:[#allocation2 + $0x80] sm:$0xff]
      %v814 = vld [vmem:[#allocation2 + $0x88] sm:$0xff]
      %v815 = vld [vmem:[#allocation2 + $0x90] sm:$0xff]
      %v816 = vld [vmem:[#allocation2 + $0x98] sm:$0xff]
      %v817 = vld [vmem:[#allocation2 + $0xa0] sm:$0xff]
      %v818 = vld [vmem:[#allocation2 + $0xa8] sm:$0xff]
      %v819 = vld [vmem:[#allocation2 + $0xb0] sm:$0xff]
      %v820 = vld [vmem:[#allocation2 + $0xb8] sm:$0xff]
      %v821 = vld [vmem:[#allocation2 + $0xc0] sm:$0xff]
      %v822 = vld [vmem:[#allocation2 + $0xc8] sm:$0xff]
      %v823 = vld [vmem:[#allocation2 + $0xd0] sm:$0xff]
      %v824 = vld [vmem:[#allocation2 + $0xd8] sm:$0xff]
      %v825 = vld [vmem:[#allocation2 + $0xe0] sm:$0xff]
      %v826 = vld [vmem:[#allocation2 + $0xe8] sm:$0xff]
      %v827 = vld [vmem:[#allocation2 + $0xf0] sm:$0xff]
      %v828 = vld [vmem:[#allocation2 + $0xf8] sm:$0xff]
      %v829 = vld [vmem:[#allocation2 + $0x100] sm:$0xff]
      %v830 = vld [vmem:[#allocation2 + $0x108] sm:$0xff]
      %v831 = vld [vmem:[#allocation2 + $0x110] sm:$0xff]
      %v832 = vld [vmem:[#allocation2 + $0x118] sm:$0xff]
      %v833 = vld [vmem:[#allocation2 + $0x120] sm:$0xff]
      %v834 = vld [vmem:[#allocation2 + $0x128] sm:$0xff]
      %v835 = vld [vmem:[#allocation2 + $0x130] sm:$0xff]
      %v836 = vld [vmem:[#allocation2 + $0x138] sm:$0xff]
      %v837 = vld [vmem:[#allocation2 + $0x140] sm:$0xff]
      %v838 = vld [vmem:[#allocation2 + $0x148] sm:$0xff]
      %v839 = vld [vmem:[#allocation2 + $0x150] sm:$0xff]
      %v840 = vld [vmem:[#allocation2 + $0x158] sm:$0xff]
      %v841 = vld [vmem:[#allocation2 + $0x160] sm:$0xff]
      %v842 = vld [vmem:[#allocation2 + $0x168] sm:$0xff]
      %v843 = vld [vmem:[#allocation2 + $0x170] sm:$0xff]
      %v844 = vld [vmem:[#allocation2 + $0x178] sm:$0xff]
      %v845 = vld [vmem:[#allocation2 + $0x180] sm:$0xff]
      %v846 = vld [vmem:[#allocation2 + $0x188] sm:$0xff]
      %v847 = vld [vmem:[#allocation2 + $0x190] sm:$0xff]
      %v848 = vld [vmem:[#allocation2 + $0x198] sm:$0xff]
      %v849 = vld [vmem:[#allocation2 + $0x1a0] sm:$0xff]
      %v850 = vld [vmem:[#allocation2 + $0x1a8] sm:$0xff]
      %v851 = vld [vmem:[#allocation2 + $0x1b0] sm:$0xff]
      %v852 = vld [vmem:[#allocation2 + $0x1b8] sm:$0xff]
      %v853 = vld [vmem:[#allocation2 + $0x1c0] sm:$0xff]
      %v854 = vld [vmem:[#allocation2 + $0x1c8] sm:$0xff]
      %v855 = vld [vmem:[#allocation2 + $0x1d0] sm:$0xff]
      %v856 = vld [vmem:[#allocation2 + $0x1d8] sm:$0xff]
      %v857 = vld [vmem:[#allocation2 + $0x1e0] sm:$0xff]
      %v858 = vld [vmem:[#allocation2 + $0x1e8] sm:$0xff]
      %v859 = vld [vmem:[#allocation2 + $0x1f0] sm:$0xff]
      %v860 = vld [vmem:[#allocation2 + $0x1f8] sm:$0xff]
      %v861 = vld [vmem:[#allocation2 + $0x200] sm:$0xff]
      %v862 = vld [vmem:[#allocation2 + $0x208] sm:$0xff]
      %v863 = vld [vmem:[#allocation2 + $0x210] sm:$0xff]
      %v864 = vld [vmem:[#allocation2 + $0x218] sm:$0xff]
      %v865 = vld [vmem:[#allocation2 + $0x220] sm:$0xff]
      %v866 = vld [vmem:[#allocation2 + $0x228] sm:$0xff]
      %v867 = vld [vmem:[#allocation2 + $0x230] sm:$0xff]
      %v868 = vld [vmem:[#allocation2 + $0x238] sm:$0xff]
      %v869 = vld [vmem:[#allocation2 + $0x240] sm:$0xff]
      %v870 = vld [vmem:[#allocation2 + $0x248] sm:$0xff]
      %v871 = vld [vmem:[#allocation2 + $0x250] sm:$0xff]
      %v872 = vld [vmem:[#allocation2 + $0x258] sm:$0xff]
      %v873 = vld [vmem:[#allocation2 + $0x260] sm:$0xff]
      %v874 = vld [vmem:[#allocation2 + $0x268] sm:$0xff]
      %v875 = vld [vmem:[#allocation2 + $0x270] sm:$0xff]
      %v876 = vld [vmem:[#allocation2 + $0x278] sm:$0xff]
      %v877 = vld [vmem:[#allocation2 + $0x280] sm:$0xff]
      %v878 = vld [vmem:[#allocation2 + $0x288] sm:$0xff]
      %v879 = vld [vmem:[#allocation2 + $0x290] sm:$0xff]
      %v880 = vld [vmem:[#allocation2 + $0x298] sm:$0xff]
      %v881 = vld [vmem:[#allocation2 + $0x2a0] sm:$0xff]
      %v882 = vld [vmem:[#allocation2 + $0x2a8] sm:$0xff]
      %v883 = vld [vmem:[#allocation2 + $0x2b0] sm:$0xff]
      %v884 = vld [vmem:[#allocation2 + $0x2b8] sm:$0xff]
      %v885 = vld [vmem:[#allocation2 + $0x2c0] sm:$0xff]
      %v886 = vld [vmem:[#allocation2 + $0x2c8] sm:$0xff]
      %v887 = vld [vmem:[#allocation2 + $0x2d0] sm:$0xff]
      %v888 = vld [vmem:[#allocation2 + $0x2d8] sm:$0xff]
      %v889 = vld [vmem:[#allocation2 + $0x2e0] sm:$0xff]
      %v890 = vld [vmem:[#allocation2 + $0x2e8] sm:$0xff]
      %v891 = vld [vmem:[#allocation2 + $0x2f0] sm:$0xff]
      %v892 = vld [vmem:[#allocation2 + $0x2f8] sm:$0xff]
      %v893 = vld [vmem:[#allocation2 + $0x300] sm:$0xff]
      %v894 = vld [vmem:[#allocation2 + $0x308] sm:$0xff]
      %v895 = vld [vmem:[#allocation2 + $0x310] sm:$0xff]
      %v896 = vld [vmem:[#allocation2 + $0x318] sm:$0xff]
      %v897 = vld [vmem:[#allocation2 + $0x320] sm:$0xff]
      %v898 = vld [vmem:[#allocation2 + $0x328] sm:$0xff]
      %v899 = vld [vmem:[#allocation2 + $0x330] sm:$0xff]
      %v900 = vld [vmem:[#allocation2 + $0x338] sm:$0xff]
      %v901 = vld [vmem:[#allocation2 + $0x340] sm:$0xff]
      %v902 = vld [vmem:[#allocation2 + $0x348] sm:$0xff]
      %v903 = vld [vmem:[#allocation2 + $0x350] sm:$0xff]
      %v904 = vld [vmem:[#allocation2 + $0x358] sm:$0xff]
      %v905 = vld [vmem:[#allocation2 + $0x360] sm:$0xff]
      %v906 = vld [vmem:[#allocation2 + $0x368] sm:$0xff]
      %v907 = vld [vmem:[#allocation2 + $0x370] sm:$0xff]
      %v908 = vld [vmem:[#allocation2 + $0x378] sm:$0xff]
      %v909 = vld [vmem:[#allocation2 + $0x380] sm:$0xff]
      %v910 = vld [vmem:[#allocation2 + $0x388] sm:$0xff]
      %v911 = vld [vmem:[#allocation2 + $0x390] sm:$0xff]
      %v912 = vld [vmem:[#allocation2 + $0x398] sm:$0xff]
      %v913 = vld [vmem:[#allocation2 + $0x3a0] sm:$0xff]
      %v914 = vld [vmem:[#allocation2 + $0x3a8] sm:$0xff]
      %v915 = vld [vmem:[#allocation2 + $0x3b0] sm:$0xff]
      %v916 = vld [vmem:[#allocation2 + $0x3b8] sm:$0xff]
      %v917 = vld [vmem:[#allocation2 + $0x3c0] sm:$0xff]
      %v918 = vld [vmem:[#allocation2 + $0x3c8] sm:$0xff]
      %v919 = vrot.slane %v804, 1
      %v920 = vrot.slane %v805, 1
      %v921 = vrot.slane %v806, 1
      %v922 = vrot.slane %v807, 1
      %v923 = vrot.slane %v808, 1
      %v924 = vrot.slane %v809, 1
      %v925 = vrot.slane %v810, 1
      %v926 = vrot.slane %v811, 1
      %v927 = vrot.slane %v812, 1
      %v928 = vrot.slane %v813, 1
      %v929 = vrot.slane %v814, 1
      %v930 = vrot.slane %v815, 1
      %v931 = vrot.slane %v816, 1
      %v932 = vrot.slane %v817, 1
      %v933 = vrot.slane %v818, 1
      %v934 = vrot.slane %v819, 1
      %v935 = vrot.slane %v820, 1
      %v936 = vrot.slane %v821, 1
      %v937 = vrot.slane %v822, 1
      %v938 = vrot.slane %v823, 1
      %v939 = vrot.slane %v824, 1
      %v940 = vrot.slane %v825, 1
      %v941 = vrot.slane %v826, 1
      %v942 = vrot.slane %v827, 1
      %v943 = vrot.slane %v828, 1
      %v944 = vrot.slane %v829, 1
      %v945 = vrot.slane %v830, 1
      %v946 = vrot.slane %v831, 1
      %v947 = vrot.slane %v832, 1
      %v948 = vrot.slane %v833, 1
      %v949 = vrot.slane %v834, 1
      %v950 = vrot.slane %v835, 1
      %v951 = vrot.slane %v836, 1
      %v952 = vrot.slane %v837, 1
      %v953 = vrot.slane %v838, 1
      %v954 = vrot.slane %v839, 1
      %v955 = vrot.slane %v840, 1
      %v956 = vrot.slane %v841, 1
      %v957 = vrot.slane %v842, 1
      %v958 = vrot.slane %v843, 1
      %v959 = vrot.slane %v844, 1
      %v960 = vrot.slane %v845, 1
      %v961 = vrot.slane %v846, 1
      %v962 = vrot.slane %v847, 1
      %v963 = vrot.slane %v848, 1
      %v964 = vrot.slane %v849, 1
      %v965 = vrot.slane %v850, 1
      %v966 = vrot.slane %v851, 1
      %v967 = vrot.slane %v852, 1
      %v968 = vrot.slane %v853, 1
      %v969 = vrot.slane %v854, 1
      %v970 = vrot.slane %v855, 1
      %v971 = vrot.slane %v856, 1
      %v972 = vrot.slane %v857, 1
      %v973 = vrot.slane %v858, 1
      %v974 = vrot.slane %v859, 1
      %v975 = vrot.slane %v860, 1
      %v976 = vrot.slane %v861, 1
      %v977 = vrot.slane %v862, 1
      %v978 = vrot.slane %v863, 1
      %v979 = vrot.slane %v864, 1
      %v980 = vrot.slane %v865, 1
      %v981 = vrot.slane %v866, 1
      %v982 = vrot.slane %v867, 1
      %v983 = vrot.slane %v868, 1
      %v984 = vrot.slane %v869, 1
      %v985 = vrot.slane %v870, 1
      %v986 = vrot.slane %v871, 1
      %v987 = vrot.slane %v872, 1
      %v988 = vrot.slane %v873, 1
      %v989 = vrot.slane %v874, 1
      %v990 = vrot.slane %v875, 1
      %v991 = vrot.slane %v876, 1
      %v992 = vrot.slane %v877, 1
      %v993 = vrot.slane %v878, 1
      %v994 = vrot.slane %v879, 1
      %v995 = vrot.slane %v880, 1
      %v996 = vrot.slane %v881, 1
      %v997 = vrot.slane %v882, 1
      %v998 = vrot.slane %v883, 1
      %v999 = vrot.slane %v884, 1
      %v1000 = vrot.slane %v885, 1
      %v1001 = vrot.slane %v886, 1
      %v1002 = vrot.slane %v887, 1
      %v1003 = vrot.slane %v888, 1
      %v1004 = vrot.slane %v889, 1
      %v1005 = vrot.slane %v890, 1
      %v1006 = vrot.slane %v891, 1
      %v1007 = vrot.slane %v892, 1
      %v1008 = vrot.slane %v893, 1
      %v1009 = vrot.slane %v894, 1
      %v1010 = vrot.slane %v895, 1
      %v1011 = vrot.slane %v896, 1
      %v1012 = vrot.slane %v897, 1
      %v1013 = vrot.slane %v898, 1
      %v1014 = vrot.slane %v899, 1
      %v1015 = vrot.slane %v900, 1
      %v1016 = vrot.slane %v901, 1
      %v1017 = vrot.slane %v902, 1
      %v1018 = vrot.slane %v903, 1
      %v1019 = vrot.slane %v904, 1
      %v1020 = vrot.slane %v905, 1
      %v1021 = vrot.slane %v906, 1
      %v1022 = vrot.slane %v907, 1
      %v1023 = vrot.slane %v908, 1
      %v1024 = vrot.slane %v909, 1
      %v1025 = vrot.slane %v910, 1
      %v1026 = vrot.slane %v911, 1
      %v1027 = vrot.slane %v912, 1
      %v1028 = vrot.slane %v913, 1
      %v1029 = vrot.slane %v914, 1
      %v1030 = vrot.slane %v915, 1
      %v1031 = vrot.slane %v916, 1
      %v1032 = vrot.slane %v917, 1
      %v1033 = vrot.slane %v918, 1
      %v1034 = vlaneseq
      %v1035 = vshrl.u32 %v1034, 7
      %vm1036 = vcmp.lt.s32.totalorder %v1035, 7
      %v1037 = vsel %vm1036, %v1032, %v1033
      %v1038 = vsel %vm1036, %v1031, %v1032
      %v1039 = vsel %vm1036, %v1030, %v1031
      %v1040 = vsel %vm1036, %v1029, %v1030
      %v1041 = vsel %vm1036, %v1028, %v1029
      %v1042 = vsel %vm1036, %v1027, %v1028
      %v1043 = vsel %vm1036, %v1026, %v1027
      %v1044 = vsel %vm1036, %v1025, %v1026
      %v1045 = vsel %vm1036, %v1024, %v1025
      %v1046 = vsel %vm1036, %v1023, %v1024
      %v1047 = vsel %vm1036, %v1022, %v1023
      %v1048 = vsel %vm1036, %v1021, %v1022
      %v1049 = vsel %vm1036, %v1020, %v1021
      %v1050 = vsel %vm1036, %v1019, %v1020
      %v1051 = vsel %vm1036, %v1018, %v1019
      %v1052 = vsel %vm1036, %v1017, %v1018
      %v1053 = vsel %vm1036, %v1016, %v1017
      %v1054 = vsel %vm1036, %v1015, %v1016
      %v1055 = vsel %vm1036, %v1014, %v1015
      %v1056 = vsel %vm1036, %v1013, %v1014
      %v1057 = vsel %vm1036, %v1012, %v1013
      %v1058 = vsel %vm1036, %v1011, %v1012
      %v1059 = vsel %vm1036, %v1010, %v1011
      %v1060 = vsel %vm1036, %v1009, %v1010
      %v1061 = vsel %vm1036, %v1008, %v1009
      %v1062 = vsel %vm1036, %v1007, %v1008
      %v1063 = vsel %vm1036, %v1006, %v1007
      %v1064 = vsel %vm1036, %v1005, %v1006
      %v1065 = vsel %vm1036, %v1004, %v1005
      %v1066 = vsel %vm1036, %v1003, %v1004
      %v1067 = vsel %vm1036, %v1002, %v1003
      %v1068 = vsel %vm1036, %v1001, %v1002
      %v1069 = vsel %vm1036, %v1000, %v1001
      %v1070 = vsel %vm1036, %v999, %v1000
      %v1071 = vsel %vm1036, %v998, %v999
      %v1072 = vsel %vm1036, %v997, %v998
      %v1073 = vsel %vm1036, %v996, %v997
      %v1074 = vsel %vm1036, %v995, %v996
      %v1075 = vsel %vm1036, %v994, %v995
      %v1076 = vsel %vm1036, %v993, %v994
      %v1077 = vsel %vm1036, %v992, %v993
      %v1078 = vsel %vm1036, %v991, %v992
      %v1079 = vsel %vm1036, %v990, %v991
      %v1080 = vsel %vm1036, %v989, %v990
      %v1081 = vsel %vm1036, %v988, %v989
      %v1082 = vsel %vm1036, %v987, %v988
      %v1083 = vsel %vm1036, %v986, %v987
      %v1084 = vsel %vm1036, %v985, %v986
      %v1085 = vsel %vm1036, %v984, %v985
      %v1086 = vsel %vm1036, %v983, %v984
      %v1087 = vsel %vm1036, %v982, %v983
      %v1088 = vsel %vm1036, %v981, %v982
      %v1089 = vsel %vm1036, %v980, %v981
      %v1090 = vsel %vm1036, %v979, %v980
      %v1091 = vsel %vm1036, %v978, %v979
      %v1092 = vsel %vm1036, %v977, %v978
      %v1093 = vsel %vm1036, %v976, %v977
      %v1094 = vsel %vm1036, %v975, %v976
      %v1095 = vsel %vm1036, %v974, %v975
      %v1096 = vsel %vm1036, %v973, %v974
      %v1097 = vsel %vm1036, %v972, %v973
      %v1098 = vsel %vm1036, %v971, %v972
      %v1099 = vsel %vm1036, %v970, %v971
      %v1100 = vsel %vm1036, %v969, %v970
      %v1101 = vsel %vm1036, %v968, %v969
      %v1102 = vsel %vm1036, %v967, %v968
      %v1103 = vsel %vm1036, %v966, %v967
      %v1104 = vsel %vm1036, %v965, %v966
      %v1105 = vsel %vm1036, %v964, %v965
      %v1106 = vsel %vm1036, %v963, %v964
      %v1107 = vsel %vm1036, %v962, %v963
      %v1108 = vsel %vm1036, %v961, %v962
      %v1109 = vsel %vm1036, %v960, %v961
      %v1110 = vsel %vm1036, %v959, %v960
      %v1111 = vsel %vm1036, %v958, %v959
      %v1112 = vsel %vm1036, %v957, %v958
      %v1113 = vsel %vm1036, %v956, %v957
      %v1114 = vsel %vm1036, %v955, %v956
      %v1115 = vsel %vm1036, %v954, %v955
      %v1116 = vsel %vm1036, %v953, %v954
      %v1117 = vsel %vm1036, %v952, %v953
      %v1118 = vsel %vm1036, %v951, %v952
      %v1119 = vsel %vm1036, %v950, %v951
      %v1120 = vsel %vm1036, %v949, %v950
      %v1121 = vsel %vm1036, %v948, %v949
      %v1122 = vsel %vm1036, %v947, %v948
      %v1123 = vsel %vm1036, %v946, %v947
      %v1124 = vsel %vm1036, %v945, %v946
      %v1125 = vsel %vm1036, %v944, %v945
      %v1126 = vsel %vm1036, %v943, %v944
      %v1127 = vsel %vm1036, %v942, %v943
      %v1128 = vsel %vm1036, %v941, %v942
      %v1129 = vsel %vm1036, %v940, %v941
      %v1130 = vsel %vm1036, %v939, %v940
      %v1131 = vsel %vm1036, %v938, %v939
      %v1132 = vsel %vm1036, %v937, %v938
      %v1133 = vsel %vm1036, %v936, %v937
      %v1134 = vsel %vm1036, %v935, %v936
      %v1135 = vsel %vm1036, %v934, %v935
      %v1136 = vsel %vm1036, %v933, %v934
      %v1137 = vsel %vm1036, %v932, %v933
      %v1138 = vsel %vm1036, %v931, %v932
      %v1139 = vsel %vm1036, %v930, %v931
      %v1140 = vsel %vm1036, %v929, %v930
      %v1141 = vsel %vm1036, %v928, %v929
      %v1142 = vsel %vm1036, %v927, %v928
      %v1143 = vsel %vm1036, %v926, %v927
      %v1144 = vsel %vm1036, %v925, %v926
      %v1145 = vsel %vm1036, %v924, %v925
      %v1146 = vsel %vm1036, %v923, %v924
      %v1147 = vsel %vm1036, %v922, %v923
      %v1148 = vsel %vm1036, %v921, %v922
      %v1149 = vsel %vm1036, %v920, %v921
      %v1150 = vsel %vm1036, %v919, %v920
      %v1151 = vmax.f32 %v804, %v1150
      %v1152 = vmax.f32 %v805, %v1149
      %v1153 = vmax.f32 %v806, %v1148
      %v1154 = vmax.f32 %v807, %v1147
      %v1155 = vmax.f32 %v808, %v1146
      %v1156 = vmax.f32 %v809, %v1145
      %v1157 = vmax.f32 %v810, %v1144
      %v1158 = vmax.f32 %v811, %v1143
      %v1159 = vmax.f32 %v812, %v1142
      %v1160 = vmax.f32 %v813, %v1141
      %v1161 = vmax.f32 %v814, %v1140
      %v1162 = vmax.f32 %v815, %v1139
      %v1163 = vmax.f32 %v816, %v1138
      %v1164 = vmax.f32 %v817, %v1137
      %v1165 = vmax.f32 %v818, %v1136
      %v1166 = vmax.f32 %v819, %v1135
      %v1167 = vmax.f32 %v820, %v1134
      %v1168 = vmax.f32 %v821, %v1133
      %v1169 = vmax.f32 %v822, %v1132
      %v1170 = vmax.f32 %v823, %v1131
      %v1171 = vmax.f32 %v824, %v1130
      %v1172 = vmax.f32 %v825, %v1129
      %v1173 = vmax.f32 %v826, %v1128
      %v1174 = vmax.f32 %v827, %v1127
      %v1175 = vmax.f32 %v828, %v1126
      %v1176 = vmax.f32 %v829, %v1125
      %v1177 = vmax.f32 %v830, %v1124
      %v1178 = vmax.f32 %v831, %v1123
      %v1179 = vmax.f32 %v832, %v1122
      %v1180 = vmax.f32 %v833, %v1121
      %v1181 = vmax.f32 %v834, %v1120
      %v1182 = vmax.f32 %v835, %v1119
      %v1183 = vmax.f32 %v836, %v1118
      %v1184 = vmax.f32 %v837, %v1117
      %v1185 = vmax.f32 %v838, %v1116
      %v1186 = vmax.f32 %v839, %v1115
      %v1187 = vmax.f32 %v840, %v1114
      %v1188 = vmax.f32 %v841, %v1113
      %v1189 = vmax.f32 %v842, %v1112
      %v1190 = vmax.f32 %v843, %v1111
      %v1191 = vmax.f32 %v844, %v1110
      %v1192 = vmax.f32 %v845, %v1109
      %v1193 = vmax.f32 %v846, %v1108
      %v1194 = vmax.f32 %v847, %v1107
      %v1195 = vmax.f32 %v848, %v1106
      %v1196 = vmax.f32 %v849, %v1105
      %v1197 = vmax.f32 %v850, %v1104
      %v1198 = vmax.f32 %v851, %v1103
      %v1199 = vmax.f32 %v852, %v1102
      %v1200 = vmax.f32 %v853, %v1101
      %v1201 = vmax.f32 %v854, %v1100
      %v1202 = vmax.f32 %v855, %v1099
      %v1203 = vmax.f32 %v856, %v1098
      %v1204 = vmax.f32 %v857, %v1097
      %v1205 = vmax.f32 %v858, %v1096
      %v1206 = vmax.f32 %v859, %v1095
      %v1207 = vmax.f32 %v860, %v1094
      %v1208 = vmax.f32 %v861, %v1093
      %v1209 = vmax.f32 %v862, %v1092
      %v1210 = vmax.f32 %v863, %v1091
      %v1211 = vmax.f32 %v864, %v1090
      %v1212 = vmax.f32 %v865, %v1089
      %v1213 = vmax.f32 %v866, %v1088
      %v1214 = vmax.f32 %v867, %v1087
      %v1215 = vmax.f32 %v868, %v1086
      %v1216 = vmax.f32 %v869, %v1085
      %v1217 = vmax.f32 %v870, %v1084
      %v1218 = vmax.f32 %v871, %v1083
      %v1219 = vmax.f32 %v872, %v1082
      %v1220 = vmax.f32 %v873, %v1081
      %v1221 = vmax.f32 %v874, %v1080
      %v1222 = vmax.f32 %v875, %v1079
      %v1223 = vmax.f32 %v876, %v1078
      %v1224 = vmax.f32 %v877, %v1077
      %v1225 = vmax.f32 %v878, %v1076
      %v1226 = vmax.f32 %v879, %v1075
      %v1227 = vmax.f32 %v880, %v1074
      %v1228 = vmax.f32 %v881, %v1073
      %v1229 = vmax.f32 %v882, %v1072
      %v1230 = vmax.f32 %v883, %v1071
      %v1231 = vmax.f32 %v884, %v1070
      %v1232 = vmax.f32 %v885, %v1069
      %v1233 = vmax.f32 %v886, %v1068
      %v1234 = vmax.f32 %v887, %v1067
      %v1235 = vmax.f32 %v888, %v1066
      %v1236 = vmax.f32 %v889, %v1065
      %v1237 = vmax.f32 %v890, %v1064
      %v1238 = vmax.f32 %v891, %v1063
      %v1239 = vmax.f32 %v892, %v1062
      %v1240 = vmax.f32 %v893, %v1061
      %v1241 = vmax.f32 %v894, %v1060
      %v1242 = vmax.f32 %v895, %v1059
      %v1243 = vmax.f32 %v896, %v1058
      %v1244 = vmax.f32 %v897, %v1057
      %v1245 = vmax.f32 %v898, %v1056
      %v1246 = vmax.f32 %v899, %v1055
      %v1247 = vmax.f32 %v900, %v1054
      %v1248 = vmax.f32 %v901, %v1053
      %v1249 = vmax.f32 %v902, %v1052
      %v1250 = vmax.f32 %v903, %v1051
      %v1251 = vmax.f32 %v904, %v1050
      %v1252 = vmax.f32 %v905, %v1049
      %v1253 = vmax.f32 %v906, %v1048
      %v1254 = vmax.f32 %v907, %v1047
      %v1255 = vmax.f32 %v908, %v1046
      %v1256 = vmax.f32 %v909, %v1045
      %v1257 = vmax.f32 %v910, %v1044
      %v1258 = vmax.f32 %v911, %v1043
      %v1259 = vmax.f32 %v912, %v1042
      %v1260 = vmax.f32 %v913, %v1041
      %v1261 = vmax.f32 %v914, %v1040
      %v1262 = vmax.f32 %v915, %v1039
      %v1263 = vmax.f32 %v916, %v1038
      %v1264 = vmax.f32 %v917, %v1037
      %v1265 = vrot.slane %v803, 7
      %v1266 = vrot.slane %v804, 7
      %v1267 = vrot.slane %v805, 7
      %v1268 = vrot.slane %v806, 7
      %v1269 = vrot.slane %v807, 7
      %v1270 = vrot.slane %v808, 7
      %v1271 = vrot.slane %v809, 7
      %v1272 = vrot.slane %v810, 7
      %v1273 = vrot.slane %v811, 7
      %v1274 = vrot.slane %v812, 7
      %v1275 = vrot.slane %v813, 7
      %v1276 = vrot.slane %v814, 7
      %v1277 = vrot.slane %v815, 7
      %v1278 = vrot.slane %v816, 7
      %v1279 = vrot.slane %v817, 7
      %v1280 = vrot.slane %v818, 7
      %v1281 = vrot.slane %v819, 7
      %v1282 = vrot.slane %v820, 7
      %v1283 = vrot.slane %v821, 7
      %v1284 = vrot.slane %v822, 7
      %v1285 = vrot.slane %v823, 7
      %v1286 = vrot.slane %v824, 7
      %v1287 = vrot.slane %v825, 7
      %v1288 = vrot.slane %v826, 7
      %v1289 = vrot.slane %v827, 7
      %v1290 = vrot.slane %v828, 7
      %v1291 = vrot.slane %v829, 7
      %v1292 = vrot.slane %v830, 7
      %v1293 = vrot.slane %v831, 7
      %v1294 = vrot.slane %v832, 7
      %v1295 = vrot.slane %v833, 7
      %v1296 = vrot.slane %v834, 7
      %v1297 = vrot.slane %v835, 7
      %v1298 = vrot.slane %v836, 7
      %v1299 = vrot.slane %v837, 7
      %v1300 = vrot.slane %v838, 7
      %v1301 = vrot.slane %v839, 7
      %v1302 = vrot.slane %v840, 7
      %v1303 = vrot.slane %v841, 7
      %v1304 = vrot.slane %v842, 7
      %v1305 = vrot.slane %v843, 7
      %v1306 = vrot.slane %v844, 7
      %v1307 = vrot.slane %v845, 7
      %v1308 = vrot.slane %v846, 7
      %v1309 = vrot.slane %v847, 7
      %v1310 = vrot.slane %v848, 7
      %v1311 = vrot.slane %v849, 7
      %v1312 = vrot.slane %v850, 7
      %v1313 = vrot.slane %v851, 7
      %v1314 = vrot.slane %v852, 7
      %v1315 = vrot.slane %v853, 7
      %v1316 = vrot.slane %v854, 7
      %v1317 = vrot.slane %v855, 7
      %v1318 = vrot.slane %v856, 7
      %v1319 = vrot.slane %v857, 7
      %v1320 = vrot.slane %v858, 7
      %v1321 = vrot.slane %v859, 7
      %v1322 = vrot.slane %v860, 7
      %v1323 = vrot.slane %v861, 7
      %v1324 = vrot.slane %v862, 7
      %v1325 = vrot.slane %v863, 7
      %v1326 = vrot.slane %v864, 7
      %v1327 = vrot.slane %v865, 7
      %v1328 = vrot.slane %v866, 7
      %v1329 = vrot.slane %v867, 7
      %v1330 = vrot.slane %v868, 7
      %v1331 = vrot.slane %v869, 7
      %v1332 = vrot.slane %v870, 7
      %v1333 = vrot.slane %v871, 7
      %v1334 = vrot.slane %v872, 7
      %v1335 = vrot.slane %v873, 7
      %v1336 = vrot.slane %v874, 7
      %v1337 = vrot.slane %v875, 7
      %v1338 = vrot.slane %v876, 7
      %v1339 = vrot.slane %v877, 7
      %v1340 = vrot.slane %v878, 7
      %v1341 = vrot.slane %v879, 7
      %v1342 = vrot.slane %v880, 7
      %v1343 = vrot.slane %v881, 7
      %v1344 = vrot.slane %v882, 7
      %v1345 = vrot.slane %v883, 7
      %v1346 = vrot.slane %v884, 7
      %v1347 = vrot.slane %v885, 7
      %v1348 = vrot.slane %v886, 7
      %v1349 = vrot.slane %v887, 7
      %v1350 = vrot.slane %v888, 7
      %v1351 = vrot.slane %v889, 7
      %v1352 = vrot.slane %v890, 7
      %v1353 = vrot.slane %v891, 7
      %v1354 = vrot.slane %v892, 7
      %v1355 = vrot.slane %v893, 7
      %v1356 = vrot.slane %v894, 7
      %v1357 = vrot.slane %v895, 7
      %v1358 = vrot.slane %v896, 7
      %v1359 = vrot.slane %v897, 7
      %v1360 = vrot.slane %v898, 7
      %v1361 = vrot.slane %v899, 7
      %v1362 = vrot.slane %v900, 7
      %v1363 = vrot.slane %v901, 7
      %v1364 = vrot.slane %v902, 7
      %v1365 = vrot.slane %v903, 7
      %v1366 = vrot.slane %v904, 7
      %v1367 = vrot.slane %v905, 7
      %v1368 = vrot.slane %v906, 7
      %v1369 = vrot.slane %v907, 7
      %v1370 = vrot.slane %v908, 7
      %v1371 = vrot.slane %v909, 7
      %v1372 = vrot.slane %v910, 7
      %v1373 = vrot.slane %v911, 7
      %v1374 = vrot.slane %v912, 7
      %v1375 = vrot.slane %v913, 7
      %v1376 = vrot.slane %v914, 7
      %v1377 = vrot.slane %v915, 7
      %v1378 = vrot.slane %v916, 7
      %v1379 = vrot.slane %v917, 7
      %vm1380 = vcmp.lt.s32.totalorder %v1035, 1
      %v1381 = vsel %vm1380, %v1378, %v1379
      %v1382 = vsel %vm1380, %v1377, %v1378
      %v1383 = vsel %vm1380, %v1376, %v1377
      %v1384 = vsel %vm1380, %v1375, %v1376
      %v1385 = vsel %vm1380, %v1374, %v1375
      %v1386 = vsel %vm1380, %v1373, %v1374
      %v1387 = vsel %vm1380, %v1372, %v1373
      %v1388 = vsel %vm1380, %v1371, %v1372
      %v1389 = vsel %vm1380, %v1370, %v1371
      %v1390 = vsel %vm1380, %v1369, %v1370
      %v1391 = vsel %vm1380, %v1368, %v1369
      %v1392 = vsel %vm1380, %v1367, %v1368
      %v1393 = vsel %vm1380, %v1366, %v1367
      %v1394 = vsel %vm1380, %v1365, %v1366
      %v1395 = vsel %vm1380, %v1364, %v1365
      %v1396 = vsel %vm1380, %v1363, %v1364
      %v1397 = vsel %vm1380, %v1362, %v1363
      %v1398 = vsel %vm1380, %v1361, %v1362
      %v1399 = vsel %vm1380, %v1360, %v1361
      %v1400 = vsel %vm1380, %v1359, %v1360
      %v1401 = vsel %vm1380, %v1358, %v1359
      %v1402 = vsel %vm1380, %v1357, %v1358
      %v1403 = vsel %vm1380, %v1356, %v1357
      %v1404 = vsel %vm1380, %v1355, %v1356
      %v1405 = vsel %vm1380, %v1354, %v1355
      %v1406 = vsel %vm1380, %v1353, %v1354
      %v1407 = vsel %vm1380, %v1352, %v1353
      %v1408 = vsel %vm1380, %v1351, %v1352
      %v1409 = vsel %vm1380, %v1350, %v1351
      %v1410 = vsel %vm1380, %v1349, %v1350
      %v1411 = vsel %vm1380, %v1348, %v1349
      %v1412 = vsel %vm1380, %v1347, %v1348
      %v1413 = vsel %vm1380, %v1346, %v1347
      %v1414 = vsel %vm1380, %v1345, %v1346
      %v1415 = vsel %vm1380, %v1344, %v1345
      %v1416 = vsel %vm1380, %v1343, %v1344
      %v1417 = vsel %vm1380, %v1342, %v1343
      %v1418 = vsel %vm1380, %v1341, %v1342
      %v1419 = vsel %vm1380, %v1340, %v1341
      %v1420 = vsel %vm1380, %v1339, %v1340
      %v1421 = vsel %vm1380, %v1338, %v1339
      %v1422 = vsel %vm1380, %v1337, %v1338
      %v1423 = vsel %vm1380, %v1336, %v1337
      %v1424 = vsel %vm1380, %v1335, %v1336
      %v1425 = vsel %vm1380, %v1334, %v1335
      %v1426 = vsel %vm1380, %v1333, %v1334
      %v1427 = vsel %vm1380, %v1332, %v1333
      %v1428 = vsel %vm1380, %v1331, %v1332
      %v1429 = vsel %vm1380, %v1330, %v1331
      %v1430 = vsel %vm1380, %v1329, %v1330
      %v1431 = vsel %vm1380, %v1328, %v1329
      %v1432 = vsel %vm1380, %v1327, %v1328
      %v1433 = vsel %vm1380, %v1326, %v1327
      %v1434 = vsel %vm1380, %v1325, %v1326
      %v1435 = vsel %vm1380, %v1324, %v1325
      %v1436 = vsel %vm1380, %v1323, %v1324
      %v1437 = vsel %vm1380, %v1322, %v1323
      %v1438 = vsel %vm1380, %v1321, %v1322
      %v1439 = vsel %vm1380, %v1320, %v1321
      %v1440 = vsel %vm1380, %v1319, %v1320
      %v1441 = vsel %vm1380, %v1318, %v1319
      %v1442 = vsel %vm1380, %v1317, %v1318
      %v1443 = vsel %vm1380, %v1316, %v1317
      %v1444 = vsel %vm1380, %v1315, %v1316
      %v1445 = vsel %vm1380, %v1314, %v1315
      %v1446 = vsel %vm1380, %v1313, %v1314
      %v1447 = vsel %vm1380, %v1312, %v1313
      %v1448 = vsel %vm1380, %v1311, %v1312
      %v1449 = vsel %vm1380, %v1310, %v1311
      %v1450 = vsel %vm1380, %v1309, %v1310
      %v1451 = vsel %vm1380, %v1308, %v1309
      %v1452 = vsel %vm1380, %v1307, %v1308
      %v1453 = vsel %vm1380, %v1306, %v1307
      %v1454 = vsel %vm1380, %v1305, %v1306
      %v1455 = vsel %vm1380, %v1304, %v1305
      %v1456 = vsel %vm1380, %v1303, %v1304
      %v1457 = vsel %vm1380, %v1302, %v1303
      %v1458 = vsel %vm1380, %v1301, %v1302
      %v1459 = vsel %vm1380, %v1300, %v1301
      %v1460 = vsel %vm1380, %v1299, %v1300
      %v1461 = vsel %vm1380, %v1298, %v1299
      %v1462 = vsel %vm1380, %v1297, %v1298
      %v1463 = vsel %vm1380, %v1296, %v1297
      %v1464 = vsel %vm1380, %v1295, %v1296
      %v1465 = vsel %vm1380, %v1294, %v1295
      %v1466 = vsel %vm1380, %v1293, %v1294
      %v1467 = vsel %vm1380, %v1292, %v1293
      %v1468 = vsel %vm1380, %v1291, %v1292
      %v1469 = vsel %vm1380, %v1290, %v1291
      %v1470 = vsel %vm1380, %v1289, %v1290
      %v1471 = vsel %vm1380, %v1288, %v1289
      %v1472 = vsel %vm1380, %v1287, %v1288
      %v1473 = vsel %vm1380, %v1286, %v1287
      %v1474 = vsel %vm1380, %v1285, %v1286
      %v1475 = vsel %vm1380, %v1284, %v1285
      %v1476 = vsel %vm1380, %v1283, %v1284
      %v1477 = vsel %vm1380, %v1282, %v1283
      %v1478 = vsel %vm1380, %v1281, %v1282
      %v1479 = vsel %vm1380, %v1280, %v1281
      %v1480 = vsel %vm1380, %v1279, %v1280
      %v1481 = vsel %vm1380, %v1278, %v1279
      %v1482 = vsel %vm1380, %v1277, %v1278
      %v1483 = vsel %vm1380, %v1276, %v1277
      %v1484 = vsel %vm1380, %v1275, %v1276
      %v1485 = vsel %vm1380, %v1274, %v1275
      %v1486 = vsel %vm1380, %v1273, %v1274
      %v1487 = vsel %vm1380, %v1272, %v1273
      %v1488 = vsel %vm1380, %v1271, %v1272
      %v1489 = vsel %vm1380, %v1270, %v1271
      %v1490 = vsel %vm1380, %v1269, %v1270
      %v1491 = vsel %vm1380, %v1268, %v1269
      %v1492 = vsel %vm1380, %v1267, %v1268
      %v1493 = vsel %vm1380, %v1266, %v1267
      %v1494 = vsel %vm1380, %v1265, %v1266
      %v1495 = vmax.f32 %v1151, %v1494
      %v1496 = vmax.f32 %v1152, %v1493
      %v1497 = vmax.f32 %v1153, %v1492
      %v1498 = vmax.f32 %v1154, %v1491
      %v1499 = vmax.f32 %v1155, %v1490
      %v1500 = vmax.f32 %v1156, %v1489
      %v1501 = vmax.f32 %v1157, %v1488
      %v1502 = vmax.f32 %v1158, %v1487
      %v1503 = vmax.f32 %v1159, %v1486
      %v1504 = vmax.f32 %v1160, %v1485
      %v1505 = vmax.f32 %v1161, %v1484
      %v1506 = vmax.f32 %v1162, %v1483
      %v1507 = vmax.f32 %v1163, %v1482
      %v1508 = vmax.f32 %v1164, %v1481
      %v1509 = vmax.f32 %v1165, %v1480
      %v1510 = vmax.f32 %v1166, %v1479
      %v1511 = vmax.f32 %v1167, %v1478
      %v1512 = vmax.f32 %v1168, %v1477
      %v1513 = vmax.f32 %v1169, %v1476
      %v1514 = vmax.f32 %v1170, %v1475
      %v1515 = vmax.f32 %v1171, %v1474
      %v1516 = vmax.f32 %v1172, %v1473
      %v1517 = vmax.f32 %v1173, %v1472
      %v1518 = vmax.f32 %v1174, %v1471
      %v1519 = vmax.f32 %v1175, %v1470
      %v1520 = vmax.f32 %v1176, %v1469
      %v1521 = vmax.f32 %v1177, %v1468
      %v1522 = vmax.f32 %v1178, %v1467
      %v1523 = vmax.f32 %v1179, %v1466
      %v1524 = vmax.f32 %v1180, %v1465
      %v1525 = vmax.f32 %v1181, %v1464
      %v1526 = vmax.f32 %v1182, %v1463
      %v1527 = vmax.f32 %v1183, %v1462
      %v1528 = vmax.f32 %v1184, %v1461
      %v1529 = vmax.f32 %v1185, %v1460
      %v1530 = vmax.f32 %v1186, %v1459
      %v1531 = vmax.f32 %v1187, %v1458
      %v1532 = vmax.f32 %v1188, %v1457
      %v1533 = vmax.f32 %v1189, %v1456
      %v1534 = vmax.f32 %v1190, %v1455
      %v1535 = vmax.f32 %v1191, %v1454
      %v1536 = vmax.f32 %v1192, %v1453
      %v1537 = vmax.f32 %v1193, %v1452
      %v1538 = vmax.f32 %v1194, %v1451
      %v1539 = vmax.f32 %v1195, %v1450
      %v1540 = vmax.f32 %v1196, %v1449
      %v1541 = vmax.f32 %v1197, %v1448
      %v1542 = vmax.f32 %v1198, %v1447
      %v1543 = vmax.f32 %v1199, %v1446
      %v1544 = vmax.f32 %v1200, %v1445
      %v1545 = vmax.f32 %v1201, %v1444
      %v1546 = vmax.f32 %v1202, %v1443
      %v1547 = vmax.f32 %v1203, %v1442
      %v1548 = vmax.f32 %v1204, %v1441
      %v1549 = vmax.f32 %v1205, %v1440
      %v1550 = vmax.f32 %v1206, %v1439
      %v1551 = vmax.f32 %v1207, %v1438
      %v1552 = vmax.f32 %v1208, %v1437
      %v1553 = vmax.f32 %v1209, %v1436
      %v1554 = vmax.f32 %v1210, %v1435
      %v1555 = vmax.f32 %v1211, %v1434
      %v1556 = vmax.f32 %v1212, %v1433
      %v1557 = vmax.f32 %v1213, %v1432
      %v1558 = vmax.f32 %v1214, %v1431
      %v1559 = vmax.f32 %v1215, %v1430
      %v1560 = vmax.f32 %v1216, %v1429
      %v1561 = vmax.f32 %v1217, %v1428
      %v1562 = vmax.f32 %v1218, %v1427
      %v1563 = vmax.f32 %v1219, %v1426
      %v1564 = vmax.f32 %v1220, %v1425
      %v1565 = vmax.f32 %v1221, %v1424
      %v1566 = vmax.f32 %v1222, %v1423
      %v1567 = vmax.f32 %v1223, %v1422
      %v1568 = vmax.f32 %v1224, %v1421
      %v1569 = vmax.f32 %v1225, %v1420
      %v1570 = vmax.f32 %v1226, %v1419
      %v1571 = vmax.f32 %v1227, %v1418
      %v1572 = vmax.f32 %v1228, %v1417
      %v1573 = vmax.f32 %v1229, %v1416
      %v1574 = vmax.f32 %v1230, %v1415
      %v1575 = vmax.f32 %v1231, %v1414
      %v1576 = vmax.f32 %v1232, %v1413
      %v1577 = vmax.f32 %v1233, %v1412
      %v1578 = vmax.f32 %v1234, %v1411
      %v1579 = vmax.f32 %v1235, %v1410
      %v1580 = vmax.f32 %v1236, %v1409
      %v1581 = vmax.f32 %v1237, %v1408
      %v1582 = vmax.f32 %v1238, %v1407
      %v1583 = vmax.f32 %v1239, %v1406
      %v1584 = vmax.f32 %v1240, %v1405
      %v1585 = vmax.f32 %v1241, %v1404
      %v1586 = vmax.f32 %v1242, %v1403
      %v1587 = vmax.f32 %v1243, %v1402
      %v1588 = vmax.f32 %v1244, %v1401
      %v1589 = vmax.f32 %v1245, %v1400
      %v1590 = vmax.f32 %v1246, %v1399
      %v1591 = vmax.f32 %v1247, %v1398
      %v1592 = vmax.f32 %v1248, %v1397
      %v1593 = vmax.f32 %v1249, %v1396
      %v1594 = vmax.f32 %v1250, %v1395
      %v1595 = vmax.f32 %v1251, %v1394
      %v1596 = vmax.f32 %v1252, %v1393
      %v1597 = vmax.f32 %v1253, %v1392
      %v1598 = vmax.f32 %v1254, %v1391
      %v1599 = vmax.f32 %v1255, %v1390
      %v1600 = vmax.f32 %v1256, %v1389
      %v1601 = vmax.f32 %v1257, %v1388
      %v1602 = vmax.f32 %v1258, %v1387
      %v1603 = vmax.f32 %v1259, %v1386
      %v1604 = vmax.f32 %v1260, %v1385
      %v1605 = vmax.f32 %v1261, %v1384
      %v1606 = vmax.f32 %v1262, %v1383
      %v1607 = vmax.f32 %v1263, %v1382
      %v1608 = vmax.f32 %v1264, %v1381
      %v1609 = vrot.slane %v804, 2
      %v1610 = vrot.slane %v805, 2
      %v1611 = vrot.slane %v806, 2
      %v1612 = vrot.slane %v807, 2
      %v1613 = vrot.slane %v808, 2
      %v1614 = vrot.slane %v809, 2
      %v1615 = vrot.slane %v810, 2
      %v1616 = vrot.slane %v811, 2
      %v1617 = vrot.slane %v812, 2
      %v1618 = vrot.slane %v813, 2
      %v1619 = vrot.slane %v814, 2
      %v1620 = vrot.slane %v815, 2
      %v1621 = vrot.slane %v816, 2
      %v1622 = vrot.slane %v817, 2
      %v1623 = vrot.slane %v818, 2
      %v1624 = vrot.slane %v819, 2
      %v1625 = vrot.slane %v820, 2
      %v1626 = vrot.slane %v821, 2
      %v1627 = vrot.slane %v822, 2
      %v1628 = vrot.slane %v823, 2
      %v1629 = vrot.slane %v824, 2
      %v1630 = vrot.slane %v825, 2
      %v1631 = vrot.slane %v826, 2
      %v1632 = vrot.slane %v827, 2
      %v1633 = vrot.slane %v828, 2
      %v1634 = vrot.slane %v829, 2
      %v1635 = vrot.slane %v830, 2
      %v1636 = vrot.slane %v831, 2
      %v1637 = vrot.slane %v832, 2
      %v1638 = vrot.slane %v833, 2
      %v1639 = vrot.slane %v834, 2
      %v1640 = vrot.slane %v835, 2
      %v1641 = vrot.slane %v836, 2
      %v1642 = vrot.slane %v837, 2
      %v1643 = vrot.slane %v838, 2
      %v1644 = vrot.slane %v839, 2
      %v1645 = vrot.slane %v840, 2
      %v1646 = vrot.slane %v841, 2
      %v1647 = vrot.slane %v842, 2
      %v1648 = vrot.slane %v843, 2
      %v1649 = vrot.slane %v844, 2
      %v1650 = vrot.slane %v845, 2
      %v1651 = vrot.slane %v846, 2
      %v1652 = vrot.slane %v847, 2
      %v1653 = vrot.slane %v848, 2
      %v1654 = vrot.slane %v849, 2
      %v1655 = vrot.slane %v850, 2
      %v1656 = vrot.slane %v851, 2
      %v1657 = vrot.slane %v852, 2
      %v1658 = vrot.slane %v853, 2
      %v1659 = vrot.slane %v854, 2
      %v1660 = vrot.slane %v855, 2
      %v1661 = vrot.slane %v856, 2
      %v1662 = vrot.slane %v857, 2
      %v1663 = vrot.slane %v858, 2
      %v1664 = vrot.slane %v859, 2
      %v1665 = vrot.slane %v860, 2
      %v1666 = vrot.slane %v861, 2
      %v1667 = vrot.slane %v862, 2
      %v1668 = vrot.slane %v863, 2
      %v1669 = vrot.slane %v864, 2
      %v1670 = vrot.slane %v865, 2
      %v1671 = vrot.slane %v866, 2
      %v1672 = vrot.slane %v867, 2
      %v1673 = vrot.slane %v868, 2
      %v1674 = vrot.slane %v869, 2
      %v1675 = vrot.slane %v870, 2
      %v1676 = vrot.slane %v871, 2
      %v1677 = vrot.slane %v872, 2
      %v1678 = vrot.slane %v873, 2
      %v1679 = vrot.slane %v874, 2
      %v1680 = vrot.slane %v875, 2
      %v1681 = vrot.slane %v876, 2
      %v1682 = vrot.slane %v877, 2
      %v1683 = vrot.slane %v878, 2
      %v1684 = vrot.slane %v879, 2
      %v1685 = vrot.slane %v880, 2
      %v1686 = vrot.slane %v881, 2
      %v1687 = vrot.slane %v882, 2
      %v1688 = vrot.slane %v883, 2
      %v1689 = vrot.slane %v884, 2
      %v1690 = vrot.slane %v885, 2
      %v1691 = vrot.slane %v886, 2
      %v1692 = vrot.slane %v887, 2
      %v1693 = vrot.slane %v888, 2
      %v1694 = vrot.slane %v889, 2
      %v1695 = vrot.slane %v890, 2
      %v1696 = vrot.slane %v891, 2
      %v1697 = vrot.slane %v892, 2
      %v1698 = vrot.slane %v893, 2
      %v1699 = vrot.slane %v894, 2
      %v1700 = vrot.slane %v895, 2
      %v1701 = vrot.slane %v896, 2
      %v1702 = vrot.slane %v897, 2
      %v1703 = vrot.slane %v898, 2
      %v1704 = vrot.slane %v899, 2
      %v1705 = vrot.slane %v900, 2
      %v1706 = vrot.slane %v901, 2
      %v1707 = vrot.slane %v902, 2
      %v1708 = vrot.slane %v903, 2
      %v1709 = vrot.slane %v904, 2
      %v1710 = vrot.slane %v905, 2
      %v1711 = vrot.slane %v906, 2
      %v1712 = vrot.slane %v907, 2
      %v1713 = vrot.slane %v908, 2
      %v1714 = vrot.slane %v909, 2
      %v1715 = vrot.slane %v910, 2
      %v1716 = vrot.slane %v911, 2
      %v1717 = vrot.slane %v912, 2
      %v1718 = vrot.slane %v913, 2
      %v1719 = vrot.slane %v914, 2
      %v1720 = vrot.slane %v915, 2
      %v1721 = vrot.slane %v916, 2
      %v1722 = vrot.slane %v917, 2
      %v1723 = vrot.slane %v918, 2
      %vm1724 = vcmp.lt.s32.totalorder %v1035, 6
      %v1725 = vsel %vm1724, %v1722, %v1723
      %v1726 = vsel %vm1724, %v1721, %v1722
      %v1727 = vsel %vm1724, %v1720, %v1721
      %v1728 = vsel %vm1724, %v1719, %v1720
      %v1729 = vsel %vm1724, %v1718, %v1719
      %v1730 = vsel %vm1724, %v1717, %v1718
      %v1731 = vsel %vm1724, %v1716, %v1717
      %v1732 = vsel %vm1724, %v1715, %v1716
      %v1733 = vsel %vm1724, %v1714, %v1715
      %v1734 = vsel %vm1724, %v1713, %v1714
      %v1735 = vsel %vm1724, %v1712, %v1713
      %v1736 = vsel %vm1724, %v1711, %v1712
      %v1737 = vsel %vm1724, %v1710, %v1711
      %v1738 = vsel %vm1724, %v1709, %v1710
      %v1739 = vsel %vm1724, %v1708, %v1709
      %v1740 = vsel %vm1724, %v1707, %v1708
      %v1741 = vsel %vm1724, %v1706, %v1707
      %v1742 = vsel %vm1724, %v1705, %v1706
      %v1743 = vsel %vm1724, %v1704, %v1705
      %v1744 = vsel %vm1724, %v1703, %v1704
      %v1745 = vsel %vm1724, %v1702, %v1703
      %v1746 = vsel %vm1724, %v1701, %v1702
      %v1747 = vsel %vm1724, %v1700, %v1701
      %v1748 = vsel %vm1724, %v1699, %v1700
      %v1749 = vsel %vm1724, %v1698, %v1699
      %v1750 = vsel %vm1724, %v1697, %v1698
      %v1751 = vsel %vm1724, %v1696, %v1697
      %v1752 = vsel %vm1724, %v1695, %v1696
      %v1753 = vsel %vm1724, %v1694, %v1695
      %v1754 = vsel %vm1724, %v1693, %v1694
      %v1755 = vsel %vm1724, %v1692, %v1693
      %v1756 = vsel %vm1724, %v1691, %v1692
      %v1757 = vsel %vm1724, %v1690, %v1691
      %v1758 = vsel %vm1724, %v1689, %v1690
      %v1759 = vsel %vm1724, %v1688, %v1689
      %v1760 = vsel %vm1724, %v1687, %v1688
      %v1761 = vsel %vm1724, %v1686, %v1687
      %v1762 = vsel %vm1724, %v1685, %v1686
      %v1763 = vsel %vm1724, %v1684, %v1685
      %v1764 = vsel %vm1724, %v1683, %v1684
      %v1765 = vsel %vm1724, %v1682, %v1683
      %v1766 = vsel %vm1724, %v1681, %v1682
      %v1767 = vsel %vm1724, %v1680, %v1681
      %v1768 = vsel %vm1724, %v1679, %v1680
      %v1769 = vsel %vm1724, %v1678, %v1679
      %v1770 = vsel %vm1724, %v1677, %v1678
      %v1771 = vsel %vm1724, %v1676, %v1677
      %v1772 = vsel %vm1724, %v1675, %v1676
      %v1773 = vsel %vm1724, %v1674, %v1675
      %v1774 = vsel %vm1724, %v1673, %v1674
      %v1775 = vsel %vm1724, %v1672, %v1673
      %v1776 = vsel %vm1724, %v1671, %v1672
      %v1777 = vsel %vm1724, %v1670, %v1671
      %v1778 = vsel %vm1724, %v1669, %v1670
      %v1779 = vsel %vm1724, %v1668, %v1669
      %v1780 = vsel %vm1724, %v1667, %v1668
      %v1781 = vsel %vm1724, %v1666, %v1667
      %v1782 = vsel %vm1724, %v1665, %v1666
      %v1783 = vsel %vm1724, %v1664, %v1665
      %v1784 = vsel %vm1724, %v1663, %v1664
      %v1785 = vsel %vm1724, %v1662, %v1663
      %v1786 = vsel %vm1724, %v1661, %v1662
      %v1787 = vsel %vm1724, %v1660, %v1661
      %v1788 = vsel %vm1724, %v1659, %v1660
      %v1789 = vsel %vm1724, %v1658, %v1659
      %v1790 = vsel %vm1724, %v1657, %v1658
      %v1791 = vsel %vm1724, %v1656, %v1657
      %v1792 = vsel %vm1724, %v1655, %v1656
      %v1793 = vsel %vm1724, %v1654, %v1655
      %v1794 = vsel %vm1724, %v1653, %v1654
      %v1795 = vsel %vm1724, %v1652, %v1653
      %v1796 = vsel %vm1724, %v1651, %v1652
      %v1797 = vsel %vm1724, %v1650, %v1651
      %v1798 = vsel %vm1724, %v1649, %v1650
      %v1799 = vsel %vm1724, %v1648, %v1649
      %v1800 = vsel %vm1724, %v1647, %v1648
      %v1801 = vsel %vm1724, %v1646, %v1647
      %v1802 = vsel %vm1724, %v1645, %v1646
      %v1803 = vsel %vm1724, %v1644, %v1645
      %v1804 = vsel %vm1724, %v1643, %v1644
      %v1805 = vsel %vm1724, %v1642, %v1643
      %v1806 = vsel %vm1724, %v1641, %v1642
      %v1807 = vsel %vm1724, %v1640, %v1641
      %v1808 = vsel %vm1724, %v1639, %v1640
      %v1809 = vsel %vm1724, %v1638, %v1639
      %v1810 = vsel %vm1724, %v1637, %v1638
      %v1811 = vsel %vm1724, %v1636, %v1637
      %v1812 = vsel %vm1724, %v1635, %v1636
      %v1813 = vsel %vm1724, %v1634, %v1635
      %v1814 = vsel %vm1724, %v1633, %v1634
      %v1815 = vsel %vm1724, %v1632, %v1633
      %v1816 = vsel %vm1724, %v1631, %v1632
      %v1817 = vsel %vm1724, %v1630, %v1631
      %v1818 = vsel %vm1724, %v1629, %v1630
      %v1819 = vsel %vm1724, %v1628, %v1629
      %v1820 = vsel %vm1724, %v1627, %v1628
      %v1821 = vsel %vm1724, %v1626, %v1627
      %v1822 = vsel %vm1724, %v1625, %v1626
      %v1823 = vsel %vm1724, %v1624, %v1625
      %v1824 = vsel %vm1724, %v1623, %v1624
      %v1825 = vsel %vm1724, %v1622, %v1623
      %v1826 = vsel %vm1724, %v1621, %v1622
      %v1827 = vsel %vm1724, %v1620, %v1621
      %v1828 = vsel %vm1724, %v1619, %v1620
      %v1829 = vsel %vm1724, %v1618, %v1619
      %v1830 = vsel %vm1724, %v1617, %v1618
      %v1831 = vsel %vm1724, %v1616, %v1617
      %v1832 = vsel %vm1724, %v1615, %v1616
      %v1833 = vsel %vm1724, %v1614, %v1615
      %v1834 = vsel %vm1724, %v1613, %v1614
      %v1835 = vsel %vm1724, %v1612, %v1613
      %v1836 = vsel %vm1724, %v1611, %v1612
      %v1837 = vsel %vm1724, %v1610, %v1611
      %v1838 = vsel %vm1724, %v1609, %v1610
      %v1839 = vmax.f32 %v1495, %v1838
      %v1840 = vmax.f32 %v1496, %v1837
      %v1841 = vmax.f32 %v1497, %v1836
      %v1842 = vmax.f32 %v1498, %v1835
      %v1843 = vmax.f32 %v1499, %v1834
      %v1844 = vmax.f32 %v1500, %v1833
      %v1845 = vmax.f32 %v1501, %v1832
      %v1846 = vmax.f32 %v1502, %v1831
      %v1847 = vmax.f32 %v1503, %v1830
      %v1848 = vmax.f32 %v1504, %v1829
      %v1849 = vmax.f32 %v1505, %v1828
      %v1850 = vmax.f32 %v1506, %v1827
      %v1851 = vmax.f32 %v1507, %v1826
      %v1852 = vmax.f32 %v1508, %v1825
      %v1853 = vmax.f32 %v1509, %v1824
      %v1854 = vmax.f32 %v1510, %v1823
      %v1855 = vmax.f32 %v1511, %v1822
      %v1856 = vmax.f32 %v1512, %v1821
      %v1857 = vmax.f32 %v1513, %v1820
      %v1858 = vmax.f32 %v1514, %v1819
      %v1859 = vmax.f32 %v1515, %v1818
      %v1860 = vmax.f32 %v1516, %v1817
      %v1861 = vmax.f32 %v1517, %v1816
      %v1862 = vmax.f32 %v1518, %v1815
      %v1863 = vmax.f32 %v1519, %v1814
      %v1864 = vmax.f32 %v1520, %v1813
      %v1865 = vmax.f32 %v1521, %v1812
      %v1866 = vmax.f32 %v1522, %v1811
      %v1867 = vmax.f32 %v1523, %v1810
      %v1868 = vmax.f32 %v1524, %v1809
      %v1869 = vmax.f32 %v1525, %v1808
      %v1870 = vmax.f32 %v1526, %v1807
      %v1871 = vmax.f32 %v1527, %v1806
      %v1872 = vmax.f32 %v1528, %v1805
      %v1873 = vmax.f32 %v1529, %v1804
      %v1874 = vmax.f32 %v1530, %v1803
      %v1875 = vmax.f32 %v1531, %v1802
      %v1876 = vmax.f32 %v1532, %v1801
      %v1877 = vmax.f32 %v1533, %v1800
      %v1878 = vmax.f32 %v1534, %v1799
      %v1879 = vmax.f32 %v1535, %v1798
      %v1880 = vmax.f32 %v1536, %v1797
      %v1881 = vmax.f32 %v1537, %v1796
      %v1882 = vmax.f32 %v1538, %v1795
      %v1883 = vmax.f32 %v1539, %v1794
      %v1884 = vmax.f32 %v1540, %v1793
      %v1885 = vmax.f32 %v1541, %v1792
      %v1886 = vmax.f32 %v1542, %v1791
      %v1887 = vmax.f32 %v1543, %v1790
      %v1888 = vmax.f32 %v1544, %v1789
      %v1889 = vmax.f32 %v1545, %v1788
      %v1890 = vmax.f32 %v1546, %v1787
      %v1891 = vmax.f32 %v1547, %v1786
      %v1892 = vmax.f32 %v1548, %v1785
      %v1893 = vmax.f32 %v1549, %v1784
      %v1894 = vmax.f32 %v1550, %v1783
      %v1895 = vmax.f32 %v1551, %v1782
      %v1896 = vmax.f32 %v1552, %v1781
      %v1897 = vmax.f32 %v1553, %v1780
      %v1898 = vmax.f32 %v1554, %v1779
      %v1899 = vmax.f32 %v1555, %v1778
      %v1900 = vmax.f32 %v1556, %v1777
      %v1901 = vmax.f32 %v1557, %v1776
      %v1902 = vmax.f32 %v1558, %v1775
      %v1903 = vmax.f32 %v1559, %v1774
      %v1904 = vmax.f32 %v1560, %v1773
      %v1905 = vmax.f32 %v1561, %v1772
      %v1906 = vmax.f32 %v1562, %v1771
      %v1907 = vmax.f32 %v1563, %v1770
      %v1908 = vmax.f32 %v1564, %v1769
      %v1909 = vmax.f32 %v1565, %v1768
      %v1910 = vmax.f32 %v1566, %v1767
      %v1911 = vmax.f32 %v1567, %v1766
      %v1912 = vmax.f32 %v1568, %v1765
      %v1913 = vmax.f32 %v1569, %v1764
      %v1914 = vmax.f32 %v1570, %v1763
      %v1915 = vmax.f32 %v1571, %v1762
      %v1916 = vmax.f32 %v1572, %v1761
      %v1917 = vmax.f32 %v1573, %v1760
      %v1918 = vmax.f32 %v1574, %v1759
      %v1919 = vmax.f32 %v1575, %v1758
      %v1920 = vmax.f32 %v1576, %v1757
      %v1921 = vmax.f32 %v1577, %v1756
      %v1922 = vmax.f32 %v1578, %v1755
      %v1923 = vmax.f32 %v1579, %v1754
      %v1924 = vmax.f32 %v1580, %v1753
      %v1925 = vmax.f32 %v1581, %v1752
      %v1926 = vmax.f32 %v1582, %v1751
      %v1927 = vmax.f32 %v1583, %v1750
      %v1928 = vmax.f32 %v1584, %v1749
      %v1929 = vmax.f32 %v1585, %v1748
      %v1930 = vmax.f32 %v1586, %v1747
      %v1931 = vmax.f32 %v1587, %v1746
      %v1932 = vmax.f32 %v1588, %v1745
      %v1933 = vmax.f32 %v1589, %v1744
      %v1934 = vmax.f32 %v1590, %v1743
      %v1935 = vmax.f32 %v1591, %v1742
      %v1936 = vmax.f32 %v1592, %v1741
      %v1937 = vmax.f32 %v1593, %v1740
      %v1938 = vmax.f32 %v1594, %v1739
      %v1939 = vmax.f32 %v1595, %v1738
      %v1940 = vmax.f32 %v1596, %v1737
      %v1941 = vmax.f32 %v1597, %v1736
      %v1942 = vmax.f32 %v1598, %v1735
      %v1943 = vmax.f32 %v1599, %v1734
      %v1944 = vmax.f32 %v1600, %v1733
      %v1945 = vmax.f32 %v1601, %v1732
      %v1946 = vmax.f32 %v1602, %v1731
      %v1947 = vmax.f32 %v1603, %v1730
      %v1948 = vmax.f32 %v1604, %v1729
      %v1949 = vmax.f32 %v1605, %v1728
      %v1950 = vmax.f32 %v1606, %v1727
      %v1951 = vmax.f32 %v1607, %v1726
      %v1952 = vmax.f32 %v1608, %v1725
      %v1953 = vrot.slane %v803, 6
      %v1954 = vrot.slane %v804, 6
      %v1955 = vrot.slane %v805, 6
      %v1956 = vrot.slane %v806, 6
      %v1957 = vrot.slane %v807, 6
      %v1958 = vrot.slane %v808, 6
      %v1959 = vrot.slane %v809, 6
      %v1960 = vrot.slane %v810, 6
      %v1961 = vrot.slane %v811, 6
      %v1962 = vrot.slane %v812, 6
      %v1963 = vrot.slane %v813, 6
      %v1964 = vrot.slane %v814, 6
      %v1965 = vrot.slane %v815, 6
      %v1966 = vrot.slane %v816, 6
      %v1967 = vrot.slane %v817, 6
      %v1968 = vrot.slane %v818, 6
      %v1969 = vrot.slane %v819, 6
      %v1970 = vrot.slane %v820, 6
      %v1971 = vrot.slane %v821, 6
      %v1972 = vrot.slane %v822, 6
      %v1973 = vrot.slane %v823, 6
      %v1974 = vrot.slane %v824, 6
      %v1975 = vrot.slane %v825, 6
      %v1976 = vrot.slane %v826, 6
      %v1977 = vrot.slane %v827, 6
      %v1978 = vrot.slane %v828, 6
      %v1979 = vrot.slane %v829, 6
      %v1980 = vrot.slane %v830, 6
      %v1981 = vrot.slane %v831, 6
      %v1982 = vrot.slane %v832, 6
      %v1983 = vrot.slane %v833, 6
      %v1984 = vrot.slane %v834, 6
      %v1985 = vrot.slane %v835, 6
      %v1986 = vrot.slane %v836, 6
      %v1987 = vrot.slane %v837, 6
      %v1988 = vrot.slane %v838, 6
      %v1989 = vrot.slane %v839, 6
      %v1990 = vrot.slane %v840, 6
      %v1991 = vrot.slane %v841, 6
      %v1992 = vrot.slane %v842, 6
      %v1993 = vrot.slane %v843, 6
      %v1994 = vrot.slane %v844, 6
      %v1995 = vrot.slane %v845, 6
      %v1996 = vrot.slane %v846, 6
      %v1997 = vrot.slane %v847, 6
      %v1998 = vrot.slane %v848, 6
      %v1999 = vrot.slane %v849, 6
      %v2000 = vrot.slane %v850, 6
      %v2001 = vrot.slane %v851, 6
      %v2002 = vrot.slane %v852, 6
      %v2003 = vrot.slane %v853, 6
      %v2004 = vrot.slane %v854, 6
      %v2005 = vrot.slane %v855, 6
      %v2006 = vrot.slane %v856, 6
      %v2007 = vrot.slane %v857, 6
      %v2008 = vrot.slane %v858, 6
      %v2009 = vrot.slane %v859, 6
      %v2010 = vrot.slane %v860, 6
      %v2011 = vrot.slane %v861, 6
      %v2012 = vrot.slane %v862, 6
      %v2013 = vrot.slane %v863, 6
      %v2014 = vrot.slane %v864, 6
      %v2015 = vrot.slane %v865, 6
      %v2016 = vrot.slane %v866, 6
      %v2017 = vrot.slane %v867, 6
      %v2018 = vrot.slane %v868, 6
      %v2019 = vrot.slane %v869, 6
      %v2020 = vrot.slane %v870, 6
      %v2021 = vrot.slane %v871, 6
      %v2022 = vrot.slane %v872, 6
      %v2023 = vrot.slane %v873, 6
      %v2024 = vrot.slane %v874, 6
      %v2025 = vrot.slane %v875, 6
      %v2026 = vrot.slane %v876, 6
      %v2027 = vrot.slane %v877, 6
      %v2028 = vrot.slane %v878, 6
      %v2029 = vrot.slane %v879, 6
      %v2030 = vrot.slane %v880, 6
      %v2031 = vrot.slane %v881, 6
      %v2032 = vrot.slane %v882, 6
      %v2033 = vrot.slane %v883, 6
      %v2034 = vrot.slane %v884, 6
      %v2035 = vrot.slane %v885, 6
      %v2036 = vrot.slane %v886, 6
      %v2037 = vrot.slane %v887, 6
      %v2038 = vrot.slane %v888, 6
      %v2039 = vrot.slane %v889, 6
      %v2040 = vrot.slane %v890, 6
      %v2041 = vrot.slane %v891, 6
      %v2042 = vrot.slane %v892, 6
      %v2043 = vrot.slane %v893, 6
      %v2044 = vrot.slane %v894, 6
      %v2045 = vrot.slane %v895, 6
      %v2046 = vrot.slane %v896, 6
      %v2047 = vrot.slane %v897, 6
      %v2048 = vrot.slane %v898, 6
      %v2049 = vrot.slane %v899, 6
      %v2050 = vrot.slane %v900, 6
      %v2051 = vrot.slane %v901, 6
      %v2052 = vrot.slane %v902, 6
      %v2053 = vrot.slane %v903, 6
      %v2054 = vrot.slane %v904, 6
      %v2055 = vrot.slane %v905, 6
      %v2056 = vrot.slane %v906, 6
      %v2057 = vrot.slane %v907, 6
      %v2058 = vrot.slane %v908, 6
      %v2059 = vrot.slane %v909, 6
      %v2060 = vrot.slane %v910, 6
      %v2061 = vrot.slane %v911, 6
      %v2062 = vrot.slane %v912, 6
      %v2063 = vrot.slane %v913, 6
      %v2064 = vrot.slane %v914, 6
      %v2065 = vrot.slane %v915, 6
      %v2066 = vrot.slane %v916, 6
      %v2067 = vrot.slane %v917, 6
      %vm2068 = vcmp.lt.s32.totalorder %v1035, 2
      %v2069 = vsel %vm2068, %v2066, %v2067
      %v2070 = vsel %vm2068, %v2065, %v2066
      %v2071 = vsel %vm2068, %v2064, %v2065
      %v2072 = vsel %vm2068, %v2063, %v2064
      %v2073 = vsel %vm2068, %v2062, %v2063
      %v2074 = vsel %vm2068, %v2061, %v2062
      %v2075 = vsel %vm2068, %v2060, %v2061
      %v2076 = vsel %vm2068, %v2059, %v2060
      %v2077 = vsel %vm2068, %v2058, %v2059
      %v2078 = vsel %vm2068, %v2057, %v2058
      %v2079 = vsel %vm2068, %v2056, %v2057
      %v2080 = vsel %vm2068, %v2055, %v2056
      %v2081 = vsel %vm2068, %v2054, %v2055
      %v2082 = vsel %vm2068, %v2053, %v2054
      %v2083 = vsel %vm2068, %v2052, %v2053
      %v2084 = vsel %vm2068, %v2051, %v2052
      %v2085 = vsel %vm2068, %v2050, %v2051
      %v2086 = vsel %vm2068, %v2049, %v2050
      %v2087 = vsel %vm2068, %v2048, %v2049
      %v2088 = vsel %vm2068, %v2047, %v2048
      %v2089 = vsel %vm2068, %v2046, %v2047
      %v2090 = vsel %vm2068, %v2045, %v2046
      %v2091 = vsel %vm2068, %v2044, %v2045
      %v2092 = vsel %vm2068, %v2043, %v2044
      %v2093 = vsel %vm2068, %v2042, %v2043
      %v2094 = vsel %vm2068, %v2041, %v2042
      %v2095 = vsel %vm2068, %v2040, %v2041
      %v2096 = vsel %vm2068, %v2039, %v2040
      %v2097 = vsel %vm2068, %v2038, %v2039
      %v2098 = vsel %vm2068, %v2037, %v2038
      %v2099 = vsel %vm2068, %v2036, %v2037
      %v2100 = vsel %vm2068, %v2035, %v2036
      %v2101 = vsel %vm2068, %v2034, %v2035
      %v2102 = vsel %vm2068, %v2033, %v2034
      %v2103 = vsel %vm2068, %v2032, %v2033
      %v2104 = vsel %vm2068, %v2031, %v2032
      %v2105 = vsel %vm2068, %v2030, %v2031
      %v2106 = vsel %vm2068, %v2029, %v2030
      %v2107 = vsel %vm2068, %v2028, %v2029
      %v2108 = vsel %vm2068, %v2027, %v2028
      %v2109 = vsel %vm2068, %v2026, %v2027
      %v2110 = vsel %vm2068, %v2025, %v2026
      %v2111 = vsel %vm2068, %v2024, %v2025
      %v2112 = vsel %vm2068, %v2023, %v2024
      %v2113 = vsel %vm2068, %v2022, %v2023
      %v2114 = vsel %vm2068, %v2021, %v2022
      %v2115 = vsel %vm2068, %v2020, %v2021
      %v2116 = vsel %vm2068, %v2019, %v2020
      %v2117 = vsel %vm2068, %v2018, %v2019
      %v2118 = vsel %vm2068, %v2017, %v2018
      %v2119 = vsel %vm2068, %v2016, %v2017
      %v2120 = vsel %vm2068, %v2015, %v2016
      %v2121 = vsel %vm2068, %v2014, %v2015
      %v2122 = vsel %vm2068, %v2013, %v2014
      %v2123 = vsel %vm2068, %v2012, %v2013
      %v2124 = vsel %vm2068, %v2011, %v2012
      %v2125 = vsel %vm2068, %v2010, %v2011
      %v2126 = vsel %vm2068, %v2009, %v2010
      %v2127 = vsel %vm2068, %v2008, %v2009
      %v2128 = vsel %vm2068, %v2007, %v2008
      %v2129 = vsel %vm2068, %v2006, %v2007
      %v2130 = vsel %vm2068, %v2005, %v2006
      %v2131 = vsel %vm2068, %v2004, %v2005
      %v2132 = vsel %vm2068, %v2003, %v2004
      %v2133 = vsel %vm2068, %v2002, %v2003
      %v2134 = vsel %vm2068, %v2001, %v2002
      %v2135 = vsel %vm2068, %v2000, %v2001
      %v2136 = vsel %vm2068, %v1999, %v2000
      %v2137 = vsel %vm2068, %v1998, %v1999
      %v2138 = vsel %vm2068, %v1997, %v1998
      %v2139 = vsel %vm2068, %v1996, %v1997
      %v2140 = vsel %vm2068, %v1995, %v1996
      %v2141 = vsel %vm2068, %v1994, %v1995
      %v2142 = vsel %vm2068, %v1993, %v1994
      %v2143 = vsel %vm2068, %v1992, %v1993
      %v2144 = vsel %vm2068, %v1991, %v1992
      %v2145 = vsel %vm2068, %v1990, %v1991
      %v2146 = vsel %vm2068, %v1989, %v1990
      %v2147 = vsel %vm2068, %v1988, %v1989
      %v2148 = vsel %vm2068, %v1987, %v1988
      %v2149 = vsel %vm2068, %v1986, %v1987
      %v2150 = vsel %vm2068, %v1985, %v1986
      %v2151 = vsel %vm2068, %v1984, %v1985
      %v2152 = vsel %vm2068, %v1983, %v1984
      %v2153 = vsel %vm2068, %v1982, %v1983
      %v2154 = vsel %vm2068, %v1981, %v1982
      %v2155 = vsel %vm2068, %v1980, %v1981
      %v2156 = vsel %vm2068, %v1979, %v1980
      %v2157 = vsel %vm2068, %v1978, %v1979
      %v2158 = vsel %vm2068, %v1977, %v1978
      %v2159 = vsel %vm2068, %v1976, %v1977
      %v2160 = vsel %vm2068, %v1975, %v1976
      %v2161 = vsel %vm2068, %v1974, %v1975
      %v2162 = vsel %vm2068, %v1973, %v1974
      %v2163 = vsel %vm2068, %v1972, %v1973
      %v2164 = vsel %vm2068, %v1971, %v1972
      %v2165 = vsel %vm2068, %v1970, %v1971
      %v2166 = vsel %vm2068, %v1969, %v1970
      %v2167 = vsel %vm2068, %v1968, %v1969
      %v2168 = vsel %vm2068, %v1967, %v1968
      %v2169 = vsel %vm2068, %v1966, %v1967
      %v2170 = vsel %vm2068, %v1965, %v1966
      %v2171 = vsel %vm2068, %v1964, %v1965
      %v2172 = vsel %vm2068, %v1963, %v1964
      %v2173 = vsel %vm2068, %v1962, %v1963
      %v2174 = vsel %vm2068, %v1961, %v1962
      %v2175 = vsel %vm2068, %v1960, %v1961
      %v2176 = vsel %vm2068, %v1959, %v1960
      %v2177 = vsel %vm2068, %v1958, %v1959
      %v2178 = vsel %vm2068, %v1957, %v1958
      %v2179 = vsel %vm2068, %v1956, %v1957
      %v2180 = vsel %vm2068, %v1955, %v1956
      %v2181 = vsel %vm2068, %v1954, %v1955
      %v2182 = vsel %vm2068, %v1953, %v1954
      %v2183 = vmax.f32 %v1839, %v2182
      %v2184 = vmax.f32 %v1840, %v2181
      %v2185 = vmax.f32 %v1841, %v2180
      %v2186 = vmax.f32 %v1842, %v2179
      %v2187 = vmax.f32 %v1843, %v2178
      %v2188 = vmax.f32 %v1844, %v2177
      %v2189 = vmax.f32 %v1845, %v2176
      %v2190 = vmax.f32 %v1846, %v2175
      %v2191 = vmax.f32 %v1847, %v2174
      %v2192 = vmax.f32 %v1848, %v2173
      %v2193 = vmax.f32 %v1849, %v2172
      %v2194 = vmax.f32 %v1850, %v2171
      %v2195 = vmax.f32 %v1851, %v2170
      %v2196 = vmax.f32 %v1852, %v2169
      %v2197 = vmax.f32 %v1853, %v2168
      %v2198 = vmax.f32 %v1854, %v2167
      %v2199 = vmax.f32 %v1855, %v2166
      %v2200 = vmax.f32 %v1856, %v2165
      %v2201 = vmax.f32 %v1857, %v2164
      %v2202 = vmax.f32 %v1858, %v2163
      %v2203 = vmax.f32 %v1859, %v2162
      %v2204 = vmax.f32 %v1860, %v2161
      %v2205 = vmax.f32 %v1861, %v2160
      %v2206 = vmax.f32 %v1862, %v2159
      %v2207 = vmax.f32 %v1863, %v2158
      %v2208 = vmax.f32 %v1864, %v2157
      %v2209 = vmax.f32 %v1865, %v2156
      %v2210 = vmax.f32 %v1866, %v2155
      %v2211 = vmax.f32 %v1867, %v2154
      %v2212 = vmax.f32 %v1868, %v2153
      %v2213 = vmax.f32 %v1869, %v2152
      %v2214 = vmax.f32 %v1870, %v2151
      %v2215 = vmax.f32 %v1871, %v2150
      %v2216 = vmax.f32 %v1872, %v2149
      %v2217 = vmax.f32 %v1873, %v2148
      %v2218 = vmax.f32 %v1874, %v2147
      %v2219 = vmax.f32 %v1875, %v2146
      %v2220 = vmax.f32 %v1876, %v2145
      %v2221 = vmax.f32 %v1877, %v2144
      %v2222 = vmax.f32 %v1878, %v2143
      %v2223 = vmax.f32 %v1879, %v2142
      %v2224 = vmax.f32 %v1880, %v2141
      %v2225 = vmax.f32 %v1881, %v2140
      %v2226 = vmax.f32 %v1882, %v2139
      %v2227 = vmax.f32 %v1883, %v2138
      %v2228 = vmax.f32 %v1884, %v2137
      %v2229 = vmax.f32 %v1885, %v2136
      %v2230 = vmax.f32 %v1886, %v2135
      %v2231 = vmax.f32 %v1887, %v2134
      %v2232 = vmax.f32 %v1888, %v2133
      %v2233 = vmax.f32 %v1889, %v2132
      %v2234 = vmax.f32 %v1890, %v2131
      %v2235 = vmax.f32 %v1891, %v2130
      %v2236 = vmax.f32 %v1892, %v2129
      %v2237 = vmax.f32 %v1893, %v2128
      %v2238 = vmax.f32 %v1894, %v2127
      %v2239 = vmax.f32 %v1895, %v2126
      %v2240 = vmax.f32 %v1896, %v2125
      %v2241 = vmax.f32 %v1897, %v2124
      %v2242 = vmax.f32 %v1898, %v2123
      %v2243 = vmax.f32 %v1899, %v2122
      %v2244 = vmax.f32 %v1900, %v2121
      %v2245 = vmax.f32 %v1901, %v2120
      %v2246 = vmax.f32 %v1902, %v2119
      %v2247 = vmax.f32 %v1903, %v2118
      %v2248 = vmax.f32 %v1904, %v2117
      %v2249 = vmax.f32 %v1905, %v2116
      %v2250 = vmax.f32 %v1906, %v2115
      %v2251 = vmax.f32 %v1907, %v2114
      %v2252 = vmax.f32 %v1908, %v2113
      %v2253 = vmax.f32 %v1909, %v2112
      %v2254 = vmax.f32 %v1910, %v2111
      %v2255 = vmax.f32 %v1911, %v2110
      %v2256 = vmax.f32 %v1912, %v2109
      %v2257 = vmax.f32 %v1913, %v2108
      %v2258 = vmax.f32 %v1914, %v2107
      %v2259 = vmax.f32 %v1915, %v2106
      %v2260 = vmax.f32 %v1916, %v2105
      %v2261 = vmax.f32 %v1917, %v2104
      %v2262 = vmax.f32 %v1918, %v2103
      %v2263 = vmax.f32 %v1919, %v2102
      %v2264 = vmax.f32 %v1920, %v2101
      %v2265 = vmax.f32 %v1921, %v2100
      %v2266 = vmax.f32 %v1922, %v2099
      %v2267 = vmax.f32 %v1923, %v2098
      %v2268 = vmax.f32 %v1924, %v2097
      %v2269 = vmax.f32 %v1925, %v2096
      %v2270 = vmax.f32 %v1926, %v2095
      %v2271 = vmax.f32 %v1927, %v2094
      %v2272 = vmax.f32 %v1928, %v2093
      %v2273 = vmax.f32 %v1929, %v2092
      %v2274 = vmax.f32 %v1930, %v2091
      %v2275 = vmax.f32 %v1931, %v2090
      %v2276 = vmax.f32 %v1932, %v2089
      %v2277 = vmax.f32 %v1933, %v2088
      %v2278 = vmax.f32 %v1934, %v2087
      %v2279 = vmax.f32 %v1935, %v2086
      %v2280 = vmax.f32 %v1936, %v2085
      %v2281 = vmax.f32 %v1937, %v2084
      %v2282 = vmax.f32 %v1938, %v2083
      %v2283 = vmax.f32 %v1939, %v2082
      %v2284 = vmax.f32 %v1940, %v2081
      %v2285 = vmax.f32 %v1941, %v2080
      %v2286 = vmax.f32 %v1942, %v2079
      %v2287 = vmax.f32 %v1943, %v2078
      %v2288 = vmax.f32 %v1944, %v2077
      %v2289 = vmax.f32 %v1945, %v2076
      %v2290 = vmax.f32 %v1946, %v2075
      %v2291 = vmax.f32 %v1947, %v2074
      %v2292 = vmax.f32 %v1948, %v2073
      %v2293 = vmax.f32 %v1949, %v2072
      %v2294 = vmax.f32 %v1950, %v2071
      %v2295 = vmax.f32 %v1951, %v2070
      %v2296 = vmax.f32 %v1952, %v2069
      %v2297 = vmax.f32 %v2191, %v2195
      %v2298 = vmax.f32 %v2192, %v2196
      %v2299 = vmax.f32 %v2193, %v2197
      %v2300 = vmax.f32 %v2194, %v2198
      %v2301 = vmax.f32 %v2195, %v2199
      %v2302 = vmax.f32 %v2196, %v2200
      %v2303 = vmax.f32 %v2197, %v2201
      %v2304 = vmax.f32 %v2198, %v2202
      %v2305 = vmax.f32 %v2199, %v2203
      %v2306 = vmax.f32 %v2200, %v2204
      %v2307 = vmax.f32 %v2201, %v2205
      %v2308 = vmax.f32 %v2202, %v2206
      %v2309 = vmax.f32 %v2203, %v2207
      %v2310 = vmax.f32 %v2204, %v2208
      %v2311 = vmax.f32 %v2205, %v2209
      %v2312 = vmax.f32 %v2206, %v2210
      %v2313 = vmax.f32 %v2207, %v2211
      %v2314 = vmax.f32 %v2208, %v2212
      %v2315 = vmax.f32 %v2209, %v2213
      %v2316 = vmax.f32 %v2210, %v2214
      %v2317 = vmax.f32 %v2211, %v2215
      %v2318 = vmax.f32 %v2212, %v2216
      %v2319 = vmax.f32 %v2213, %v2217
      %v2320 = vmax.f32 %v2214, %v2218
      %v2321 = vmax.f32 %v2215, %v2219
      %v2322 = vmax.f32 %v2216, %v2220
      %v2323 = vmax.f32 %v2217, %v2221
      %v2324 = vmax.f32 %v2218, %v2222
      %v2325 = vmax.f32 %v2219, %v2223
      %v2326 = vmax.f32 %v2220, %v2224
      %v2327 = vmax.f32 %v2221, %v2225
      %v2328 = vmax.f32 %v2222, %v2226
      %v2329 = vmax.f32 %v2223, %v2227
      %v2330 = vmax.f32 %v2224, %v2228
      %v2331 = vmax.f32 %v2225, %v2229
      %v2332 = vmax.f32 %v2226, %v2230
      %v2333 = vmax.f32 %v2227, %v2231
      %v2334 = vmax.f32 %v2228, %v2232
      %v2335 = vmax.f32 %v2229, %v2233
      %v2336 = vmax.f32 %v2230, %v2234
      %v2337 = vmax.f32 %v2231, %v2235
      %v2338 = vmax.f32 %v2232, %v2236
      %v2339 = vmax.f32 %v2233, %v2237
      %v2340 = vmax.f32 %v2234, %v2238
      %v2341 = vmax.f32 %v2235, %v2239
      %v2342 = vmax.f32 %v2236, %v2240
      %v2343 = vmax.f32 %v2237, %v2241
      %v2344 = vmax.f32 %v2238, %v2242
      %v2345 = vmax.f32 %v2239, %v2243
      %v2346 = vmax.f32 %v2240, %v2244
      %v2347 = vmax.f32 %v2241, %v2245
      %v2348 = vmax.f32 %v2242, %v2246
      %v2349 = vmax.f32 %v2243, %v2247
      %v2350 = vmax.f32 %v2244, %v2248
      %v2351 = vmax.f32 %v2245, %v2249
      %v2352 = vmax.f32 %v2246, %v2250
      %v2353 = vmax.f32 %v2247, %v2251
      %v2354 = vmax.f32 %v2248, %v2252
      %v2355 = vmax.f32 %v2249, %v2253
      %v2356 = vmax.f32 %v2250, %v2254
      %v2357 = vmax.f32 %v2251, %v2255
      %v2358 = vmax.f32 %v2252, %v2256
      %v2359 = vmax.f32 %v2253, %v2257
      %v2360 = vmax.f32 %v2254, %v2258
      %v2361 = vmax.f32 %v2255, %v2259
      %v2362 = vmax.f32 %v2256, %v2260
      %v2363 = vmax.f32 %v2257, %v2261
      %v2364 = vmax.f32 %v2258, %v2262
      %v2365 = vmax.f32 %v2259, %v2263
      %v2366 = vmax.f32 %v2260, %v2264
      %v2367 = vmax.f32 %v2261, %v2265
      %v2368 = vmax.f32 %v2262, %v2266
      %v2369 = vmax.f32 %v2263, %v2267
      %v2370 = vmax.f32 %v2264, %v2268
      %v2371 = vmax.f32 %v2265, %v2269
      %v2372 = vmax.f32 %v2266, %v2270
      %v2373 = vmax.f32 %v2267, %v2271
      %v2374 = vmax.f32 %v2268, %v2272
      %v2375 = vmax.f32 %v2269, %v2273
      %v2376 = vmax.f32 %v2270, %v2274
      %v2377 = vmax.f32 %v2271, %v2275
      %v2378 = vmax.f32 %v2272, %v2276
      %v2379 = vmax.f32 %v2273, %v2277
      %v2380 = vmax.f32 %v2274, %v2278
      %v2381 = vmax.f32 %v2275, %v2279
      %v2382 = vmax.f32 %v2276, %v2280
      %v2383 = vmax.f32 %v2277, %v2281
      %v2384 = vmax.f32 %v2278, %v2282
      %v2385 = vmax.f32 %v2279, %v2283
      %v2386 = vmax.f32 %v2280, %v2284
      %v2387 = vmax.f32 %v2281, %v2285
      %v2388 = vmax.f32 %v2282, %v2286
      %v2389 = vmax.f32 %v2283, %v2287
      %v2390 = vmax.f32 %v2284, %v2288
      %v2391 = vmax.f32 %v2285, %v2289
      %v2392 = vmax.f32 %v2286, %v2290
      %v2393 = vmax.f32 %v2287, %v2291
      %v2394 = vmax.f32 %v2288, %v2292
      %v2395 = vmax.f32 %v2297, %v2187
      %v2396 = vmax.f32 %v2298, %v2188
      %v2397 = vmax.f32 %v2299, %v2189
      %v2398 = vmax.f32 %v2300, %v2190
      %v2399 = vmax.f32 %v2301, %v2191
      %v2400 = vmax.f32 %v2302, %v2192
      %v2401 = vmax.f32 %v2303, %v2193
      %v2402 = vmax.f32 %v2304, %v2194
      %v2403 = vmax.f32 %v2305, %v2195
      %v2404 = vmax.f32 %v2306, %v2196
      %v2405 = vmax.f32 %v2307, %v2197
      %v2406 = vmax.f32 %v2308, %v2198
      %v2407 = vmax.f32 %v2309, %v2199
      %v2408 = vmax.f32 %v2310, %v2200
      %v2409 = vmax.f32 %v2311, %v2201
      %v2410 = vmax.f32 %v2312, %v2202
      %v2411 = vmax.f32 %v2313, %v2203
      %v2412 = vmax.f32 %v2314, %v2204
      %v2413 = vmax.f32 %v2315, %v2205
      %v2414 = vmax.f32 %v2316, %v2206
      %v2415 = vmax.f32 %v2317, %v2207
      %v2416 = vmax.f32 %v2318, %v2208
      %v2417 = vmax.f32 %v2319, %v2209
      %v2418 = vmax.f32 %v2320, %v2210
      %v2419 = vmax.f32 %v2321, %v2211
      %v2420 = vmax.f32 %v2322, %v2212
      %v2421 = vmax.f32 %v2323, %v2213
      %v2422 = vmax.f32 %v2324, %v2214
      %v2423 = vmax.f32 %v2325, %v2215
      %v2424 = vmax.f32 %v2326, %v2216
      %v2425 = vmax.f32 %v2327, %v2217
      %v2426 = vmax.f32 %v2328, %v2218
      %v2427 = vmax.f32 %v2329, %v2219
      %v2428 = vmax.f32 %v2330, %v2220
      %v2429 = vmax.f32 %v2331, %v2221
      %v2430 = vmax.f32 %v2332, %v2222
      %v2431 = vmax.f32 %v2333, %v2223
      %v2432 = vmax.f32 %v2334, %v2224
      %v2433 = vmax.f32 %v2335, %v2225
      %v2434 = vmax.f32 %v2336, %v2226
      %v2435 = vmax.f32 %v2337, %v2227
      %v2436 = vmax.f32 %v2338, %v2228
      %v2437 = vmax.f32 %v2339, %v2229
      %v2438 = vmax.f32 %v2340, %v2230
      %v2439 = vmax.f32 %v2341, %v2231
      %v2440 = vmax.f32 %v2342, %v2232
      %v2441 = vmax.f32 %v2343, %v2233
      %v2442 = vmax.f32 %v2344, %v2234
      %v2443 = vmax.f32 %v2345, %v2235
      %v2444 = vmax.f32 %v2346, %v2236
      %v2445 = vmax.f32 %v2347, %v2237
      %v2446 = vmax.f32 %v2348, %v2238
      %v2447 = vmax.f32 %v2349, %v2239
      %v2448 = vmax.f32 %v2350, %v2240
      %v2449 = vmax.f32 %v2351, %v2241
      %v2450 = vmax.f32 %v2352, %v2242
      %v2451 = vmax.f32 %v2353, %v2243
      %v2452 = vmax.f32 %v2354, %v2244
      %v2453 = vmax.f32 %v2355, %v2245
      %v2454 = vmax.f32 %v2356, %v2246
      %v2455 = vmax.f32 %v2357, %v2247
      %v2456 = vmax.f32 %v2358, %v2248
      %v2457 = vmax.f32 %v2359, %v2249
      %v2458 = vmax.f32 %v2360, %v2250
      %v2459 = vmax.f32 %v2361, %v2251
      %v2460 = vmax.f32 %v2362, %v2252
      %v2461 = vmax.f32 %v2363, %v2253
      %v2462 = vmax.f32 %v2364, %v2254
      %v2463 = vmax.f32 %v2365, %v2255
      %v2464 = vmax.f32 %v2366, %v2256
      %v2465 = vmax.f32 %v2367, %v2257
      %v2466 = vmax.f32 %v2368, %v2258
      %v2467 = vmax.f32 %v2369, %v2259
      %v2468 = vmax.f32 %v2370, %v2260
      %v2469 = vmax.f32 %v2371, %v2261
      %v2470 = vmax.f32 %v2372, %v2262
      %v2471 = vmax.f32 %v2373, %v2263
      %v2472 = vmax.f32 %v2374, %v2264
      %v2473 = vmax.f32 %v2375, %v2265
      %v2474 = vmax.f32 %v2376, %v2266
      %v2475 = vmax.f32 %v2377, %v2267
      %v2476 = vmax.f32 %v2378, %v2268
      %v2477 = vmax.f32 %v2379, %v2269
      %v2478 = vmax.f32 %v2380, %v2270
      %v2479 = vmax.f32 %v2381, %v2271
      %v2480 = vmax.f32 %v2382, %v2272
      %v2481 = vmax.f32 %v2383, %v2273
      %v2482 = vmax.f32 %v2384, %v2274
      %v2483 = vmax.f32 %v2385, %v2275
      %v2484 = vmax.f32 %v2386, %v2276
      %v2485 = vmax.f32 %v2387, %v2277
      %v2486 = vmax.f32 %v2388, %v2278
      %v2487 = vmax.f32 %v2389, %v2279
      %v2488 = vmax.f32 %v2390, %v2280
      %v2489 = vmax.f32 %v2391, %v2281
      %v2490 = vmax.f32 %v2392, %v2282
      %v2491 = vmax.f32 %v2393, %v2283
      %v2492 = vmax.f32 %v2394, %v2284
      %v2493 = vmax.f32 %v2395, %v2199
      %v2494 = vmax.f32 %v2396, %v2200
      %v2495 = vmax.f32 %v2397, %v2201
      %v2496 = vmax.f32 %v2398, %v2202
      %v2497 = vmax.f32 %v2399, %v2203
      %v2498 = vmax.f32 %v2400, %v2204
      %v2499 = vmax.f32 %v2401, %v2205
      %v2500 = vmax.f32 %v2402, %v2206
      %v2501 = vmax.f32 %v2403, %v2207
      %v2502 = vmax.f32 %v2404, %v2208
      %v2503 = vmax.f32 %v2405, %v2209
      %v2504 = vmax.f32 %v2406, %v2210
      %v2505 = vmax.f32 %v2407, %v2211
      %v2506 = vmax.f32 %v2408, %v2212
      %v2507 = vmax.f32 %v2409, %v2213
      %v2508 = vmax.f32 %v2410, %v2214
      %v2509 = vmax.f32 %v2411, %v2215
      %v2510 = vmax.f32 %v2412, %v2216
      %v2511 = vmax.f32 %v2413, %v2217
      %v2512 = vmax.f32 %v2414, %v2218
      %v2513 = vmax.f32 %v2415, %v2219
      %v2514 = vmax.f32 %v2416, %v2220
      %v2515 = vmax.f32 %v2417, %v2221
      %v2516 = vmax.f32 %v2418, %v2222
      %v2517 = vmax.f32 %v2419, %v2223
      %v2518 = vmax.f32 %v2420, %v2224
      %v2519 = vmax.f32 %v2421, %v2225
      %v2520 = vmax.f32 %v2422, %v2226
      %v2521 = vmax.f32 %v2423, %v2227
      %v2522 = vmax.f32 %v2424, %v2228
      %v2523 = vmax.f32 %v2425, %v2229
      %v2524 = vmax.f32 %v2426, %v2230
      %v2525 = vmax.f32 %v2427, %v2231
      %v2526 = vmax.f32 %v2428, %v2232
      %v2527 = vmax.f32 %v2429, %v2233
      %v2528 = vmax.f32 %v2430, %v2234
      %v2529 = vmax.f32 %v2431, %v2235
      %v2530 = vmax.f32 %v2432, %v2236
      %v2531 = vmax.f32 %v2433, %v2237
      %v2532 = vmax.f32 %v2434, %v2238
      %v2533 = vmax.f32 %v2435, %v2239
      %v2534 = vmax.f32 %v2436, %v2240
      %v2535 = vmax.f32 %v2437, %v2241
      %v2536 = vmax.f32 %v2438, %v2242
      %v2537 = vmax.f32 %v2439, %v2243
      %v2538 = vmax.f32 %v2440, %v2244
      %v2539 = vmax.f32 %v2441, %v2245
      %v2540 = vmax.f32 %v2442, %v2246
      %v2541 = vmax.f32 %v2443, %v2247
      %v2542 = vmax.f32 %v2444, %v2248
      %v2543 = vmax.f32 %v2445, %v2249
      %v2544 = vmax.f32 %v2446, %v2250
      %v2545 = vmax.f32 %v2447, %v2251
      %v2546 = vmax.f32 %v2448, %v2252
      %v2547 = vmax.f32 %v2449, %v2253
      %v2548 = vmax.f32 %v2450, %v2254
      %v2549 = vmax.f32 %v2451, %v2255
      %v2550 = vmax.f32 %v2452, %v2256
      %v2551 = vmax.f32 %v2453, %v2257
      %v2552 = vmax.f32 %v2454, %v2258
      %v2553 = vmax.f32 %v2455, %v2259
      %v2554 = vmax.f32 %v2456, %v2260
      %v2555 = vmax.f32 %v2457, %v2261
      %v2556 = vmax.f32 %v2458, %v2262
      %v2557 = vmax.f32 %v2459, %v2263
      %v2558 = vmax.f32 %v2460, %v2264
      %v2559 = vmax.f32 %v2461, %v2265
      %v2560 = vmax.f32 %v2462, %v2266
      %v2561 = vmax.f32 %v2463, %v2267
      %v2562 = vmax.f32 %v2464, %v2268
      %v2563 = vmax.f32 %v2465, %v2269
      %v2564 = vmax.f32 %v2466, %v2270
      %v2565 = vmax.f32 %v2467, %v2271
      %v2566 = vmax.f32 %v2468, %v2272
      %v2567 = vmax.f32 %v2469, %v2273
      %v2568 = vmax.f32 %v2470, %v2274
      %v2569 = vmax.f32 %v2471, %v2275
      %v2570 = vmax.f32 %v2472, %v2276
      %v2571 = vmax.f32 %v2473, %v2277
      %v2572 = vmax.f32 %v2474, %v2278
      %v2573 = vmax.f32 %v2475, %v2279
      %v2574 = vmax.f32 %v2476, %v2280
      %v2575 = vmax.f32 %v2477, %v2281
      %v2576 = vmax.f32 %v2478, %v2282
      %v2577 = vmax.f32 %v2479, %v2283
      %v2578 = vmax.f32 %v2480, %v2284
      %v2579 = vmax.f32 %v2481, %v2285
      %v2580 = vmax.f32 %v2482, %v2286
      %v2581 = vmax.f32 %v2483, %v2287
      %v2582 = vmax.f32 %v2484, %v2288
      %v2583 = vmax.f32 %v2485, %v2289
      %v2584 = vmax.f32 %v2486, %v2290
      %v2585 = vmax.f32 %v2487, %v2291
      %v2586 = vmax.f32 %v2488, %v2292
      %v2587 = vmax.f32 %v2489, %v2293
      %v2588 = vmax.f32 %v2490, %v2294
      %v2589 = vmax.f32 %v2491, %v2295
      %v2590 = vmax.f32 %v2492, %v2296
      %v2591 = vmax.f32 %v2493, %v2183
      %v2592 = vmax.f32 %v2494, %v2184
      %v2593 = vmax.f32 %v2495, %v2185
      %v2594 = vmax.f32 %v2496, %v2186
      %v2595 = vmax.f32 %v2497, %v2187
      %v2596 = vmax.f32 %v2498, %v2188
      %v2597 = vmax.f32 %v2499, %v2189
      %v2598 = vmax.f32 %v2500, %v2190
      %v2599 = vmax.f32 %v2501, %v2191
      %v2600 = vmax.f32 %v2502, %v2192
      %v2601 = vmax.f32 %v2503, %v2193
      %v2602 = vmax.f32 %v2504, %v2194
      %v2603 = vmax.f32 %v2505, %v2195
      %v2604 = vmax.f32 %v2506, %v2196
      %v2605 = vmax.f32 %v2507, %v2197
      %v2606 = vmax.f32 %v2508, %v2198
      %v2607 = vmax.f32 %v2509, %v2199
      %v2608 = vmax.f32 %v2510, %v2200
      %v2609 = vmax.f32 %v2511, %v2201
      %v2610 = vmax.f32 %v2512, %v2202
      %v2611 = vmax.f32 %v2513, %v2203
      %v2612 = vmax.f32 %v2514, %v2204
      %v2613 = vmax.f32 %v2515, %v2205
      %v2614 = vmax.f32 %v2516, %v2206
      %v2615 = vmax.f32 %v2517, %v2207
      %v2616 = vmax.f32 %v2518, %v2208
      %v2617 = vmax.f32 %v2519, %v2209
      %v2618 = vmax.f32 %v2520, %v2210
      %v2619 = vmax.f32 %v2521, %v2211
      %v2620 = vmax.f32 %v2522, %v2212
      %v2621 = vmax.f32 %v2523, %v2213
      %v2622 = vmax.f32 %v2524, %v2214
      %v2623 = vmax.f32 %v2525, %v2215
      %v2624 = vmax.f32 %v2526, %v2216
      %v2625 = vmax.f32 %v2527, %v2217
      %v2626 = vmax.f32 %v2528, %v2218
      %v2627 = vmax.f32 %v2529, %v2219
      %v2628 = vmax.f32 %v2530, %v2220
      %v2629 = vmax.f32 %v2531, %v2221
      %v2630 = vmax.f32 %v2532, %v2222
      %v2631 = vmax.f32 %v2533, %v2223
      %v2632 = vmax.f32 %v2534, %v2224
      %v2633 = vmax.f32 %v2535, %v2225
      %v2634 = vmax.f32 %v2536, %v2226
      %v2635 = vmax.f32 %v2537, %v2227
      %v2636 = vmax.f32 %v2538, %v2228
      %v2637 = vmax.f32 %v2539, %v2229
      %v2638 = vmax.f32 %v2540, %v2230
      %v2639 = vmax.f32 %v2541, %v2231
      %v2640 = vmax.f32 %v2542, %v2232
      %v2641 = vmax.f32 %v2543, %v2233
      %v2642 = vmax.f32 %v2544, %v2234
      %v2643 = vmax.f32 %v2545, %v2235
      %v2644 = vmax.f32 %v2546, %v2236
      %v2645 = vmax.f32 %v2547, %v2237
      %v2646 = vmax.f32 %v2548, %v2238
      %v2647 = vmax.f32 %v2549, %v2239
      %v2648 = vmax.f32 %v2550, %v2240
      %v2649 = vmax.f32 %v2551, %v2241
      %v2650 = vmax.f32 %v2552, %v2242
      %v2651 = vmax.f32 %v2553, %v2243
      %v2652 = vmax.f32 %v2554, %v2244
      %v2653 = vmax.f32 %v2555, %v2245
      %v2654 = vmax.f32 %v2556, %v2246
      %v2655 = vmax.f32 %v2557, %v2247
      %v2656 = vmax.f32 %v2558, %v2248
      %v2657 = vmax.f32 %v2559, %v2249
      %v2658 = vmax.f32 %v2560, %v2250
      %v2659 = vmax.f32 %v2561, %v2251
      %v2660 = vmax.f32 %v2562, %v2252
      %v2661 = vmax.f32 %v2563, %v2253
      %v2662 = vmax.f32 %v2564, %v2254
      %v2663 = vmax.f32 %v2565, %v2255
      %v2664 = vmax.f32 %v2566, %v2256
      %v2665 = vmax.f32 %v2567, %v2257
      %v2666 = vmax.f32 %v2568, %v2258
      %v2667 = vmax.f32 %v2569, %v2259
      %v2668 = vmax.f32 %v2570, %v2260
      %v2669 = vmax.f32 %v2571, %v2261
      %v2670 = vmax.f32 %v2572, %v2262
      %v2671 = vmax.f32 %v2573, %v2263
      %v2672 = vmax.f32 %v2574, %v2264
      %v2673 = vmax.f32 %v2575, %v2265
      %v2674 = vmax.f32 %v2576, %v2266
      %v2675 = vmax.f32 %v2577, %v2267
      %v2676 = vmax.f32 %v2578, %v2268
      %v2677 = vmax.f32 %v2579, %v2269
      %v2678 = vmax.f32 %v2580, %v2270
      %v2679 = vmax.f32 %v2581, %v2271
      %v2680 = vmax.f32 %v2582, %v2272
      %v2681 = vmax.f32 %v2583, %v2273
      %v2682 = vmax.f32 %v2584, %v2274
      %v2683 = vmax.f32 %v2585, %v2275
      %v2684 = vmax.f32 %v2586, %v2276
      %v2685 = vmax.f32 %v2587, %v2277
      %v2686 = vmax.f32 %v2588, %v2278
      %v2687 = vmax.f32 %v2589, %v2279
      %v2688 = vmax.f32 %v2590, %v2280
      %v2689 = vrot.slane %v2592, 1
      %v2690 = vrot.slane %v2593, 1
      %v2691 = vrot.slane %v2594, 1
      %v2692 = vrot.slane %v2595, 1
      %v2693 = vrot.slane %v2596, 1
      %v2694 = vrot.slane %v2597, 1
      %v2695 = vrot.slane %v2598, 1
      %v2696 = vrot.slane %v2599, 1
      %v2697 = vrot.slane %v2600, 1
      %v2698 = vrot.slane %v2601, 1
      %v2699 = vrot.slane %v2602, 1
      %v2700 = vrot.slane %v2603, 1
      %v2701 = vrot.slane %v2604, 1
      %v2702 = vrot.slane %v2605, 1
      %v2703 = vrot.slane %v2606, 1
      %v2704 = vrot.slane %v2607, 1
      %v2705 = vrot.slane %v2608, 1
      %v2706 = vrot.slane %v2609, 1
      %v2707 = vrot.slane %v2610, 1
      %v2708 = vrot.slane %v2611, 1
      %v2709 = vrot.slane %v2612, 1
      %v2710 = vrot.slane %v2613, 1
      %v2711 = vrot.slane %v2614, 1
      %v2712 = vrot.slane %v2615, 1
      %v2713 = vrot.slane %v2616, 1
      %v2714 = vrot.slane %v2617, 1
      %v2715 = vrot.slane %v2618, 1
      %v2716 = vrot.slane %v2619, 1
      %v2717 = vrot.slane %v2620, 1
      %v2718 = vrot.slane %v2621, 1
      %v2719 = vrot.slane %v2622, 1
      %v2720 = vrot.slane %v2623, 1
      %v2721 = vrot.slane %v2624, 1
      %v2722 = vrot.slane %v2625, 1
      %v2723 = vrot.slane %v2626, 1
      %v2724 = vrot.slane %v2627, 1
      %v2725 = vrot.slane %v2628, 1
      %v2726 = vrot.slane %v2629, 1
      %v2727 = vrot.slane %v2630, 1
      %v2728 = vrot.slane %v2631, 1
      %v2729 = vrot.slane %v2632, 1
      %v2730 = vrot.slane %v2633, 1
      %v2731 = vrot.slane %v2634, 1
      %v2732 = vrot.slane %v2635, 1
      %v2733 = vrot.slane %v2636, 1
      %v2734 = vrot.slane %v2637, 1
      %v2735 = vrot.slane %v2638, 1
      %v2736 = vrot.slane %v2639, 1
      %v2737 = vrot.slane %v2640, 1
      %v2738 = vrot.slane %v2641, 1
      %v2739 = vrot.slane %v2642, 1
      %v2740 = vrot.slane %v2643, 1
      %v2741 = vrot.slane %v2644, 1
      %v2742 = vrot.slane %v2645, 1
      %v2743 = vrot.slane %v2646, 1
      %v2744 = vrot.slane %v2647, 1
      %v2745 = vrot.slane %v2648, 1
      %v2746 = vrot.slane %v2649, 1
      %v2747 = vrot.slane %v2650, 1
      %v2748 = vrot.slane %v2651, 1
      %v2749 = vrot.slane %v2652, 1
      %v2750 = vrot.slane %v2653, 1
      %v2751 = vrot.slane %v2654, 1
      %v2752 = vrot.slane %v2655, 1
      %v2753 = vrot.slane %v2656, 1
      %v2754 = vrot.slane %v2657, 1
      %v2755 = vrot.slane %v2658, 1
      %v2756 = vrot.slane %v2659, 1
      %v2757 = vrot.slane %v2660, 1
      %v2758 = vrot.slane %v2661, 1
      %v2759 = vrot.slane %v2662, 1
      %v2760 = vrot.slane %v2663, 1
      %v2761 = vrot.slane %v2664, 1
      %v2762 = vrot.slane %v2665, 1
      %v2763 = vrot.slane %v2666, 1
      %v2764 = vrot.slane %v2667, 1
      %v2765 = vrot.slane %v2668, 1
      %v2766 = vrot.slane %v2669, 1
      %v2767 = vrot.slane %v2670, 1
      %v2768 = vrot.slane %v2671, 1
      %v2769 = vrot.slane %v2672, 1
      %v2770 = vrot.slane %v2673, 1
      %v2771 = vrot.slane %v2674, 1
      %v2772 = vrot.slane %v2675, 1
      %v2773 = vrot.slane %v2676, 1
      %v2774 = vrot.slane %v2677, 1
      %v2775 = vrot.slane %v2678, 1
      %v2776 = vrot.slane %v2679, 1
      %v2777 = vrot.slane %v2680, 1
      %v2778 = vrot.slane %v2681, 1
      %v2779 = vrot.slane %v2682, 1
      %v2780 = vrot.slane %v2683, 1
      %v2781 = vrot.slane %v2684, 1
      %v2782 = vrot.slane %v2685, 1
      %v2783 = vrot.slane %v2686, 1
      %v2784 = vrot.slane %v2687, 1
      %v2785 = vrot.slane %v2688, 1
      %v2786 = vsel %vm1036, %v2784, %v2785
      %v2787 = vsel %vm1036, %v2783, %v2784
      %v2788 = vsel %vm1036, %v2782, %v2783
      %v2789 = vsel %vm1036, %v2781, %v2782
      %v2790 = vsel %vm1036, %v2780, %v2781
      %v2791 = vsel %vm1036, %v2779, %v2780
      %v2792 = vsel %vm1036, %v2778, %v2779
      %v2793 = vsel %vm1036, %v2777, %v2778
      %v2794 = vsel %vm1036, %v2776, %v2777
      %v2795 = vsel %vm1036, %v2775, %v2776
      %v2796 = vsel %vm1036, %v2774, %v2775
      %v2797 = vsel %vm1036, %v2773, %v2774
      %v2798 = vsel %vm1036, %v2772, %v2773
      %v2799 = vsel %vm1036, %v2771, %v2772
      %v2800 = vsel %vm1036, %v2770, %v2771
      %v2801 = vsel %vm1036, %v2769, %v2770
      %v2802 = vsel %vm1036, %v2768, %v2769
      %v2803 = vsel %vm1036, %v2767, %v2768
      %v2804 = vsel %vm1036, %v2766, %v2767
      %v2805 = vsel %vm1036, %v2765, %v2766
      %v2806 = vsel %vm1036, %v2764, %v2765
      %v2807 = vsel %vm1036, %v2763, %v2764
      %v2808 = vsel %vm1036, %v2762, %v2763
      %v2809 = vsel %vm1036, %v2761, %v2762
      %v2810 = vsel %vm1036, %v2760, %v2761
      %v2811 = vsel %vm1036, %v2759, %v2760
      %v2812 = vsel %vm1036, %v2758, %v2759
      %v2813 = vsel %vm1036, %v2757, %v2758
      %v2814 = vsel %vm1036, %v2756, %v2757
      %v2815 = vsel %vm1036, %v2755, %v2756
      %v2816 = vsel %vm1036, %v2754, %v2755
      %v2817 = vsel %vm1036, %v2753, %v2754
      %v2818 = vsel %vm1036, %v2752, %v2753
      %v2819 = vsel %vm1036, %v2751, %v2752
      %v2820 = vsel %vm1036, %v2750, %v2751
      %v2821 = vsel %vm1036, %v2749, %v2750
      %v2822 = vsel %vm1036, %v2748, %v2749
      %v2823 = vsel %vm1036, %v2747, %v2748
      %v2824 = vsel %vm1036, %v2746, %v2747
      %v2825 = vsel %vm1036, %v2745, %v2746
      %v2826 = vsel %vm1036, %v2744, %v2745
      %v2827 = vsel %vm1036, %v2743, %v2744
      %v2828 = vsel %vm1036, %v2742, %v2743
      %v2829 = vsel %vm1036, %v2741, %v2742
      %v2830 = vsel %vm1036, %v2740, %v2741
      %v2831 = vsel %vm1036, %v2739, %v2740
      %v2832 = vsel %vm1036, %v2738, %v2739
      %v2833 = vsel %vm1036, %v2737, %v2738
      %v2834 = vsel %vm1036, %v2736, %v2737
      %v2835 = vsel %vm1036, %v2735, %v2736
      %v2836 = vsel %vm1036, %v2734, %v2735
      %v2837 = vsel %vm1036, %v2733, %v2734
      %v2838 = vsel %vm1036, %v2732, %v2733
      %v2839 = vsel %vm1036, %v2731, %v2732
      %v2840 = vsel %vm1036, %v2730, %v2731
      %v2841 = vsel %vm1036, %v2729, %v2730
      %v2842 = vsel %vm1036, %v2728, %v2729
      %v2843 = vsel %vm1036, %v2727, %v2728
      %v2844 = vsel %vm1036, %v2726, %v2727
      %v2845 = vsel %vm1036, %v2725, %v2726
      %v2846 = vsel %vm1036, %v2724, %v2725
      %v2847 = vsel %vm1036, %v2723, %v2724
      %v2848 = vsel %vm1036, %v2722, %v2723
      %v2849 = vsel %vm1036, %v2721, %v2722
      %v2850 = vsel %vm1036, %v2720, %v2721
      %v2851 = vsel %vm1036, %v2719, %v2720
      %v2852 = vsel %vm1036, %v2718, %v2719
      %v2853 = vsel %vm1036, %v2717, %v2718
      %v2854 = vsel %vm1036, %v2716, %v2717
      %v2855 = vsel %vm1036, %v2715, %v2716
      %v2856 = vsel %vm1036, %v2714, %v2715
      %v2857 = vsel %vm1036, %v2713, %v2714
      %v2858 = vsel %vm1036, %v2712, %v2713
      %v2859 = vsel %vm1036, %v2711, %v2712
      %v2860 = vsel %vm1036, %v2710, %v2711
      %v2861 = vsel %vm1036, %v2709, %v2710
      %v2862 = vsel %vm1036, %v2708, %v2709
      %v2863 = vsel %vm1036, %v2707, %v2708
      %v2864 = vsel %vm1036, %v2706, %v2707
      %v2865 = vsel %vm1036, %v2705, %v2706
      %v2866 = vsel %vm1036, %v2704, %v2705
      %v2867 = vsel %vm1036, %v2703, %v2704
      %v2868 = vsel %vm1036, %v2702, %v2703
      %v2869 = vsel %vm1036, %v2701, %v2702
      %v2870 = vsel %vm1036, %v2700, %v2701
      %v2871 = vsel %vm1036, %v2699, %v2700
      %v2872 = vsel %vm1036, %v2698, %v2699
      %v2873 = vsel %vm1036, %v2697, %v2698
      %v2874 = vsel %vm1036, %v2696, %v2697
      %v2875 = vsel %vm1036, %v2695, %v2696
      %v2876 = vsel %vm1036, %v2694, %v2695
      %v2877 = vsel %vm1036, %v2693, %v2694
      %v2878 = vsel %vm1036, %v2692, %v2693
      %v2879 = vsel %vm1036, %v2691, %v2692
      %v2880 = vsel %vm1036, %v2690, %v2691
      %v2881 = vsel %vm1036, %v2689, %v2690
      %v2882 = vmax.f32 %v2592, %v2881
      %v2883 = vmax.f32 %v2593, %v2880
      %v2884 = vmax.f32 %v2594, %v2879
      %v2885 = vmax.f32 %v2595, %v2878
      %v2886 = vmax.f32 %v2596, %v2877
      %v2887 = vmax.f32 %v2597, %v2876
      %v2888 = vmax.f32 %v2598, %v2875
      %v2889 = vmax.f32 %v2599, %v2874
      %v2890 = vmax.f32 %v2600, %v2873
      %v2891 = vmax.f32 %v2601, %v2872
      %v2892 = vmax.f32 %v2602, %v2871
      %v2893 = vmax.f32 %v2603, %v2870
      %v2894 = vmax.f32 %v2604, %v2869
      %v2895 = vmax.f32 %v2605, %v2868
      %v2896 = vmax.f32 %v2606, %v2867
      %v2897 = vmax.f32 %v2607, %v2866
      %v2898 = vmax.f32 %v2608, %v2865
      %v2899 = vmax.f32 %v2609, %v2864
      %v2900 = vmax.f32 %v2610, %v2863
      %v2901 = vmax.f32 %v2611, %v2862
      %v2902 = vmax.f32 %v2612, %v2861
      %v2903 = vmax.f32 %v2613, %v2860
      %v2904 = vmax.f32 %v2614, %v2859
      %v2905 = vmax.f32 %v2615, %v2858
      %v2906 = vmax.f32 %v2616, %v2857
      %v2907 = vmax.f32 %v2617, %v2856
      %v2908 = vmax.f32 %v2618, %v2855
      %v2909 = vmax.f32 %v2619, %v2854
      %v2910 = vmax.f32 %v2620, %v2853
      %v2911 = vmax.f32 %v2621, %v2852
      %v2912 = vmax.f32 %v2622, %v2851
      %v2913 = vmax.f32 %v2623, %v2850
      %v2914 = vmax.f32 %v2624, %v2849
      %v2915 = vmax.f32 %v2625, %v2848
      %v2916 = vmax.f32 %v2626, %v2847
      %v2917 = vmax.f32 %v2627, %v2846
      %v2918 = vmax.f32 %v2628, %v2845
      %v2919 = vmax.f32 %v2629, %v2844
      %v2920 = vmax.f32 %v2630, %v2843
      %v2921 = vmax.f32 %v2631, %v2842
      %v2922 = vmax.f32 %v2632, %v2841
      %v2923 = vmax.f32 %v2633, %v2840
      %v2924 = vmax.f32 %v2634, %v2839
      %v2925 = vmax.f32 %v2635, %v2838
      %v2926 = vmax.f32 %v2636, %v2837
      %v2927 = vmax.f32 %v2637, %v2836
      %v2928 = vmax.f32 %v2638, %v2835
      %v2929 = vmax.f32 %v2639, %v2834
      %v2930 = vmax.f32 %v2640, %v2833
      %v2931 = vmax.f32 %v2641, %v2832
      %v2932 = vmax.f32 %v2642, %v2831
      %v2933 = vmax.f32 %v2643, %v2830
      %v2934 = vmax.f32 %v2644, %v2829
      %v2935 = vmax.f32 %v2645, %v2828
      %v2936 = vmax.f32 %v2646, %v2827
      %v2937 = vmax.f32 %v2647, %v2826
      %v2938 = vmax.f32 %v2648, %v2825
      %v2939 = vmax.f32 %v2649, %v2824
      %v2940 = vmax.f32 %v2650, %v2823
      %v2941 = vmax.f32 %v2651, %v2822
      %v2942 = vmax.f32 %v2652, %v2821
      %v2943 = vmax.f32 %v2653, %v2820
      %v2944 = vmax.f32 %v2654, %v2819
      %v2945 = vmax.f32 %v2655, %v2818
      %v2946 = vmax.f32 %v2656, %v2817
      %v2947 = vmax.f32 %v2657, %v2816
      %v2948 = vmax.f32 %v2658, %v2815
      %v2949 = vmax.f32 %v2659, %v2814
      %v2950 = vmax.f32 %v2660, %v2813
      %v2951 = vmax.f32 %v2661, %v2812
      %v2952 = vmax.f32 %v2662, %v2811
      %v2953 = vmax.f32 %v2663, %v2810
      %v2954 = vmax.f32 %v2664, %v2809
      %v2955 = vmax.f32 %v2665, %v2808
      %v2956 = vmax.f32 %v2666, %v2807
      %v2957 = vmax.f32 %v2667, %v2806
      %v2958 = vmax.f32 %v2668, %v2805
      %v2959 = vmax.f32 %v2669, %v2804
      %v2960 = vmax.f32 %v2670, %v2803
      %v2961 = vmax.f32 %v2671, %v2802
      %v2962 = vmax.f32 %v2672, %v2801
      %v2963 = vmax.f32 %v2673, %v2800
      %v2964 = vmax.f32 %v2674, %v2799
      %v2965 = vmax.f32 %v2675, %v2798
      %v2966 = vmax.f32 %v2676, %v2797
      %v2967 = vmax.f32 %v2677, %v2796
      %v2968 = vmax.f32 %v2678, %v2795
      %v2969 = vmax.f32 %v2679, %v2794
      %v2970 = vmax.f32 %v2680, %v2793
      %v2971 = vmax.f32 %v2681, %v2792
      %v2972 = vmax.f32 %v2682, %v2791
      %v2973 = vmax.f32 %v2683, %v2790
      %v2974 = vmax.f32 %v2684, %v2789
      %v2975 = vmax.f32 %v2685, %v2788
      %v2976 = vmax.f32 %v2686, %v2787
      %v2977 = vmax.f32 %v2687, %v2786
      %v2978 = vrot.slane %v2591, 7
      %v2979 = vrot.slane %v2592, 7
      %v2980 = vrot.slane %v2593, 7
      %v2981 = vrot.slane %v2594, 7
      %v2982 = vrot.slane %v2595, 7
      %v2983 = vrot.slane %v2596, 7
      %v2984 = vrot.slane %v2597, 7
      %v2985 = vrot.slane %v2598, 7
      %v2986 = vrot.slane %v2599, 7
      %v2987 = vrot.slane %v2600, 7
      %v2988 = vrot.slane %v2601, 7
      %v2989 = vrot.slane %v2602, 7
      %v2990 = vrot.slane %v2603, 7
      %v2991 = vrot.slane %v2604, 7
      %v2992 = vrot.slane %v2605, 7
      %v2993 = vrot.slane %v2606, 7
      %v2994 = vrot.slane %v2607, 7
      %v2995 = vrot.slane %v2608, 7
      %v2996 = vrot.slane %v2609, 7
      %v2997 = vrot.slane %v2610, 7
      %v2998 = vrot.slane %v2611, 7
      %v2999 = vrot.slane %v2612, 7
      %v3000 = vrot.slane %v2613, 7
      %v3001 = vrot.slane %v2614, 7
      %v3002 = vrot.slane %v2615, 7
      %v3003 = vrot.slane %v2616, 7
      %v3004 = vrot.slane %v2617, 7
      %v3005 = vrot.slane %v2618, 7
      %v3006 = vrot.slane %v2619, 7
      %v3007 = vrot.slane %v2620, 7
      %v3008 = vrot.slane %v2621, 7
      %v3009 = vrot.slane %v2622, 7
      %v3010 = vrot.slane %v2623, 7
      %v3011 = vrot.slane %v2624, 7
      %v3012 = vrot.slane %v2625, 7
      %v3013 = vrot.slane %v2626, 7
      %v3014 = vrot.slane %v2627, 7
      %v3015 = vrot.slane %v2628, 7
      %v3016 = vrot.slane %v2629, 7
      %v3017 = vrot.slane %v2630, 7
      %v3018 = vrot.slane %v2631, 7
      %v3019 = vrot.slane %v2632, 7
      %v3020 = vrot.slane %v2633, 7
      %v3021 = vrot.slane %v2634, 7
      %v3022 = vrot.slane %v2635, 7
      %v3023 = vrot.slane %v2636, 7
      %v3024 = vrot.slane %v2637, 7
      %v3025 = vrot.slane %v2638, 7
      %v3026 = vrot.slane %v2639, 7
      %v3027 = vrot.slane %v2640, 7
      %v3028 = vrot.slane %v2641, 7
      %v3029 = vrot.slane %v2642, 7
      %v3030 = vrot.slane %v2643, 7
      %v3031 = vrot.slane %v2644, 7
      %v3032 = vrot.slane %v2645, 7
      %v3033 = vrot.slane %v2646, 7
      %v3034 = vrot.slane %v2647, 7
      %v3035 = vrot.slane %v2648, 7
      %v3036 = vrot.slane %v2649, 7
      %v3037 = vrot.slane %v2650, 7
      %v3038 = vrot.slane %v2651, 7
      %v3039 = vrot.slane %v2652, 7
      %v3040 = vrot.slane %v2653, 7
      %v3041 = vrot.slane %v2654, 7
      %v3042 = vrot.slane %v2655, 7
      %v3043 = vrot.slane %v2656, 7
      %v3044 = vrot.slane %v2657, 7
      %v3045 = vrot.slane %v2658, 7
      %v3046 = vrot.slane %v2659, 7
      %v3047 = vrot.slane %v2660, 7
      %v3048 = vrot.slane %v2661, 7
      %v3049 = vrot.slane %v2662, 7
      %v3050 = vrot.slane %v2663, 7
      %v3051 = vrot.slane %v2664, 7
      %v3052 = vrot.slane %v2665, 7
      %v3053 = vrot.slane %v2666, 7
      %v3054 = vrot.slane %v2667, 7
      %v3055 = vrot.slane %v2668, 7
      %v3056 = vrot.slane %v2669, 7
      %v3057 = vrot.slane %v2670, 7
      %v3058 = vrot.slane %v2671, 7
      %v3059 = vrot.slane %v2672, 7
      %v3060 = vrot.slane %v2673, 7
      %v3061 = vrot.slane %v2674, 7
      %v3062 = vrot.slane %v2675, 7
      %v3063 = vrot.slane %v2676, 7
      %v3064 = vrot.slane %v2677, 7
      %v3065 = vrot.slane %v2678, 7
      %v3066 = vrot.slane %v2679, 7
      %v3067 = vrot.slane %v2680, 7
      %v3068 = vrot.slane %v2681, 7
      %v3069 = vrot.slane %v2682, 7
      %v3070 = vrot.slane %v2683, 7
      %v3071 = vrot.slane %v2684, 7
      %v3072 = vrot.slane %v2685, 7
      %v3073 = vrot.slane %v2686, 7
      %v3074 = vrot.slane %v2687, 7
      %v3075 = vsel %vm1380, %v3073, %v3074
      %v3076 = vsel %vm1380, %v3072, %v3073
      %v3077 = vsel %vm1380, %v3071, %v3072
      %v3078 = vsel %vm1380, %v3070, %v3071
      %v3079 = vsel %vm1380, %v3069, %v3070
      %v3080 = vsel %vm1380, %v3068, %v3069
      %v3081 = vsel %vm1380, %v3067, %v3068
      %v3082 = vsel %vm1380, %v3066, %v3067
      %v3083 = vsel %vm1380, %v3065, %v3066
      %v3084 = vsel %vm1380, %v3064, %v3065
      %v3085 = vsel %vm1380, %v3063, %v3064
      %v3086 = vsel %vm1380, %v3062, %v3063
      %v3087 = vsel %vm1380, %v3061, %v3062
      %v3088 = vsel %vm1380, %v3060, %v3061
      %v3089 = vsel %vm1380, %v3059, %v3060
      %v3090 = vsel %vm1380, %v3058, %v3059
      %v3091 = vsel %vm1380, %v3057, %v3058
      %v3092 = vsel %vm1380, %v3056, %v3057
      %v3093 = vsel %vm1380, %v3055, %v3056
      %v3094 = vsel %vm1380, %v3054, %v3055
      %v3095 = vsel %vm1380, %v3053, %v3054
      %v3096 = vsel %vm1380, %v3052, %v3053
      %v3097 = vsel %vm1380, %v3051, %v3052
      %v3098 = vsel %vm1380, %v3050, %v3051
      %v3099 = vsel %vm1380, %v3049, %v3050
      %v3100 = vsel %vm1380, %v3048, %v3049
      %v3101 = vsel %vm1380, %v3047, %v3048
      %v3102 = vsel %vm1380, %v3046, %v3047
      %v3103 = vsel %vm1380, %v3045, %v3046
      %v3104 = vsel %vm1380, %v3044, %v3045
      %v3105 = vsel %vm1380, %v3043, %v3044
      %v3106 = vsel %vm1380, %v3042, %v3043
      %v3107 = vsel %vm1380, %v3041, %v3042
      %v3108 = vsel %vm1380, %v3040, %v3041
      %v3109 = vsel %vm1380, %v3039, %v3040
      %v3110 = vsel %vm1380, %v3038, %v3039
      %v3111 = vsel %vm1380, %v3037, %v3038
      %v3112 = vsel %vm1380, %v3036, %v3037
      %v3113 = vsel %vm1380, %v3035, %v3036
      %v3114 = vsel %vm1380, %v3034, %v3035
      %v3115 = vsel %vm1380, %v3033, %v3034
      %v3116 = vsel %vm1380, %v3032, %v3033
      %v3117 = vsel %vm1380, %v3031, %v3032
      %v3118 = vsel %vm1380, %v3030, %v3031
      %v3119 = vsel %vm1380, %v3029, %v3030
      %v3120 = vsel %vm1380, %v3028, %v3029
      %v3121 = vsel %vm1380, %v3027, %v3028
      %v3122 = vsel %vm1380, %v3026, %v3027
      %v3123 = vsel %vm1380, %v3025, %v3026
      %v3124 = vsel %vm1380, %v3024, %v3025
      %v3125 = vsel %vm1380, %v3023, %v3024
      %v3126 = vsel %vm1380, %v3022, %v3023
      %v3127 = vsel %vm1380, %v3021, %v3022
      %v3128 = vsel %vm1380, %v3020, %v3021
      %v3129 = vsel %vm1380, %v3019, %v3020
      %v3130 = vsel %vm1380, %v3018, %v3019
      %v3131 = vsel %vm1380, %v3017, %v3018
      %v3132 = vsel %vm1380, %v3016, %v3017
      %v3133 = vsel %vm1380, %v3015, %v3016
      %v3134 = vsel %vm1380, %v3014, %v3015
      %v3135 = vsel %vm1380, %v3013, %v3014
      %v3136 = vsel %vm1380, %v3012, %v3013
      %v3137 = vsel %vm1380, %v3011, %v3012
      %v3138 = vsel %vm1380, %v3010, %v3011
      %v3139 = vsel %vm1380, %v3009, %v3010
      %v3140 = vsel %vm1380, %v3008, %v3009
      %v3141 = vsel %vm1380, %v3007, %v3008
      %v3142 = vsel %vm1380, %v3006, %v3007
      %v3143 = vsel %vm1380, %v3005, %v3006
      %v3144 = vsel %vm1380, %v3004, %v3005
      %v3145 = vsel %vm1380, %v3003, %v3004
      %v3146 = vsel %vm1380, %v3002, %v3003
      %v3147 = vsel %vm1380, %v3001, %v3002
      %v3148 = vsel %vm1380, %v3000, %v3001
      %v3149 = vsel %vm1380, %v2999, %v3000
      %v3150 = vsel %vm1380, %v2998, %v2999
      %v3151 = vsel %vm1380, %v2997, %v2998
      %v3152 = vsel %vm1380, %v2996, %v2997
      %v3153 = vsel %vm1380, %v2995, %v2996
      %v3154 = vsel %vm1380, %v2994, %v2995
      %v3155 = vsel %vm1380, %v2993, %v2994
      %v3156 = vsel %vm1380, %v2992, %v2993
      %v3157 = vsel %vm1380, %v2991, %v2992
      %v3158 = vsel %vm1380, %v2990, %v2991
      %v3159 = vsel %vm1380, %v2989, %v2990
      %v3160 = vsel %vm1380, %v2988, %v2989
      %v3161 = vsel %vm1380, %v2987, %v2988
      %v3162 = vsel %vm1380, %v2986, %v2987
      %v3163 = vsel %vm1380, %v2985, %v2986
      %v3164 = vsel %vm1380, %v2984, %v2985
      %v3165 = vsel %vm1380, %v2983, %v2984
      %v3166 = vsel %vm1380, %v2982, %v2983
      %v3167 = vsel %vm1380, %v2981, %v2982
      %v3168 = vsel %vm1380, %v2980, %v2981
      %v3169 = vsel %vm1380, %v2979, %v2980
      %v3170 = vsel %vm1380, %v2978, %v2979
      %v3171 = vmax.f32 %v2882, %v3170
      %v3172 = vmax.f32 %v2883, %v3169
      %v3173 = vmax.f32 %v2884, %v3168
      %v3174 = vmax.f32 %v2885, %v3167
      %v3175 = vmax.f32 %v2886, %v3166
      %v3176 = vmax.f32 %v2887, %v3165
      %v3177 = vmax.f32 %v2888, %v3164
      %v3178 = vmax.f32 %v2889, %v3163
      %v3179 = vmax.f32 %v2890, %v3162
      %v3180 = vmax.f32 %v2891, %v3161
      %v3181 = vmax.f32 %v2892, %v3160
      %v3182 = vmax.f32 %v2893, %v3159
      %v3183 = vmax.f32 %v2894, %v3158
      %v3184 = vmax.f32 %v2895, %v3157
      %v3185 = vmax.f32 %v2896, %v3156
      %v3186 = vmax.f32 %v2897, %v3155
      %v3187 = vmax.f32 %v2898, %v3154
      %v3188 = vmax.f32 %v2899, %v3153
      %v3189 = vmax.f32 %v2900, %v3152
      %v3190 = vmax.f32 %v2901, %v3151
      %v3191 = vmax.f32 %v2902, %v3150
      %v3192 = vmax.f32 %v2903, %v3149
      %v3193 = vmax.f32 %v2904, %v3148
      %v3194 = vmax.f32 %v2905, %v3147
      %v3195 = vmax.f32 %v2906, %v3146
      %v3196 = vmax.f32 %v2907, %v3145
      %v3197 = vmax.f32 %v2908, %v3144
      %v3198 = vmax.f32 %v2909, %v3143
      %v3199 = vmax.f32 %v2910, %v3142
      %v3200 = vmax.f32 %v2911, %v3141
      %v3201 = vmax.f32 %v2912, %v3140
      %v3202 = vmax.f32 %v2913, %v3139
      %v3203 = vmax.f32 %v2914, %v3138
      %v3204 = vmax.f32 %v2915, %v3137
      %v3205 = vmax.f32 %v2916, %v3136
      %v3206 = vmax.f32 %v2917, %v3135
      %v3207 = vmax.f32 %v2918, %v3134
      %v3208 = vmax.f32 %v2919, %v3133
      %v3209 = vmax.f32 %v2920, %v3132
      %v3210 = vmax.f32 %v2921, %v3131
      %v3211 = vmax.f32 %v2922, %v3130
      %v3212 = vmax.f32 %v2923, %v3129
      %v3213 = vmax.f32 %v2924, %v3128
      %v3214 = vmax.f32 %v2925, %v3127
      %v3215 = vmax.f32 %v2926, %v3126
      %v3216 = vmax.f32 %v2927, %v3125
      %v3217 = vmax.f32 %v2928, %v3124
      %v3218 = vmax.f32 %v2929, %v3123
      %v3219 = vmax.f32 %v2930, %v3122
      %v3220 = vmax.f32 %v2931, %v3121
      %v3221 = vmax.f32 %v2932, %v3120
      %v3222 = vmax.f32 %v2933, %v3119
      %v3223 = vmax.f32 %v2934, %v3118
      %v3224 = vmax.f32 %v2935, %v3117
      %v3225 = vmax.f32 %v2936, %v3116
      %v3226 = vmax.f32 %v2937, %v3115
      %v3227 = vmax.f32 %v2938, %v3114
      %v3228 = vmax.f32 %v2939, %v3113
      %v3229 = vmax.f32 %v2940, %v3112
      %v3230 = vmax.f32 %v2941, %v3111
      %v3231 = vmax.f32 %v2942, %v3110
      %v3232 = vmax.f32 %v2943, %v3109
      %v3233 = vmax.f32 %v2944, %v3108
      %v3234 = vmax.f32 %v2945, %v3107
      %v3235 = vmax.f32 %v2946, %v3106
      %v3236 = vmax.f32 %v2947, %v3105
      %v3237 = vmax.f32 %v2948, %v3104
      %v3238 = vmax.f32 %v2949, %v3103
      %v3239 = vmax.f32 %v2950, %v3102
      %v3240 = vmax.f32 %v2951, %v3101
      %v3241 = vmax.f32 %v2952, %v3100
      %v3242 = vmax.f32 %v2953, %v3099
      %v3243 = vmax.f32 %v2954, %v3098
      %v3244 = vmax.f32 %v2955, %v3097
      %v3245 = vmax.f32 %v2956, %v3096
      %v3246 = vmax.f32 %v2957, %v3095
      %v3247 = vmax.f32 %v2958, %v3094
      %v3248 = vmax.f32 %v2959, %v3093
      %v3249 = vmax.f32 %v2960, %v3092
      %v3250 = vmax.f32 %v2961, %v3091
      %v3251 = vmax.f32 %v2962, %v3090
      %v3252 = vmax.f32 %v2963, %v3089
      %v3253 = vmax.f32 %v2964, %v3088
      %v3254 = vmax.f32 %v2965, %v3087
      %v3255 = vmax.f32 %v2966, %v3086
      %v3256 = vmax.f32 %v2967, %v3085
      %v3257 = vmax.f32 %v2968, %v3084
      %v3258 = vmax.f32 %v2969, %v3083
      %v3259 = vmax.f32 %v2970, %v3082
      %v3260 = vmax.f32 %v2971, %v3081
      %v3261 = vmax.f32 %v2972, %v3080
      %v3262 = vmax.f32 %v2973, %v3079
      %v3263 = vmax.f32 %v2974, %v3078
      %v3264 = vmax.f32 %v2975, %v3077
      %v3265 = vmax.f32 %v2976, %v3076
      %v3266 = vmax.f32 %v2977, %v3075
      %v3267 = vrot.slane %v2592, 2
      %v3268 = vrot.slane %v2593, 2
      %v3269 = vrot.slane %v2594, 2
      %v3270 = vrot.slane %v2595, 2
      %v3271 = vrot.slane %v2596, 2
      %v3272 = vrot.slane %v2597, 2
      %v3273 = vrot.slane %v2598, 2
      %v3274 = vrot.slane %v2599, 2
      %v3275 = vrot.slane %v2600, 2
      %v3276 = vrot.slane %v2601, 2
      %v3277 = vrot.slane %v2602, 2
      %v3278 = vrot.slane %v2603, 2
      %v3279 = vrot.slane %v2604, 2
      %v3280 = vrot.slane %v2605, 2
      %v3281 = vrot.slane %v2606, 2
      %v3282 = vrot.slane %v2607, 2
      %v3283 = vrot.slane %v2608, 2
      %v3284 = vrot.slane %v2609, 2
      %v3285 = vrot.slane %v2610, 2
      %v3286 = vrot.slane %v2611, 2
      %v3287 = vrot.slane %v2612, 2
      %v3288 = vrot.slane %v2613, 2
      %v3289 = vrot.slane %v2614, 2
      %v3290 = vrot.slane %v2615, 2
      %v3291 = vrot.slane %v2616, 2
      %v3292 = vrot.slane %v2617, 2
      %v3293 = vrot.slane %v2618, 2
      %v3294 = vrot.slane %v2619, 2
      %v3295 = vrot.slane %v2620, 2
      %v3296 = vrot.slane %v2621, 2
      %v3297 = vrot.slane %v2622, 2
      %v3298 = vrot.slane %v2623, 2
      %v3299 = vrot.slane %v2624, 2
      %v3300 = vrot.slane %v2625, 2
      %v3301 = vrot.slane %v2626, 2
      %v3302 = vrot.slane %v2627, 2
      %v3303 = vrot.slane %v2628, 2
      %v3304 = vrot.slane %v2629, 2
      %v3305 = vrot.slane %v2630, 2
      %v3306 = vrot.slane %v2631, 2
      %v3307 = vrot.slane %v2632, 2
      %v3308 = vrot.slane %v2633, 2
      %v3309 = vrot.slane %v2634, 2
      %v3310 = vrot.slane %v2635, 2
      %v3311 = vrot.slane %v2636, 2
      %v3312 = vrot.slane %v2637, 2
      %v3313 = vrot.slane %v2638, 2
      %v3314 = vrot.slane %v2639, 2
      %v3315 = vrot.slane %v2640, 2
      %v3316 = vrot.slane %v2641, 2
      %v3317 = vrot.slane %v2642, 2
      %v3318 = vrot.slane %v2643, 2
      %v3319 = vrot.slane %v2644, 2
      %v3320 = vrot.slane %v2645, 2
      %v3321 = vrot.slane %v2646, 2
      %v3322 = vrot.slane %v2647, 2
      %v3323 = vrot.slane %v2648, 2
      %v3324 = vrot.slane %v2649, 2
      %v3325 = vrot.slane %v2650, 2
      %v3326 = vrot.slane %v2651, 2
      %v3327 = vrot.slane %v2652, 2
      %v3328 = vrot.slane %v2653, 2
      %v3329 = vrot.slane %v2654, 2
      %v3330 = vrot.slane %v2655, 2
      %v3331 = vrot.slane %v2656, 2
      %v3332 = vrot.slane %v2657, 2
      %v3333 = vrot.slane %v2658, 2
      %v3334 = vrot.slane %v2659, 2
      %v3335 = vrot.slane %v2660, 2
      %v3336 = vrot.slane %v2661, 2
      %v3337 = vrot.slane %v2662, 2
      %v3338 = vrot.slane %v2663, 2
      %v3339 = vrot.slane %v2664, 2
      %v3340 = vrot.slane %v2665, 2
      %v3341 = vrot.slane %v2666, 2
      %v3342 = vrot.slane %v2667, 2
      %v3343 = vrot.slane %v2668, 2
      %v3344 = vrot.slane %v2669, 2
      %v3345 = vrot.slane %v2670, 2
      %v3346 = vrot.slane %v2671, 2
      %v3347 = vrot.slane %v2672, 2
      %v3348 = vrot.slane %v2673, 2
      %v3349 = vrot.slane %v2674, 2
      %v3350 = vrot.slane %v2675, 2
      %v3351 = vrot.slane %v2676, 2
      %v3352 = vrot.slane %v2677, 2
      %v3353 = vrot.slane %v2678, 2
      %v3354 = vrot.slane %v2679, 2
      %v3355 = vrot.slane %v2680, 2
      %v3356 = vrot.slane %v2681, 2
      %v3357 = vrot.slane %v2682, 2
      %v3358 = vrot.slane %v2683, 2
      %v3359 = vrot.slane %v2684, 2
      %v3360 = vrot.slane %v2685, 2
      %v3361 = vrot.slane %v2686, 2
      %v3362 = vrot.slane %v2687, 2
      %v3363 = vrot.slane %v2688, 2
      %v3364 = vsel %vm1724, %v3362, %v3363
      %v3365 = vsel %vm1724, %v3361, %v3362
      %v3366 = vsel %vm1724, %v3360, %v3361
      %v3367 = vsel %vm1724, %v3359, %v3360
      %v3368 = vsel %vm1724, %v3358, %v3359
      %v3369 = vsel %vm1724, %v3357, %v3358
      %v3370 = vsel %vm1724, %v3356, %v3357
      %v3371 = vsel %vm1724, %v3355, %v3356
      %v3372 = vsel %vm1724, %v3354, %v3355
      %v3373 = vsel %vm1724, %v3353, %v3354
      %v3374 = vsel %vm1724, %v3352, %v3353
      %v3375 = vsel %vm1724, %v3351, %v3352
      %v3376 = vsel %vm1724, %v3350, %v3351
      %v3377 = vsel %vm1724, %v3349, %v3350
      %v3378 = vsel %vm1724, %v3348, %v3349
      %v3379 = vsel %vm1724, %v3347, %v3348
      %v3380 = vsel %vm1724, %v3346, %v3347
      %v3381 = vsel %vm1724, %v3345, %v3346
      %v3382 = vsel %vm1724, %v3344, %v3345
      %v3383 = vsel %vm1724, %v3343, %v3344
      %v3384 = vsel %vm1724, %v3342, %v3343
      %v3385 = vsel %vm1724, %v3341, %v3342
      %v3386 = vsel %vm1724, %v3340, %v3341
      %v3387 = vsel %vm1724, %v3339, %v3340
      %v3388 = vsel %vm1724, %v3338, %v3339
      %v3389 = vsel %vm1724, %v3337, %v3338
      %v3390 = vsel %vm1724, %v3336, %v3337
      %v3391 = vsel %vm1724, %v3335, %v3336
      %v3392 = vsel %vm1724, %v3334, %v3335
      %v3393 = vsel %vm1724, %v3333, %v3334
      %v3394 = vsel %vm1724, %v3332, %v3333
      %v3395 = vsel %vm1724, %v3331, %v3332
      %v3396 = vsel %vm1724, %v3330, %v3331
      %v3397 = vsel %vm1724, %v3329, %v3330
      %v3398 = vsel %vm1724, %v3328, %v3329
      %v3399 = vsel %vm1724, %v3327, %v3328
      %v3400 = vsel %vm1724, %v3326, %v3327
      %v3401 = vsel %vm1724, %v3325, %v3326
      %v3402 = vsel %vm1724, %v3324, %v3325
      %v3403 = vsel %vm1724, %v3323, %v3324
      %v3404 = vsel %vm1724, %v3322, %v3323
      %v3405 = vsel %vm1724, %v3321, %v3322
      %v3406 = vsel %vm1724, %v3320, %v3321
      %v3407 = vsel %vm1724, %v3319, %v3320
      %v3408 = vsel %vm1724, %v3318, %v3319
      %v3409 = vsel %vm1724, %v3317, %v3318
      %v3410 = vsel %vm1724, %v3316, %v3317
      %v3411 = vsel %vm1724, %v3315, %v3316
      %v3412 = vsel %vm1724, %v3314, %v3315
      %v3413 = vsel %vm1724, %v3313, %v3314
      %v3414 = vsel %vm1724, %v3312, %v3313
      %v3415 = vsel %vm1724, %v3311, %v3312
      %v3416 = vsel %vm1724, %v3310, %v3311
      %v3417 = vsel %vm1724, %v3309, %v3310
      %v3418 = vsel %vm1724, %v3308, %v3309
      %v3419 = vsel %vm1724, %v3307, %v3308
      %v3420 = vsel %vm1724, %v3306, %v3307
      %v3421 = vsel %vm1724, %v3305, %v3306
      %v3422 = vsel %vm1724, %v3304, %v3305
      %v3423 = vsel %vm1724, %v3303, %v3304
      %v3424 = vsel %vm1724, %v3302, %v3303
      %v3425 = vsel %vm1724, %v3301, %v3302
      %v3426 = vsel %vm1724, %v3300, %v3301
      %v3427 = vsel %vm1724, %v3299, %v3300
      %v3428 = vsel %vm1724, %v3298, %v3299
      %v3429 = vsel %vm1724, %v3297, %v3298
      %v3430 = vsel %vm1724, %v3296, %v3297
      %v3431 = vsel %vm1724, %v3295, %v3296
      %v3432 = vsel %vm1724, %v3294, %v3295
      %v3433 = vsel %vm1724, %v3293, %v3294
      %v3434 = vsel %vm1724, %v3292, %v3293
      %v3435 = vsel %vm1724, %v3291, %v3292
      %v3436 = vsel %vm1724, %v3290, %v3291
      %v3437 = vsel %vm1724, %v3289, %v3290
      %v3438 = vsel %vm1724, %v3288, %v3289
      %v3439 = vsel %vm1724, %v3287, %v3288
      %v3440 = vsel %vm1724, %v3286, %v3287
      %v3441 = vsel %vm1724, %v3285, %v3286
      %v3442 = vsel %vm1724, %v3284, %v3285
      %v3443 = vsel %vm1724, %v3283, %v3284
      %v3444 = vsel %vm1724, %v3282, %v3283
      %v3445 = vsel %vm1724, %v3281, %v3282
      %v3446 = vsel %vm1724, %v3280, %v3281
      %v3447 = vsel %vm1724, %v3279, %v3280
      %v3448 = vsel %vm1724, %v3278, %v3279
      %v3449 = vsel %vm1724, %v3277, %v3278
      %v3450 = vsel %vm1724, %v3276, %v3277
      %v3451 = vsel %vm1724, %v3275, %v3276
      %v3452 = vsel %vm1724, %v3274, %v3275
      %v3453 = vsel %vm1724, %v3273, %v3274
      %v3454 = vsel %vm1724, %v3272, %v3273
      %v3455 = vsel %vm1724, %v3271, %v3272
      %v3456 = vsel %vm1724, %v3270, %v3271
      %v3457 = vsel %vm1724, %v3269, %v3270
      %v3458 = vsel %vm1724, %v3268, %v3269
      %v3459 = vsel %vm1724, %v3267, %v3268
      %v3460 = vmax.f32 %v3171, %v3459
      %v3461 = vmax.f32 %v3172, %v3458
      %v3462 = vmax.f32 %v3173, %v3457
      %v3463 = vmax.f32 %v3174, %v3456
      %v3464 = vmax.f32 %v3175, %v3455
      %v3465 = vmax.f32 %v3176, %v3454
      %v3466 = vmax.f32 %v3177, %v3453
      %v3467 = vmax.f32 %v3178, %v3452
      %v3468 = vmax.f32 %v3179, %v3451
      %v3469 = vmax.f32 %v3180, %v3450
      %v3470 = vmax.f32 %v3181, %v3449
      %v3471 = vmax.f32 %v3182, %v3448
      %v3472 = vmax.f32 %v3183, %v3447
      %v3473 = vmax.f32 %v3184, %v3446
      %v3474 = vmax.f32 %v3185, %v3445
      %v3475 = vmax.f32 %v3186, %v3444
      %v3476 = vmax.f32 %v3187, %v3443
      %v3477 = vmax.f32 %v3188, %v3442
      %v3478 = vmax.f32 %v3189, %v3441
      %v3479 = vmax.f32 %v3190, %v3440
      %v3480 = vmax.f32 %v3191, %v3439
      %v3481 = vmax.f32 %v3192, %v3438
      %v3482 = vmax.f32 %v3193, %v3437
      %v3483 = vmax.f32 %v3194, %v3436
      %v3484 = vmax.f32 %v3195, %v3435
      %v3485 = vmax.f32 %v3196, %v3434
      %v3486 = vmax.f32 %v3197, %v3433
      %v3487 = vmax.f32 %v3198, %v3432
      %v3488 = vmax.f32 %v3199, %v3431
      %v3489 = vmax.f32 %v3200, %v3430
      %v3490 = vmax.f32 %v3201, %v3429
      %v3491 = vmax.f32 %v3202, %v3428
      %v3492 = vmax.f32 %v3203, %v3427
      %v3493 = vmax.f32 %v3204, %v3426
      %v3494 = vmax.f32 %v3205, %v3425
      %v3495 = vmax.f32 %v3206, %v3424
      %v3496 = vmax.f32 %v3207, %v3423
      %v3497 = vmax.f32 %v3208, %v3422
      %v3498 = vmax.f32 %v3209, %v3421
      %v3499 = vmax.f32 %v3210, %v3420
      %v3500 = vmax.f32 %v3211, %v3419
      %v3501 = vmax.f32 %v3212, %v3418
      %v3502 = vmax.f32 %v3213, %v3417
      %v3503 = vmax.f32 %v3214, %v3416
      %v3504 = vmax.f32 %v3215, %v3415
      %v3505 = vmax.f32 %v3216, %v3414
      %v3506 = vmax.f32 %v3217, %v3413
      %v3507 = vmax.f32 %v3218, %v3412
      %v3508 = vmax.f32 %v3219, %v3411
      %v3509 = vmax.f32 %v3220, %v3410
      %v3510 = vmax.f32 %v3221, %v3409
      %v3511 = vmax.f32 %v3222, %v3408
      %v3512 = vmax.f32 %v3223, %v3407
      %v3513 = vmax.f32 %v3224, %v3406
      %v3514 = vmax.f32 %v3225, %v3405
      %v3515 = vmax.f32 %v3226, %v3404
      %v3516 = vmax.f32 %v3227, %v3403
      %v3517 = vmax.f32 %v3228, %v3402
      %v3518 = vmax.f32 %v3229, %v3401
      %v3519 = vmax.f32 %v3230, %v3400
      %v3520 = vmax.f32 %v3231, %v3399
      %v3521 = vmax.f32 %v3232, %v3398
      %v3522 = vmax.f32 %v3233, %v3397
      %v3523 = vmax.f32 %v3234, %v3396
      %v3524 = vmax.f32 %v3235, %v3395
      %v3525 = vmax.f32 %v3236, %v3394
      %v3526 = vmax.f32 %v3237, %v3393
      %v3527 = vmax.f32 %v3238, %v3392
      %v3528 = vmax.f32 %v3239, %v3391
      %v3529 = vmax.f32 %v3240, %v3390
      %v3530 = vmax.f32 %v3241, %v3389
      %v3531 = vmax.f32 %v3242, %v3388
      %v3532 = vmax.f32 %v3243, %v3387
      %v3533 = vmax.f32 %v3244, %v3386
      %v3534 = vmax.f32 %v3245, %v3385
      %v3535 = vmax.f32 %v3246, %v3384
      %v3536 = vmax.f32 %v3247, %v3383
      %v3537 = vmax.f32 %v3248, %v3382
      %v3538 = vmax.f32 %v3249, %v3381
      %v3539 = vmax.f32 %v3250, %v3380
      %v3540 = vmax.f32 %v3251, %v3379
      %v3541 = vmax.f32 %v3252, %v3378
      %v3542 = vmax.f32 %v3253, %v3377
      %v3543 = vmax.f32 %v3254, %v3376
      %v3544 = vmax.f32 %v3255, %v3375
      %v3545 = vmax.f32 %v3256, %v3374
      %v3546 = vmax.f32 %v3257, %v3373
      %v3547 = vmax.f32 %v3258, %v3372
      %v3548 = vmax.f32 %v3259, %v3371
      %v3549 = vmax.f32 %v3260, %v3370
      %v3550 = vmax.f32 %v3261, %v3369
      %v3551 = vmax.f32 %v3262, %v3368
      %v3552 = vmax.f32 %v3263, %v3367
      %v3553 = vmax.f32 %v3264, %v3366
      %v3554 = vmax.f32 %v3265, %v3365
      %v3555 = vmax.f32 %v3266, %v3364
      %v3556 = vrot.slane %v2591, 6
      %v3557 = vrot.slane %v2592, 6
      %v3558 = vrot.slane %v2593, 6
      %v3559 = vrot.slane %v2594, 6
      %v3560 = vrot.slane %v2595, 6
      %v3561 = vrot.slane %v2596, 6
      %v3562 = vrot.slane %v2597, 6
      %v3563 = vrot.slane %v2598, 6
      %v3564 = vrot.slane %v2599, 6
      %v3565 = vrot.slane %v2600, 6
      %v3566 = vrot.slane %v2601, 6
      %v3567 = vrot.slane %v2602, 6
      %v3568 = vrot.slane %v2603, 6
      %v3569 = vrot.slane %v2604, 6
      %v3570 = vrot.slane %v2605, 6
      %v3571 = vrot.slane %v2606, 6
      %v3572 = vrot.slane %v2607, 6
      %v3573 = vrot.slane %v2608, 6
      %v3574 = vrot.slane %v2609, 6
      %v3575 = vrot.slane %v2610, 6
      %v3576 = vrot.slane %v2611, 6
      %v3577 = vrot.slane %v2612, 6
      %v3578 = vrot.slane %v2613, 6
      %v3579 = vrot.slane %v2614, 6
      %v3580 = vrot.slane %v2615, 6
      %v3581 = vrot.slane %v2616, 6
      %v3582 = vrot.slane %v2617, 6
      %v3583 = vrot.slane %v2618, 6
      %v3584 = vrot.slane %v2619, 6
      %v3585 = vrot.slane %v2620, 6
      %v3586 = vrot.slane %v2621, 6
      %v3587 = vrot.slane %v2622, 6
      %v3588 = vrot.slane %v2623, 6
      %v3589 = vrot.slane %v2624, 6
      %v3590 = vrot.slane %v2625, 6
      %v3591 = vrot.slane %v2626, 6
      %v3592 = vrot.slane %v2627, 6
      %v3593 = vrot.slane %v2628, 6
      %v3594 = vrot.slane %v2629, 6
      %v3595 = vrot.slane %v2630, 6
      %v3596 = vrot.slane %v2631, 6
      %v3597 = vrot.slane %v2632, 6
      %v3598 = vrot.slane %v2633, 6
      %v3599 = vrot.slane %v2634, 6
      %v3600 = vrot.slane %v2635, 6
      %v3601 = vrot.slane %v2636, 6
      %v3602 = vrot.slane %v2637, 6
      %v3603 = vrot.slane %v2638, 6
      %v3604 = vrot.slane %v2639, 6
      %v3605 = vrot.slane %v2640, 6
      %v3606 = vrot.slane %v2641, 6
      %v3607 = vrot.slane %v2642, 6
      %v3608 = vrot.slane %v2643, 6
      %v3609 = vrot.slane %v2644, 6
      %v3610 = vrot.slane %v2645, 6
      %v3611 = vrot.slane %v2646, 6
      %v3612 = vrot.slane %v2647, 6
      %v3613 = vrot.slane %v2648, 6
      %v3614 = vrot.slane %v2649, 6
      %v3615 = vrot.slane %v2650, 6
      %v3616 = vrot.slane %v2651, 6
      %v3617 = vrot.slane %v2652, 6
      %v3618 = vrot.slane %v2653, 6
      %v3619 = vrot.slane %v2654, 6
      %v3620 = vrot.slane %v2655, 6
      %v3621 = vrot.slane %v2656, 6
      %v3622 = vrot.slane %v2657, 6
      %v3623 = vrot.slane %v2658, 6
      %v3624 = vrot.slane %v2659, 6
      %v3625 = vrot.slane %v2660, 6
      %v3626 = vrot.slane %v2661, 6
      %v3627 = vrot.slane %v2662, 6
      %v3628 = vrot.slane %v2663, 6
      %v3629 = vrot.slane %v2664, 6
      %v3630 = vrot.slane %v2665, 6
      %v3631 = vrot.slane %v2666, 6
      %v3632 = vrot.slane %v2667, 6
      %v3633 = vrot.slane %v2668, 6
      %v3634 = vrot.slane %v2669, 6
      %v3635 = vrot.slane %v2670, 6
      %v3636 = vrot.slane %v2671, 6
      %v3637 = vrot.slane %v2672, 6
      %v3638 = vrot.slane %v2673, 6
      %v3639 = vrot.slane %v2674, 6
      %v3640 = vrot.slane %v2675, 6
      %v3641 = vrot.slane %v2676, 6
      %v3642 = vrot.slane %v2677, 6
      %v3643 = vrot.slane %v2678, 6
      %v3644 = vrot.slane %v2679, 6
      %v3645 = vrot.slane %v2680, 6
      %v3646 = vrot.slane %v2681, 6
      %v3647 = vrot.slane %v2682, 6
      %v3648 = vrot.slane %v2683, 6
      %v3649 = vrot.slane %v2684, 6
      %v3650 = vrot.slane %v2685, 6
      %v3651 = vrot.slane %v2686, 6
      %v3652 = vrot.slane %v2687, 6
      %v3653 = vsel %vm2068, %v3651, %v3652
      %v3654 = vsel %vm2068, %v3650, %v3651
      %v3655 = vsel %vm2068, %v3649, %v3650
      %v3656 = vsel %vm2068, %v3648, %v3649
      %v3657 = vsel %vm2068, %v3647, %v3648
      %v3658 = vsel %vm2068, %v3646, %v3647
      %v3659 = vsel %vm2068, %v3645, %v3646
      %v3660 = vsel %vm2068, %v3644, %v3645
      %v3661 = vsel %vm2068, %v3643, %v3644
      %v3662 = vsel %vm2068, %v3642, %v3643
      %v3663 = vsel %vm2068, %v3641, %v3642
      %v3664 = vsel %vm2068, %v3640, %v3641
      %v3665 = vsel %vm2068, %v3639, %v3640
      %v3666 = vsel %vm2068, %v3638, %v3639
      %v3667 = vsel %vm2068, %v3637, %v3638
      %v3668 = vsel %vm2068, %v3636, %v3637
      %v3669 = vsel %vm2068, %v3635, %v3636
      %v3670 = vsel %vm2068, %v3634, %v3635
      %v3671 = vsel %vm2068, %v3633, %v3634
      %v3672 = vsel %vm2068, %v3632, %v3633
      %v3673 = vsel %vm2068, %v3631, %v3632
      %v3674 = vsel %vm2068, %v3630, %v3631
      %v3675 = vsel %vm2068, %v3629, %v3630
      %v3676 = vsel %vm2068, %v3628, %v3629
      %v3677 = vsel %vm2068, %v3627, %v3628
      %v3678 = vsel %vm2068, %v3626, %v3627
      %v3679 = vsel %vm2068, %v3625, %v3626
      %v3680 = vsel %vm2068, %v3624, %v3625
      %v3681 = vsel %vm2068, %v3623, %v3624
      %v3682 = vsel %vm2068, %v3622, %v3623
      %v3683 = vsel %vm2068, %v3621, %v3622
      %v3684 = vsel %vm2068, %v3620, %v3621
      %v3685 = vsel %vm2068, %v3619, %v3620
      %v3686 = vsel %vm2068, %v3618, %v3619
      %v3687 = vsel %vm2068, %v3617, %v3618
      %v3688 = vsel %vm2068, %v3616, %v3617
      %v3689 = vsel %vm2068, %v3615, %v3616
      %v3690 = vsel %vm2068, %v3614, %v3615
      %v3691 = vsel %vm2068, %v3613, %v3614
      %v3692 = vsel %vm2068, %v3612, %v3613
      %v3693 = vsel %vm2068, %v3611, %v3612
      %v3694 = vsel %vm2068, %v3610, %v3611
      %v3695 = vsel %vm2068, %v3609, %v3610
      %v3696 = vsel %vm2068, %v3608, %v3609
      %v3697 = vsel %vm2068, %v3607, %v3608
      %v3698 = vsel %vm2068, %v3606, %v3607
      %v3699 = vsel %vm2068, %v3605, %v3606
      %v3700 = vsel %vm2068, %v3604, %v3605
      %v3701 = vsel %vm2068, %v3603, %v3604
      %v3702 = vsel %vm2068, %v3602, %v3603
      %v3703 = vsel %vm2068, %v3601, %v3602
      %v3704 = vsel %vm2068, %v3600, %v3601
      %v3705 = vsel %vm2068, %v3599, %v3600
      %v3706 = vsel %vm2068, %v3598, %v3599
      %v3707 = vsel %vm2068, %v3597, %v3598
      %v3708 = vsel %vm2068, %v3596, %v3597
      %v3709 = vsel %vm2068, %v3595, %v3596
      %v3710 = vsel %vm2068, %v3594, %v3595
      %v3711 = vsel %vm2068, %v3593, %v3594
      %v3712 = vsel %vm2068, %v3592, %v3593
      %v3713 = vsel %vm2068, %v3591, %v3592
      %v3714 = vsel %vm2068, %v3590, %v3591
      %v3715 = vsel %vm2068, %v3589, %v3590
      %v3716 = vsel %vm2068, %v3588, %v3589
      %v3717 = vsel %vm2068, %v3587, %v3588
      %v3718 = vsel %vm2068, %v3586, %v3587
      %v3719 = vsel %vm2068, %v3585, %v3586
      %v3720 = vsel %vm2068, %v3584, %v3585
      %v3721 = vsel %vm2068, %v3583, %v3584
      %v3722 = vsel %vm2068, %v3582, %v3583
      %v3723 = vsel %vm2068, %v3581, %v3582
      %v3724 = vsel %vm2068, %v3580, %v3581
      %v3725 = vsel %vm2068, %v3579, %v3580
      %v3726 = vsel %vm2068, %v3578, %v3579
      %v3727 = vsel %vm2068, %v3577, %v3578
      %v3728 = vsel %vm2068, %v3576, %v3577
      %v3729 = vsel %vm2068, %v3575, %v3576
      %v3730 = vsel %vm2068, %v3574, %v3575
      %v3731 = vsel %vm2068, %v3573, %v3574
      %v3732 = vsel %vm2068, %v3572, %v3573
      %v3733 = vsel %vm2068, %v3571, %v3572
      %v3734 = vsel %vm2068, %v3570, %v3571
      %v3735 = vsel %vm2068, %v3569, %v3570
      %v3736 = vsel %vm2068, %v3568, %v3569
      %v3737 = vsel %vm2068, %v3567, %v3568
      %v3738 = vsel %vm2068, %v3566, %v3567
      %v3739 = vsel %vm2068, %v3565, %v3566
      %v3740 = vsel %vm2068, %v3564, %v3565
      %v3741 = vsel %vm2068, %v3563, %v3564
      %v3742 = vsel %vm2068, %v3562, %v3563
      %v3743 = vsel %vm2068, %v3561, %v3562
      %v3744 = vsel %vm2068, %v3560, %v3561
      %v3745 = vsel %vm2068, %v3559, %v3560
      %v3746 = vsel %vm2068, %v3558, %v3559
      %v3747 = vsel %vm2068, %v3557, %v3558
      %v3748 = vsel %vm2068, %v3556, %v3557
      %v3749 = vmax.f32 %v3460, %v3748
      %v3750 = vmax.f32 %v3461, %v3747
      %v3751 = vmax.f32 %v3462, %v3746
      %v3752 = vmax.f32 %v3463, %v3745
      %v3753 = vmax.f32 %v3464, %v3744
      %v3754 = vmax.f32 %v3465, %v3743
      %v3755 = vmax.f32 %v3466, %v3742
      %v3756 = vmax.f32 %v3467, %v3741
      %v3757 = vmax.f32 %v3468, %v3740
      %v3758 = vmax.f32 %v3469, %v3739
      %v3759 = vmax.f32 %v3470, %v3738
      %v3760 = vmax.f32 %v3471, %v3737
      %v3761 = vmax.f32 %v3472, %v3736
      %v3762 = vmax.f32 %v3473, %v3735
      %v3763 = vmax.f32 %v3474, %v3734
      %v3764 = vmax.f32 %v3475, %v3733
      %v3765 = vmax.f32 %v3476, %v3732
      %v3766 = vmax.f32 %v3477, %v3731
      %v3767 = vmax.f32 %v3478, %v3730
      %v3768 = vmax.f32 %v3479, %v3729
      %v3769 = vmax.f32 %v3480, %v3728
      %v3770 = vmax.f32 %v3481, %v3727
      %v3771 = vmax.f32 %v3482, %v3726
      %v3772 = vmax.f32 %v3483, %v3725
      %v3773 = vmax.f32 %v3484, %v3724
      %v3774 = vmax.f32 %v3485, %v3723
      %v3775 = vmax.f32 %v3486, %v3722
      %v3776 = vmax.f32 %v3487, %v3721
      %v3777 = vmax.f32 %v3488, %v3720
      %v3778 = vmax.f32 %v3489, %v3719
      %v3779 = vmax.f32 %v3490, %v3718
      %v3780 = vmax.f32 %v3491, %v3717
      %v3781 = vmax.f32 %v3492, %v3716
      %v3782 = vmax.f32 %v3493, %v3715
      %v3783 = vmax.f32 %v3494, %v3714
      %v3784 = vmax.f32 %v3495, %v3713
      %v3785 = vmax.f32 %v3496, %v3712
      %v3786 = vmax.f32 %v3497, %v3711
      %v3787 = vmax.f32 %v3498, %v3710
      %v3788 = vmax.f32 %v3499, %v3709
      %v3789 = vmax.f32 %v3500, %v3708
      %v3790 = vmax.f32 %v3501, %v3707
      %v3791 = vmax.f32 %v3502, %v3706
      %v3792 = vmax.f32 %v3503, %v3705
      %v3793 = vmax.f32 %v3504, %v3704
      %v3794 = vmax.f32 %v3505, %v3703
      %v3795 = vmax.f32 %v3506, %v3702
      %v3796 = vmax.f32 %v3507, %v3701
      %v3797 = vmax.f32 %v3508, %v3700
      %v3798 = vmax.f32 %v3509, %v3699
      %v3799 = vmax.f32 %v3510, %v3698
      %v3800 = vmax.f32 %v3511, %v3697
      %v3801 = vmax.f32 %v3512, %v3696
      %v3802 = vmax.f32 %v3513, %v3695
      %v3803 = vmax.f32 %v3514, %v3694
      %v3804 = vmax.f32 %v3515, %v3693
      %v3805 = vmax.f32 %v3516, %v3692
      %v3806 = vmax.f32 %v3517, %v3691
      %v3807 = vmax.f32 %v3518, %v3690
      %v3808 = vmax.f32 %v3519, %v3689
      %v3809 = vmax.f32 %v3520, %v3688
      %v3810 = vmax.f32 %v3521, %v3687
      %v3811 = vmax.f32 %v3522, %v3686
      %v3812 = vmax.f32 %v3523, %v3685
      %v3813 = vmax.f32 %v3524, %v3684
      %v3814 = vmax.f32 %v3525, %v3683
      %v3815 = vmax.f32 %v3526, %v3682
      %v3816 = vmax.f32 %v3527, %v3681
      %v3817 = vmax.f32 %v3528, %v3680
      %v3818 = vmax.f32 %v3529, %v3679
      %v3819 = vmax.f32 %v3530, %v3678
      %v3820 = vmax.f32 %v3531, %v3677
      %v3821 = vmax.f32 %v3532, %v3676
      %v3822 = vmax.f32 %v3533, %v3675
      %v3823 = vmax.f32 %v3534, %v3674
      %v3824 = vmax.f32 %v3535, %v3673
      %v3825 = vmax.f32 %v3536, %v3672
      %v3826 = vmax.f32 %v3537, %v3671
      %v3827 = vmax.f32 %v3538, %v3670
      %v3828 = vmax.f32 %v3539, %v3669
      %v3829 = vmax.f32 %v3540, %v3668
      %v3830 = vmax.f32 %v3541, %v3667
      %v3831 = vmax.f32 %v3542, %v3666
      %v3832 = vmax.f32 %v3543, %v3665
      %v3833 = vmax.f32 %v3544, %v3664
      %v3834 = vmax.f32 %v3545, %v3663
      %v3835 = vmax.f32 %v3546, %v3662
      %v3836 = vmax.f32 %v3547, %v3661
      %v3837 = vmax.f32 %v3548, %v3660
      %v3838 = vmax.f32 %v3549, %v3659
      %v3839 = vmax.f32 %v3550, %v3658
      %v3840 = vmax.f32 %v3551, %v3657
      %v3841 = vmax.f32 %v3552, %v3656
      %v3842 = vmax.f32 %v3553, %v3655
      %v3843 = vmax.f32 %v3554, %v3654
      %v3844 = vmax.f32 %v3555, %v3653
      %v3845 = vmax.f32 %v3757, %v3761
      %v3846 = vmax.f32 %v3758, %v3762
      %v3847 = vmax.f32 %v3759, %v3763
      %v3848 = vmax.f32 %v3760, %v3764
      %v3849 = vmax.f32 %v3761, %v3765
      %v3850 = vmax.f32 %v3762, %v3766
      %v3851 = vmax.f32 %v3763, %v3767
      %v3852 = vmax.f32 %v3764, %v3768
      %v3853 = vmax.f32 %v3765, %v3769
      %v3854 = vmax.f32 %v3766, %v3770
      %v3855 = vmax.f32 %v3767, %v3771
      %v3856 = vmax.f32 %v3768, %v3772
      %v3857 = vmax.f32 %v3769, %v3773
      %v3858 = vmax.f32 %v3770, %v3774
      %v3859 = vmax.f32 %v3771, %v3775
      %v3860 = vmax.f32 %v3772, %v3776
      %v3861 = vmax.f32 %v3773, %v3777
      %v3862 = vmax.f32 %v3774, %v3778
      %v3863 = vmax.f32 %v3775, %v3779
      %v3864 = vmax.f32 %v3776, %v3780
      %v3865 = vmax.f32 %v3777, %v3781
      %v3866 = vmax.f32 %v3778, %v3782
      %v3867 = vmax.f32 %v3779, %v3783
      %v3868 = vmax.f32 %v3780, %v3784
      %v3869 = vmax.f32 %v3781, %v3785
      %v3870 = vmax.f32 %v3782, %v3786
      %v3871 = vmax.f32 %v3783, %v3787
      %v3872 = vmax.f32 %v3784, %v3788
      %v3873 = vmax.f32 %v3785, %v3789
      %v3874 = vmax.f32 %v3786, %v3790
      %v3875 = vmax.f32 %v3787, %v3791
      %v3876 = vmax.f32 %v3788, %v3792
      %v3877 = vmax.f32 %v3789, %v3793
      %v3878 = vmax.f32 %v3790, %v3794
      %v3879 = vmax.f32 %v3791, %v3795
      %v3880 = vmax.f32 %v3792, %v3796
      %v3881 = vmax.f32 %v3793, %v3797
      %v3882 = vmax.f32 %v3794, %v3798
      %v3883 = vmax.f32 %v3795, %v3799
      %v3884 = vmax.f32 %v3796, %v3800
      %v3885 = vmax.f32 %v3797, %v3801
      %v3886 = vmax.f32 %v3798, %v3802
      %v3887 = vmax.f32 %v3799, %v3803
      %v3888 = vmax.f32 %v3800, %v3804
      %v3889 = vmax.f32 %v3801, %v3805
      %v3890 = vmax.f32 %v3802, %v3806
      %v3891 = vmax.f32 %v3803, %v3807
      %v3892 = vmax.f32 %v3804, %v3808
      %v3893 = vmax.f32 %v3805, %v3809
      %v3894 = vmax.f32 %v3806, %v3810
      %v3895 = vmax.f32 %v3807, %v3811
      %v3896 = vmax.f32 %v3808, %v3812
      %v3897 = vmax.f32 %v3809, %v3813
      %v3898 = vmax.f32 %v3810, %v3814
      %v3899 = vmax.f32 %v3811, %v3815
      %v3900 = vmax.f32 %v3812, %v3816
      %v3901 = vmax.f32 %v3813, %v3817
      %v3902 = vmax.f32 %v3814, %v3818
      %v3903 = vmax.f32 %v3815, %v3819
      %v3904 = vmax.f32 %v3816, %v3820
      %v3905 = vmax.f32 %v3817, %v3821
      %v3906 = vmax.f32 %v3818, %v3822
      %v3907 = vmax.f32 %v3819, %v3823
      %v3908 = vmax.f32 %v3820, %v3824
      %v3909 = vmax.f32 %v3821, %v3825
      %v3910 = vmax.f32 %v3822, %v3826
      %v3911 = vmax.f32 %v3823, %v3827
      %v3912 = vmax.f32 %v3824, %v3828
      %v3913 = vmax.f32 %v3825, %v3829
      %v3914 = vmax.f32 %v3826, %v3830
      %v3915 = vmax.f32 %v3827, %v3831
      %v3916 = vmax.f32 %v3828, %v3832
      %v3917 = vmax.f32 %v3829, %v3833
      %v3918 = vmax.f32 %v3830, %v3834
      %v3919 = vmax.f32 %v3831, %v3835
      %v3920 = vmax.f32 %v3832, %v3836
      %v3921 = vmax.f32 %v3833, %v3837
      %v3922 = vmax.f32 %v3834, %v3838
      %v3923 = vmax.f32 %v3835, %v3839
      %v3924 = vmax.f32 %v3836, %v3840
      %v3925 = vmax.f32 %v3845, %v3753
      %v3926 = vmax.f32 %v3846, %v3754
      %v3927 = vmax.f32 %v3847, %v3755
      %v3928 = vmax.f32 %v3848, %v3756
      %v3929 = vmax.f32 %v3849, %v3757
      %v3930 = vmax.f32 %v3850, %v3758
      %v3931 = vmax.f32 %v3851, %v3759
      %v3932 = vmax.f32 %v3852, %v3760
      %v3933 = vmax.f32 %v3853, %v3761
      %v3934 = vmax.f32 %v3854, %v3762
      %v3935 = vmax.f32 %v3855, %v3763
      %v3936 = vmax.f32 %v3856, %v3764
      %v3937 = vmax.f32 %v3857, %v3765
      %v3938 = vmax.f32 %v3858, %v3766
      %v3939 = vmax.f32 %v3859, %v3767
      %v3940 = vmax.f32 %v3860, %v3768
      %v3941 = vmax.f32 %v3861, %v3769
      %v3942 = vmax.f32 %v3862, %v3770
      %v3943 = vmax.f32 %v3863, %v3771
      %v3944 = vmax.f32 %v3864, %v3772
      %v3945 = vmax.f32 %v3865, %v3773
      %v3946 = vmax.f32 %v3866, %v3774
      %v3947 = vmax.f32 %v3867, %v3775
      %v3948 = vmax.f32 %v3868, %v3776
      %v3949 = vmax.f32 %v3869, %v3777
      %v3950 = vmax.f32 %v3870, %v3778
      %v3951 = vmax.f32 %v3871, %v3779
      %v3952 = vmax.f32 %v3872, %v3780
      %v3953 = vmax.f32 %v3873, %v3781
      %v3954 = vmax.f32 %v3874, %v3782
      %v3955 = vmax.f32 %v3875, %v3783
      %v3956 = vmax.f32 %v3876, %v3784
      %v3957 = vmax.f32 %v3877, %v3785
      %v3958 = vmax.f32 %v3878, %v3786
      %v3959 = vmax.f32 %v3879, %v3787
      %v3960 = vmax.f32 %v3880, %v3788
      %v3961 = vmax.f32 %v3881, %v3789
      %v3962 = vmax.f32 %v3882, %v3790
      %v3963 = vmax.f32 %v3883, %v3791
      %v3964 = vmax.f32 %v3884, %v3792
      %v3965 = vmax.f32 %v3885, %v3793
      %v3966 = vmax.f32 %v3886, %v3794
      %v3967 = vmax.f32 %v3887, %v3795
      %v3968 = vmax.f32 %v3888, %v3796
      %v3969 = vmax.f32 %v3889, %v3797
      %v3970 = vmax.f32 %v3890, %v3798
      %v3971 = vmax.f32 %v3891, %v3799
      %v3972 = vmax.f32 %v3892, %v3800
      %v3973 = vmax.f32 %v3893, %v3801
      %v3974 = vmax.f32 %v3894, %v3802
      %v3975 = vmax.f32 %v3895, %v3803
      %v3976 = vmax.f32 %v3896, %v3804
      %v3977 = vmax.f32 %v3897, %v3805
      %v3978 = vmax.f32 %v3898, %v3806
      %v3979 = vmax.f32 %v3899, %v3807
      %v3980 = vmax.f32 %v3900, %v3808
      %v3981 = vmax.f32 %v3901, %v3809
      %v3982 = vmax.f32 %v3902, %v3810
      %v3983 = vmax.f32 %v3903, %v3811
      %v3984 = vmax.f32 %v3904, %v3812
      %v3985 = vmax.f32 %v3905, %v3813
      %v3986 = vmax.f32 %v3906, %v3814
      %v3987 = vmax.f32 %v3907, %v3815
      %v3988 = vmax.f32 %v3908, %v3816
      %v3989 = vmax.f32 %v3909, %v3817
      %v3990 = vmax.f32 %v3910, %v3818
      %v3991 = vmax.f32 %v3911, %v3819
      %v3992 = vmax.f32 %v3912, %v3820
      %v3993 = vmax.f32 %v3913, %v3821
      %v3994 = vmax.f32 %v3914, %v3822
      %v3995 = vmax.f32 %v3915, %v3823
      %v3996 = vmax.f32 %v3916, %v3824
      %v3997 = vmax.f32 %v3917, %v3825
      %v3998 = vmax.f32 %v3918, %v3826
      %v3999 = vmax.f32 %v3919, %v3827
      %v4000 = vmax.f32 %v3920, %v3828
      %v4001 = vmax.f32 %v3921, %v3829
      %v4002 = vmax.f32 %v3922, %v3830
      %v4003 = vmax.f32 %v3923, %v3831
      %v4004 = vmax.f32 %v3924, %v3832
      %v4005 = vmax.f32 %v3925, %v3765
      %v4006 = vmax.f32 %v3926, %v3766
      %v4007 = vmax.f32 %v3927, %v3767
      %v4008 = vmax.f32 %v3928, %v3768
      %v4009 = vmax.f32 %v3929, %v3769
      %v4010 = vmax.f32 %v3930, %v3770
      %v4011 = vmax.f32 %v3931, %v3771
      %v4012 = vmax.f32 %v3932, %v3772
      %v4013 = vmax.f32 %v3933, %v3773
      %v4014 = vmax.f32 %v3934, %v3774
      %v4015 = vmax.f32 %v3935, %v3775
      %v4016 = vmax.f32 %v3936, %v3776
      %v4017 = vmax.f32 %v3937, %v3777
      %v4018 = vmax.f32 %v3938, %v3778
      %v4019 = vmax.f32 %v3939, %v3779
      %v4020 = vmax.f32 %v3940, %v3780
      %v4021 = vmax.f32 %v3941, %v3781
      %v4022 = vmax.f32 %v3942, %v3782
      %v4023 = vmax.f32 %v3943, %v3783
      %v4024 = vmax.f32 %v3944, %v3784
      %v4025 = vmax.f32 %v3945, %v3785
      %v4026 = vmax.f32 %v3946, %v3786
      %v4027 = vmax.f32 %v3947, %v3787
      %v4028 = vmax.f32 %v3948, %v3788
      %v4029 = vmax.f32 %v3949, %v3789
      %v4030 = vmax.f32 %v3950, %v3790
      %v4031 = vmax.f32 %v3951, %v3791
      %v4032 = vmax.f32 %v3952, %v3792
      %v4033 = vmax.f32 %v3953, %v3793
      %v4034 = vmax.f32 %v3954, %v3794
      %v4035 = vmax.f32 %v3955, %v3795
      %v4036 = vmax.f32 %v3956, %v3796
      %v4037 = vmax.f32 %v3957, %v3797
      %v4038 = vmax.f32 %v3958, %v3798
      %v4039 = vmax.f32 %v3959, %v3799
      %v4040 = vmax.f32 %v3960, %v3800
      %v4041 = vmax.f32 %v3961, %v3801
      %v4042 = vmax.f32 %v3962, %v3802
      %v4043 = vmax.f32 %v3963, %v3803
      %v4044 = vmax.f32 %v3964, %v3804
      %v4045 = vmax.f32 %v3965, %v3805
      %v4046 = vmax.f32 %v3966, %v3806
      %v4047 = vmax.f32 %v3967, %v3807
      %v4048 = vmax.f32 %v3968, %v3808
      %v4049 = vmax.f32 %v3969, %v3809
      %v4050 = vmax.f32 %v3970, %v3810
      %v4051 = vmax.f32 %v3971, %v3811
      %v4052 = vmax.f32 %v3972, %v3812
      %v4053 = vmax.f32 %v3973, %v3813
      %v4054 = vmax.f32 %v3974, %v3814
      %v4055 = vmax.f32 %v3975, %v3815
      %v4056 = vmax.f32 %v3976, %v3816
      %v4057 = vmax.f32 %v3977, %v3817
      %v4058 = vmax.f32 %v3978, %v3818
      %v4059 = vmax.f32 %v3979, %v3819
      %v4060 = vmax.f32 %v3980, %v3820
      %v4061 = vmax.f32 %v3981, %v3821
      %v4062 = vmax.f32 %v3982, %v3822
      %v4063 = vmax.f32 %v3983, %v3823
      %v4064 = vmax.f32 %v3984, %v3824
      %v4065 = vmax.f32 %v3985, %v3825
      %v4066 = vmax.f32 %v3986, %v3826
      %v4067 = vmax.f32 %v3987, %v3827
      %v4068 = vmax.f32 %v3988, %v3828
      %v4069 = vmax.f32 %v3989, %v3829
      %v4070 = vmax.f32 %v3990, %v3830
      %v4071 = vmax.f32 %v3991, %v3831
      %v4072 = vmax.f32 %v3992, %v3832
      %v4073 = vmax.f32 %v3993, %v3833
      %v4074 = vmax.f32 %v3994, %v3834
      %v4075 = vmax.f32 %v3995, %v3835
      %v4076 = vmax.f32 %v3996, %v3836
      %v4077 = vmax.f32 %v3997, %v3837
      %v4078 = vmax.f32 %v3998, %v3838
      %v4079 = vmax.f32 %v3999, %v3839
      %v4080 = vmax.f32 %v4000, %v3840
      %v4081 = vmax.f32 %v4001, %v3841
      %v4082 = vmax.f32 %v4002, %v3842
      %v4083 = vmax.f32 %v4003, %v3843
      %v4084 = vmax.f32 %v4004, %v3844
      %v4085 = vmax.f32 %v4005, %v3749
      %v4086 = vmax.f32 %v4006, %v3750
      %v4087 = vmax.f32 %v4007, %v3751
      %v4088 = vmax.f32 %v4008, %v3752
      %v4089 = vmax.f32 %v4009, %v3753
      %v4090 = vmax.f32 %v4010, %v3754
      %v4091 = vmax.f32 %v4011, %v3755
      %v4092 = vmax.f32 %v4012, %v3756
      %v4093 = vmax.f32 %v4013, %v3757
      %v4094 = vmax.f32 %v4014, %v3758
      %v4095 = vmax.f32 %v4015, %v3759
      %v4096 = vmax.f32 %v4016, %v3760
      %v4097 = vmax.f32 %v4017, %v3761
      %v4098 = vmax.f32 %v4018, %v3762
      %v4099 = vmax.f32 %v4019, %v3763
      %v4100 = vmax.f32 %v4020, %v3764
      %v4101 = vmax.f32 %v4021, %v3765
      %v4102 = vmax.f32 %v4022, %v3766
      %v4103 = vmax.f32 %v4023, %v3767
      %v4104 = vmax.f32 %v4024, %v3768
      %v4105 = vmax.f32 %v4025, %v3769
      %v4106 = vmax.f32 %v4026, %v3770
      %v4107 = vmax.f32 %v4027, %v3771
      %v4108 = vmax.f32 %v4028, %v3772
      %v4109 = vmax.f32 %v4029, %v3773
      %v4110 = vmax.f32 %v4030, %v3774
      %v4111 = vmax.f32 %v4031, %v3775
      %v4112 = vmax.f32 %v4032, %v3776
      %v4113 = vmax.f32 %v4033, %v3777
      %v4114 = vmax.f32 %v4034, %v3778
      %v4115 = vmax.f32 %v4035, %v3779
      %v4116 = vmax.f32 %v4036, %v3780
      %v4117 = vmax.f32 %v4037, %v3781
      %v4118 = vmax.f32 %v4038, %v3782
      %v4119 = vmax.f32 %v4039, %v3783
      %v4120 = vmax.f32 %v4040, %v3784
      %v4121 = vmax.f32 %v4041, %v3785
      %v4122 = vmax.f32 %v4042, %v3786
      %v4123 = vmax.f32 %v4043, %v3787
      %v4124 = vmax.f32 %v4044, %v3788
      %v4125 = vmax.f32 %v4045, %v3789
      %v4126 = vmax.f32 %v4046, %v3790
      %v4127 = vmax.f32 %v4047, %v3791
      %v4128 = vmax.f32 %v4048, %v3792
      %v4129 = vmax.f32 %v4049, %v3793
      %v4130 = vmax.f32 %v4050, %v3794
      %v4131 = vmax.f32 %v4051, %v3795
      %v4132 = vmax.f32 %v4052, %v3796
      %v4133 = vmax.f32 %v4053, %v3797
      %v4134 = vmax.f32 %v4054, %v3798
      %v4135 = vmax.f32 %v4055, %v3799
      %v4136 = vmax.f32 %v4056, %v3800
      %v4137 = vmax.f32 %v4057, %v3801
      %v4138 = vmax.f32 %v4058, %v3802
      %v4139 = vmax.f32 %v4059, %v3803
      %v4140 = vmax.f32 %v4060, %v3804
      %v4141 = vmax.f32 %v4061, %v3805
      %v4142 = vmax.f32 %v4062, %v3806
      %v4143 = vmax.f32 %v4063, %v3807
      %v4144 = vmax.f32 %v4064, %v3808
      %v4145 = vmax.f32 %v4065, %v3809
      %v4146 = vmax.f32 %v4066, %v3810
      %v4147 = vmax.f32 %v4067, %v3811
      %v4148 = vmax.f32 %v4068, %v3812
      %v4149 = vmax.f32 %v4069, %v3813
      %v4150 = vmax.f32 %v4070, %v3814
      %v4151 = vmax.f32 %v4071, %v3815
      %v4152 = vmax.f32 %v4072, %v3816
      %v4153 = vmax.f32 %v4073, %v3817
      %v4154 = vmax.f32 %v4074, %v3818
      %v4155 = vmax.f32 %v4075, %v3819
      %v4156 = vmax.f32 %v4076, %v3820
      %v4157 = vmax.f32 %v4077, %v3821
      %v4158 = vmax.f32 %v4078, %v3822
      %v4159 = vmax.f32 %v4079, %v3823
      %v4160 = vmax.f32 %v4080, %v3824
      %v4161 = vmax.f32 %v4081, %v3825
      %v4162 = vmax.f32 %v4082, %v3826
      %v4163 = vmax.f32 %v4083, %v3827
      %v4164 = vmax.f32 %v4084, %v3828
      %v4165 = vrot.slane %v4086, 1
      %v4166 = vrot.slane %v4087, 1
      %v4167 = vrot.slane %v4088, 1
      %v4168 = vrot.slane %v4090, 1
      %v4169 = vrot.slane %v4091, 1
      %v4170 = vrot.slane %v4092, 1
      %v4171 = vrot.slane %v4094, 1
      %v4172 = vrot.slane %v4095, 1
      %v4173 = vrot.slane %v4096, 1
      %v4174 = vrot.slane %v4098, 1
      %v4175 = vrot.slane %v4099, 1
      %v4176 = vrot.slane %v4100, 1
      %v4177 = vrot.slane %v4102, 1
      %v4178 = vrot.slane %v4103, 1
      %v4179 = vrot.slane %v4104, 1
      %v4180 = vrot.slane %v4106, 1
      %v4181 = vrot.slane %v4107, 1
      %v4182 = vrot.slane %v4108, 1
      %v4183 = vrot.slane %v4110, 1
      %v4184 = vrot.slane %v4111, 1
      %v4185 = vrot.slane %v4112, 1
      %v4186 = vrot.slane %v4114, 1
      %v4187 = vrot.slane %v4115, 1
      %v4188 = vrot.slane %v4116, 1
      %v4189 = vrot.slane %v4118, 1
      %v4190 = vrot.slane %v4119, 1
      %v4191 = vrot.slane %v4120, 1
      %v4192 = vrot.slane %v4122, 1
      %v4193 = vrot.slane %v4123, 1
      %v4194 = vrot.slane %v4124, 1
      %v4195 = vrot.slane %v4126, 1
      %v4196 = vrot.slane %v4127, 1
      %v4197 = vrot.slane %v4128, 1
      %v4198 = vrot.slane %v4130, 1
      %v4199 = vrot.slane %v4131, 1
      %v4200 = vrot.slane %v4132, 1
      %v4201 = vrot.slane %v4134, 1
      %v4202 = vrot.slane %v4135, 1
      %v4203 = vrot.slane %v4136, 1
      %v4204 = vrot.slane %v4138, 1
      %v4205 = vrot.slane %v4139, 1
      %v4206 = vrot.slane %v4140, 1
      %v4207 = vrot.slane %v4142, 1
      %v4208 = vrot.slane %v4143, 1
      %v4209 = vrot.slane %v4144, 1
      %v4210 = vrot.slane %v4146, 1
      %v4211 = vrot.slane %v4147, 1
      %v4212 = vrot.slane %v4148, 1
      %v4213 = vrot.slane %v4150, 1
      %v4214 = vrot.slane %v4151, 1
      %v4215 = vrot.slane %v4152, 1
      %v4216 = vrot.slane %v4154, 1
      %v4217 = vrot.slane %v4155, 1
      %v4218 = vrot.slane %v4156, 1
      %v4219 = vrot.slane %v4158, 1
      %v4220 = vrot.slane %v4159, 1
      %v4221 = vrot.slane %v4160, 1
      %v4222 = vrot.slane %v4162, 1
      %v4223 = vrot.slane %v4163, 1
      %v4224 = vrot.slane %v4164, 1
      %v4225 = vsel %vm1036, %v4223, %v4224
      %v4226 = vsel %vm1036, %v4222, %v4223
      %v4227 = vsel %vm1036, %v4220, %v4221
      %v4228 = vsel %vm1036, %v4219, %v4220
      %v4229 = vsel %vm1036, %v4217, %v4218
      %v4230 = vsel %vm1036, %v4216, %v4217
      %v4231 = vsel %vm1036, %v4214, %v4215
      %v4232 = vsel %vm1036, %v4213, %v4214
      %v4233 = vsel %vm1036, %v4211, %v4212
      %v4234 = vsel %vm1036, %v4210, %v4211
      %v4235 = vsel %vm1036, %v4208, %v4209
      %v4236 = vsel %vm1036, %v4207, %v4208
      %v4237 = vsel %vm1036, %v4205, %v4206
      %v4238 = vsel %vm1036, %v4204, %v4205
      %v4239 = vsel %vm1036, %v4202, %v4203
      %v4240 = vsel %vm1036, %v4201, %v4202
      %v4241 = vsel %vm1036, %v4199, %v4200
      %v4242 = vsel %vm1036, %v4198, %v4199
      %v4243 = vsel %vm1036, %v4196, %v4197
      %v4244 = vsel %vm1036, %v4195, %v4196
      %v4245 = vsel %vm1036, %v4193, %v4194
      %v4246 = vsel %vm1036, %v4192, %v4193
      %v4247 = vsel %vm1036, %v4190, %v4191
      %v4248 = vsel %vm1036, %v4189, %v4190
      %v4249 = vsel %vm1036, %v4187, %v4188
      %v4250 = vsel %vm1036, %v4186, %v4187
      %v4251 = vsel %vm1036, %v4184, %v4185
      %v4252 = vsel %vm1036, %v4183, %v4184
      %v4253 = vsel %vm1036, %v4181, %v4182
      %v4254 = vsel %vm1036, %v4180, %v4181
      %v4255 = vsel %vm1036, %v4178, %v4179
      %v4256 = vsel %vm1036, %v4177, %v4178
      %v4257 = vsel %vm1036, %v4175, %v4176
      %v4258 = vsel %vm1036, %v4174, %v4175
      %v4259 = vsel %vm1036, %v4172, %v4173
      %v4260 = vsel %vm1036, %v4171, %v4172
      %v4261 = vsel %vm1036, %v4169, %v4170
      %v4262 = vsel %vm1036, %v4168, %v4169
      %v4263 = vsel %vm1036, %v4166, %v4167
      %v4264 = vsel %vm1036, %v4165, %v4166
      %v4265 = vmax.f32 %v4086, %v4264
      %v4266 = vmax.f32 %v4087, %v4263
      %v4267 = vmax.f32 %v4090, %v4262
      %v4268 = vmax.f32 %v4091, %v4261
      %v4269 = vmax.f32 %v4094, %v4260
      %v4270 = vmax.f32 %v4095, %v4259
      %v4271 = vmax.f32 %v4098, %v4258
      %v4272 = vmax.f32 %v4099, %v4257
      %v4273 = vmax.f32 %v4102, %v4256
      %v4274 = vmax.f32 %v4103, %v4255
      %v4275 = vmax.f32 %v4106, %v4254
      %v4276 = vmax.f32 %v4107, %v4253
      %v4277 = vmax.f32 %v4110, %v4252
      %v4278 = vmax.f32 %v4111, %v4251
      %v4279 = vmax.f32 %v4114, %v4250
      %v4280 = vmax.f32 %v4115, %v4249
      %v4281 = vmax.f32 %v4118, %v4248
      %v4282 = vmax.f32 %v4119, %v4247
      %v4283 = vmax.f32 %v4122, %v4246
      %v4284 = vmax.f32 %v4123, %v4245
      %v4285 = vmax.f32 %v4126, %v4244
      %v4286 = vmax.f32 %v4127, %v4243
      %v4287 = vmax.f32 %v4130, %v4242
      %v4288 = vmax.f32 %v4131, %v4241
      %v4289 = vmax.f32 %v4134, %v4240
      %v4290 = vmax.f32 %v4135, %v4239
      %v4291 = vmax.f32 %v4138, %v4238
      %v4292 = vmax.f32 %v4139, %v4237
      %v4293 = vmax.f32 %v4142, %v4236
      %v4294 = vmax.f32 %v4143, %v4235
      %v4295 = vmax.f32 %v4146, %v4234
      %v4296 = vmax.f32 %v4147, %v4233
      %v4297 = vmax.f32 %v4150, %v4232
      %v4298 = vmax.f32 %v4151, %v4231
      %v4299 = vmax.f32 %v4154, %v4230
      %v4300 = vmax.f32 %v4155, %v4229
      %v4301 = vmax.f32 %v4158, %v4228
      %v4302 = vmax.f32 %v4159, %v4227
      %v4303 = vmax.f32 %v4162, %v4226
      %v4304 = vmax.f32 %v4163, %v4225
      %v4305 = vrot.slane %v4085, 7
      %v4306 = vrot.slane %v4086, 7
      %v4307 = vrot.slane %v4087, 7
      %v4308 = vrot.slane %v4089, 7
      %v4309 = vrot.slane %v4090, 7
      %v4310 = vrot.slane %v4091, 7
      %v4311 = vrot.slane %v4093, 7
      %v4312 = vrot.slane %v4094, 7
      %v4313 = vrot.slane %v4095, 7
      %v4314 = vrot.slane %v4097, 7
      %v4315 = vrot.slane %v4098, 7
      %v4316 = vrot.slane %v4099, 7
      %v4317 = vrot.slane %v4101, 7
      %v4318 = vrot.slane %v4102, 7
      %v4319 = vrot.slane %v4103, 7
      %v4320 = vrot.slane %v4105, 7
      %v4321 = vrot.slane %v4106, 7
      %v4322 = vrot.slane %v4107, 7
      %v4323 = vrot.slane %v4109, 7
      %v4324 = vrot.slane %v4110, 7
      %v4325 = vrot.slane %v4111, 7
      %v4326 = vrot.slane %v4113, 7
      %v4327 = vrot.slane %v4114, 7
      %v4328 = vrot.slane %v4115, 7
      %v4329 = vrot.slane %v4117, 7
      %v4330 = vrot.slane %v4118, 7
      %v4331 = vrot.slane %v4119, 7
      %v4332 = vrot.slane %v4121, 7
      %v4333 = vrot.slane %v4122, 7
      %v4334 = vrot.slane %v4123, 7
      %v4335 = vrot.slane %v4125, 7
      %v4336 = vrot.slane %v4126, 7
      %v4337 = vrot.slane %v4127, 7
      %v4338 = vrot.slane %v4129, 7
      %v4339 = vrot.slane %v4130, 7
      %v4340 = vrot.slane %v4131, 7
      %v4341 = vrot.slane %v4133, 7
      %v4342 = vrot.slane %v4134, 7
      %v4343 = vrot.slane %v4135, 7
      %v4344 = vrot.slane %v4137, 7
      %v4345 = vrot.slane %v4138, 7
      %v4346 = vrot.slane %v4139, 7
      %v4347 = vrot.slane %v4141, 7
      %v4348 = vrot.slane %v4142, 7
      %v4349 = vrot.slane %v4143, 7
      %v4350 = vrot.slane %v4145, 7
      %v4351 = vrot.slane %v4146, 7
      %v4352 = vrot.slane %v4147, 7
      %v4353 = vrot.slane %v4149, 7
      %v4354 = vrot.slane %v4150, 7
      %v4355 = vrot.slane %v4151, 7
      %v4356 = vrot.slane %v4153, 7
      %v4357 = vrot.slane %v4154, 7
      %v4358 = vrot.slane %v4155, 7
      %v4359 = vrot.slane %v4157, 7
      %v4360 = vrot.slane %v4158, 7
      %v4361 = vrot.slane %v4159, 7
      %v4362 = vrot.slane %v4161, 7
      %v4363 = vrot.slane %v4162, 7
      %v4364 = vrot.slane %v4163, 7
      %v4365 = vsel %vm1380, %v4363, %v4364
      %v4366 = vsel %vm1380, %v4362, %v4363
      %v4367 = vsel %vm1380, %v4360, %v4361
      %v4368 = vsel %vm1380, %v4359, %v4360
      %v4369 = vsel %vm1380, %v4357, %v4358
      %v4370 = vsel %vm1380, %v4356, %v4357
      %v4371 = vsel %vm1380, %v4354, %v4355
      %v4372 = vsel %vm1380, %v4353, %v4354
      %v4373 = vsel %vm1380, %v4351, %v4352
      %v4374 = vsel %vm1380, %v4350, %v4351
      %v4375 = vsel %vm1380, %v4348, %v4349
      %v4376 = vsel %vm1380, %v4347, %v4348
      %v4377 = vsel %vm1380, %v4345, %v4346
      %v4378 = vsel %vm1380, %v4344, %v4345
      %v4379 = vsel %vm1380, %v4342, %v4343
      %v4380 = vsel %vm1380, %v4341, %v4342
      %v4381 = vsel %vm1380, %v4339, %v4340
      %v4382 = vsel %vm1380, %v4338, %v4339
      %v4383 = vsel %vm1380, %v4336, %v4337
      %v4384 = vsel %vm1380, %v4335, %v4336
      %v4385 = vsel %vm1380, %v4333, %v4334
      %v4386 = vsel %vm1380, %v4332, %v4333
      %v4387 = vsel %vm1380, %v4330, %v4331
      %v4388 = vsel %vm1380, %v4329, %v4330
      %v4389 = vsel %vm1380, %v4327, %v4328
      %v4390 = vsel %vm1380, %v4326, %v4327
      %v4391 = vsel %vm1380, %v4324, %v4325
      %v4392 = vsel %vm1380, %v4323, %v4324
      %v4393 = vsel %vm1380, %v4321, %v4322
      %v4394 = vsel %vm1380, %v4320, %v4321
      %v4395 = vsel %vm1380, %v4318, %v4319
      %v4396 = vsel %vm1380, %v4317, %v4318
      %v4397 = vsel %vm1380, %v4315, %v4316
      %v4398 = vsel %vm1380, %v4314, %v4315
      %v4399 = vsel %vm1380, %v4312, %v4313
      %v4400 = vsel %vm1380, %v4311, %v4312
      %v4401 = vsel %vm1380, %v4309, %v4310
      %v4402 = vsel %vm1380, %v4308, %v4309
      %v4403 = vsel %vm1380, %v4306, %v4307
      %v4404 = vsel %vm1380, %v4305, %v4306
      %v4405 = vmax.f32 %v4265, %v4404
      %v4406 = vmax.f32 %v4266, %v4403
      %v4407 = vmax.f32 %v4267, %v4402
      %v4408 = vmax.f32 %v4268, %v4401
      %v4409 = vmax.f32 %v4269, %v4400
      %v4410 = vmax.f32 %v4270, %v4399
      %v4411 = vmax.f32 %v4271, %v4398
      %v4412 = vmax.f32 %v4272, %v4397
      %v4413 = vmax.f32 %v4273, %v4396
      %v4414 = vmax.f32 %v4274, %v4395
      %v4415 = vmax.f32 %v4275, %v4394
      %v4416 = vmax.f32 %v4276, %v4393
      %v4417 = vmax.f32 %v4277, %v4392
      %v4418 = vmax.f32 %v4278, %v4391
      %v4419 = vmax.f32 %v4279, %v4390
      %v4420 = vmax.f32 %v4280, %v4389
      %v4421 = vmax.f32 %v4281, %v4388
      %v4422 = vmax.f32 %v4282, %v4387
      %v4423 = vmax.f32 %v4283, %v4386
      %v4424 = vmax.f32 %v4284, %v4385
      %v4425 = vmax.f32 %v4285, %v4384
      %v4426 = vmax.f32 %v4286, %v4383
      %v4427 = vmax.f32 %v4287, %v4382
      %v4428 = vmax.f32 %v4288, %v4381
      %v4429 = vmax.f32 %v4289, %v4380
      %v4430 = vmax.f32 %v4290, %v4379
      %v4431 = vmax.f32 %v4291, %v4378
      %v4432 = vmax.f32 %v4292, %v4377
      %v4433 = vmax.f32 %v4293, %v4376
      %v4434 = vmax.f32 %v4294, %v4375
      %v4435 = vmax.f32 %v4295, %v4374
      %v4436 = vmax.f32 %v4296, %v4373
      %v4437 = vmax.f32 %v4297, %v4372
      %v4438 = vmax.f32 %v4298, %v4371
      %v4439 = vmax.f32 %v4299, %v4370
      %v4440 = vmax.f32 %v4300, %v4369
      %v4441 = vmax.f32 %v4301, %v4368
      %v4442 = vmax.f32 %v4302, %v4367
      %v4443 = vmax.f32 %v4303, %v4366
      %v4444 = vmax.f32 %v4304, %v4365
      %v4445 = vrot.slane %v4086, 2
      %v4446 = vrot.slane %v4087, 2
      %v4447 = vrot.slane %v4088, 2
      %v4448 = vrot.slane %v4090, 2
      %v4449 = vrot.slane %v4091, 2
      %v4450 = vrot.slane %v4092, 2
      %v4451 = vrot.slane %v4094, 2
      %v4452 = vrot.slane %v4095, 2
      %v4453 = vrot.slane %v4096, 2
      %v4454 = vrot.slane %v4098, 2
      %v4455 = vrot.slane %v4099, 2
      %v4456 = vrot.slane %v4100, 2
      %v4457 = vrot.slane %v4102, 2
      %v4458 = vrot.slane %v4103, 2
      %v4459 = vrot.slane %v4104, 2
      %v4460 = vrot.slane %v4106, 2
      %v4461 = vrot.slane %v4107, 2
      %v4462 = vrot.slane %v4108, 2
      %v4463 = vrot.slane %v4110, 2
      %v4464 = vrot.slane %v4111, 2
      %v4465 = vrot.slane %v4112, 2
      %v4466 = vrot.slane %v4114, 2
      %v4467 = vrot.slane %v4115, 2
      %v4468 = vrot.slane %v4116, 2
      %v4469 = vrot.slane %v4118, 2
      %v4470 = vrot.slane %v4119, 2
      %v4471 = vrot.slane %v4120, 2
      %v4472 = vrot.slane %v4122, 2
      %v4473 = vrot.slane %v4123, 2
      %v4474 = vrot.slane %v4124, 2
      %v4475 = vrot.slane %v4126, 2
      %v4476 = vrot.slane %v4127, 2
      %v4477 = vrot.slane %v4128, 2
      %v4478 = vrot.slane %v4130, 2
      %v4479 = vrot.slane %v4131, 2
      %v4480 = vrot.slane %v4132, 2
      %v4481 = vrot.slane %v4134, 2
      %v4482 = vrot.slane %v4135, 2
      %v4483 = vrot.slane %v4136, 2
      %v4484 = vrot.slane %v4138, 2
      %v4485 = vrot.slane %v4139, 2
      %v4486 = vrot.slane %v4140, 2
      %v4487 = vrot.slane %v4142, 2
      %v4488 = vrot.slane %v4143, 2
      %v4489 = vrot.slane %v4144, 2
      %v4490 = vrot.slane %v4146, 2
      %v4491 = vrot.slane %v4147, 2
      %v4492 = vrot.slane %v4148, 2
      %v4493 = vrot.slane %v4150, 2
      %v4494 = vrot.slane %v4151, 2
      %v4495 = vrot.slane %v4152, 2
      %v4496 = vrot.slane %v4154, 2
      %v4497 = vrot.slane %v4155, 2
      %v4498 = vrot.slane %v4156, 2
      %v4499 = vrot.slane %v4158, 2
      %v4500 = vrot.slane %v4159, 2
      %v4501 = vrot.slane %v4160, 2
      %v4502 = vrot.slane %v4162, 2
      %v4503 = vrot.slane %v4163, 2
      %v4504 = vrot.slane %v4164, 2
      %v4505 = vsel %vm1724, %v4503, %v4504
      %v4506 = vsel %vm1724, %v4502, %v4503
      %v4507 = vsel %vm1724, %v4500, %v4501
      %v4508 = vsel %vm1724, %v4499, %v4500
      %v4509 = vsel %vm1724, %v4497, %v4498
      %v4510 = vsel %vm1724, %v4496, %v4497
      %v4511 = vsel %vm1724, %v4494, %v4495
      %v4512 = vsel %vm1724, %v4493, %v4494
      %v4513 = vsel %vm1724, %v4491, %v4492
      %v4514 = vsel %vm1724, %v4490, %v4491
      %v4515 = vsel %vm1724, %v4488, %v4489
      %v4516 = vsel %vm1724, %v4487, %v4488
      %v4517 = vsel %vm1724, %v4485, %v4486
      %v4518 = vsel %vm1724, %v4484, %v4485
      %v4519 = vsel %vm1724, %v4482, %v4483
      %v4520 = vsel %vm1724, %v4481, %v4482
      %v4521 = vsel %vm1724, %v4479, %v4480
      %v4522 = vsel %vm1724, %v4478, %v4479
      %v4523 = vsel %vm1724, %v4476, %v4477
      %v4524 = vsel %vm1724, %v4475, %v4476
      %v4525 = vsel %vm1724, %v4473, %v4474
      %v4526 = vsel %vm1724, %v4472, %v4473
      %v4527 = vsel %vm1724, %v4470, %v4471
      %v4528 = vsel %vm1724, %v4469, %v4470
      %v4529 = vsel %vm1724, %v4467, %v4468
      %v4530 = vsel %vm1724, %v4466, %v4467
      %v4531 = vsel %vm1724, %v4464, %v4465
      %v4532 = vsel %vm1724, %v4463, %v4464
      %v4533 = vsel %vm1724, %v4461, %v4462
      %v4534 = vsel %vm1724, %v4460, %v4461
      %v4535 = vsel %vm1724, %v4458, %v4459
      %v4536 = vsel %vm1724, %v4457, %v4458
      %v4537 = vsel %vm1724, %v4455, %v4456
      %v4538 = vsel %vm1724, %v4454, %v4455
      %v4539 = vsel %vm1724, %v4452, %v4453
      %v4540 = vsel %vm1724, %v4451, %v4452
      %v4541 = vsel %vm1724, %v4449, %v4450
      %v4542 = vsel %vm1724, %v4448, %v4449
      %v4543 = vsel %vm1724, %v4446, %v4447
      %v4544 = vsel %vm1724, %v4445, %v4446
      %v4545 = vmax.f32 %v4405, %v4544
      %v4546 = vmax.f32 %v4406, %v4543
      %v4547 = vmax.f32 %v4407, %v4542
      %v4548 = vmax.f32 %v4408, %v4541
      %v4549 = vmax.f32 %v4409, %v4540
      %v4550 = vmax.f32 %v4410, %v4539
      %v4551 = vmax.f32 %v4411, %v4538
      %v4552 = vmax.f32 %v4412, %v4537
      %v4553 = vmax.f32 %v4413, %v4536
      %v4554 = vmax.f32 %v4414, %v4535
      %v4555 = vmax.f32 %v4415, %v4534
      %v4556 = vmax.f32 %v4416, %v4533
      %v4557 = vmax.f32 %v4417, %v4532
      %v4558 = vmax.f32 %v4418, %v4531
      %v4559 = vmax.f32 %v4419, %v4530
      %v4560 = vmax.f32 %v4420, %v4529
      %v4561 = vmax.f32 %v4421, %v4528
      %v4562 = vmax.f32 %v4422, %v4527
      %v4563 = vmax.f32 %v4423, %v4526
      %v4564 = vmax.f32 %v4424, %v4525
      %v4565 = vmax.f32 %v4425, %v4524
      %v4566 = vmax.f32 %v4426, %v4523
      %v4567 = vmax.f32 %v4427, %v4522
      %v4568 = vmax.f32 %v4428, %v4521
      %v4569 = vmax.f32 %v4429, %v4520
      %v4570 = vmax.f32 %v4430, %v4519
      %v4571 = vmax.f32 %v4431, %v4518
      %v4572 = vmax.f32 %v4432, %v4517
      %v4573 = vmax.f32 %v4433, %v4516
      %v4574 = vmax.f32 %v4434, %v4515
      %v4575 = vmax.f32 %v4435, %v4514
      %v4576 = vmax.f32 %v4436, %v4513
      %v4577 = vmax.f32 %v4437, %v4512
      %v4578 = vmax.f32 %v4438, %v4511
      %v4579 = vmax.f32 %v4439, %v4510
      %v4580 = vmax.f32 %v4440, %v4509
      %v4581 = vmax.f32 %v4441, %v4508
      %v4582 = vmax.f32 %v4442, %v4507
      %v4583 = vmax.f32 %v4443, %v4506
      %v4584 = vmax.f32 %v4444, %v4505
      %v4585 = vrot.slane %v4085, 6
      %v4586 = vrot.slane %v4086, 6
      %v4587 = vrot.slane %v4087, 6
      %v4588 = vrot.slane %v4089, 6
      %v4589 = vrot.slane %v4090, 6
      %v4590 = vrot.slane %v4091, 6
      %v4591 = vrot.slane %v4093, 6
      %v4592 = vrot.slane %v4094, 6
      %v4593 = vrot.slane %v4095, 6
      %v4594 = vrot.slane %v4097, 6
      %v4595 = vrot.slane %v4098, 6
      %v4596 = vrot.slane %v4099, 6
      %v4597 = vrot.slane %v4101, 6
      %v4598 = vrot.slane %v4102, 6
      %v4599 = vrot.slane %v4103, 6
      %v4600 = vrot.slane %v4105, 6
      %v4601 = vrot.slane %v4106, 6
      %v4602 = vrot.slane %v4107, 6
      %v4603 = vrot.slane %v4109, 6
      %v4604 = vrot.slane %v4110, 6
      %v4605 = vrot.slane %v4111, 6
      %v4606 = vrot.slane %v4113, 6
      %v4607 = vrot.slane %v4114, 6
      %v4608 = vrot.slane %v4115, 6
      %v4609 = vrot.slane %v4117, 6
      %v4610 = vrot.slane %v4118, 6
      %v4611 = vrot.slane %v4119, 6
      %v4612 = vrot.slane %v4121, 6
      %v4613 = vrot.slane %v4122, 6
      %v4614 = vrot.slane %v4123, 6
      %v4615 = vrot.slane %v4125, 6
      %v4616 = vrot.slane %v4126, 6
      %v4617 = vrot.slane %v4127, 6
      %v4618 = vrot.slane %v4129, 6
      %v4619 = vrot.slane %v4130, 6
      %v4620 = vrot.slane %v4131, 6
      %v4621 = vrot.slane %v4133, 6
      %v4622 = vrot.slane %v4134, 6
      %v4623 = vrot.slane %v4135, 6
      %v4624 = vrot.slane %v4137, 6
      %v4625 = vrot.slane %v4138, 6
      %v4626 = vrot.slane %v4139, 6
      %v4627 = vrot.slane %v4141, 6
      %v4628 = vrot.slane %v4142, 6
      %v4629 = vrot.slane %v4143, 6
      %v4630 = vrot.slane %v4145, 6
      %v4631 = vrot.slane %v4146, 6
      %v4632 = vrot.slane %v4147, 6
      %v4633 = vrot.slane %v4149, 6
      %v4634 = vrot.slane %v4150, 6
      %v4635 = vrot.slane %v4151, 6
      %v4636 = vrot.slane %v4153, 6
      %v4637 = vrot.slane %v4154, 6
      %v4638 = vrot.slane %v4155, 6
      %v4639 = vrot.slane %v4157, 6
      %v4640 = vrot.slane %v4158, 6
      %v4641 = vrot.slane %v4159, 6
      %v4642 = vrot.slane %v4161, 6
      %v4643 = vrot.slane %v4162, 6
      %v4644 = vrot.slane %v4163, 6
      %v4645 = vsel %vm2068, %v4643, %v4644
      %v4646 = vsel %vm2068, %v4642, %v4643
      %v4647 = vsel %vm2068, %v4640, %v4641
      %v4648 = vsel %vm2068, %v4639, %v4640
      %v4649 = vsel %vm2068, %v4637, %v4638
      %v4650 = vsel %vm2068, %v4636, %v4637
      %v4651 = vsel %vm2068, %v4634, %v4635
      %v4652 = vsel %vm2068, %v4633, %v4634
      %v4653 = vsel %vm2068, %v4631, %v4632
      %v4654 = vsel %vm2068, %v4630, %v4631
      %v4655 = vsel %vm2068, %v4628, %v4629
      %v4656 = vsel %vm2068, %v4627, %v4628
      %v4657 = vsel %vm2068, %v4625, %v4626
      %v4658 = vsel %vm2068, %v4624, %v4625
      %v4659 = vsel %vm2068, %v4622, %v4623
      %v4660 = vsel %vm2068, %v4621, %v4622
      %v4661 = vsel %vm2068, %v4619, %v4620
      %v4662 = vsel %vm2068, %v4618, %v4619
      %v4663 = vsel %vm2068, %v4616, %v4617
      %v4664 = vsel %vm2068, %v4615, %v4616
      %v4665 = vsel %vm2068, %v4613, %v4614
      %v4666 = vsel %vm2068, %v4612, %v4613
      %v4667 = vsel %vm2068, %v4610, %v4611
      %v4668 = vsel %vm2068, %v4609, %v4610
      %v4669 = vsel %vm2068, %v4607, %v4608
      %v4670 = vsel %vm2068, %v4606, %v4607
      %v4671 = vsel %vm2068, %v4604, %v4605
      %v4672 = vsel %vm2068, %v4603, %v4604
      %v4673 = vsel %vm2068, %v4601, %v4602
      %v4674 = vsel %vm2068, %v4600, %v4601
      %v4675 = vsel %vm2068, %v4598, %v4599
      %v4676 = vsel %vm2068, %v4597, %v4598
      %v4677 = vsel %vm2068, %v4595, %v4596
      %v4678 = vsel %vm2068, %v4594, %v4595
      %v4679 = vsel %vm2068, %v4592, %v4593
      %v4680 = vsel %vm2068, %v4591, %v4592
      %v4681 = vsel %vm2068, %v4589, %v4590
      %v4682 = vsel %vm2068, %v4588, %v4589
      %v4683 = vsel %vm2068, %v4586, %v4587
      %v4684 = vsel %vm2068, %v4585, %v4586
      %v4685 = vmax.f32 %v4545, %v4684
      %v4686 = vmax.f32 %v4546, %v4683
      %v4687 = vmax.f32 %v4547, %v4682
      %v4688 = vmax.f32 %v4548, %v4681
      %v4689 = vmax.f32 %v4549, %v4680
      %v4690 = vmax.f32 %v4550, %v4679
      %v4691 = vmax.f32 %v4551, %v4678
      %v4692 = vmax.f32 %v4552, %v4677
      %v4693 = vmax.f32 %v4553, %v4676
      %v4694 = vmax.f32 %v4554, %v4675
      %v4695 = vmax.f32 %v4555, %v4674
      %v4696 = vmax.f32 %v4556, %v4673
      %v4697 = vmax.f32 %v4557, %v4672
      %v4698 = vmax.f32 %v4558, %v4671
      %v4699 = vmax.f32 %v4559, %v4670
      %v4700 = vmax.f32 %v4560, %v4669
      %v4701 = vmax.f32 %v4561, %v4668
      %v4702 = vmax.f32 %v4562, %v4667
      %v4703 = vmax.f32 %v4563, %v4666
      %v4704 = vmax.f32 %v4564, %v4665
      %v4705 = vmax.f32 %v4565, %v4664
      %v4706 = vmax.f32 %v4566, %v4663
      %v4707 = vmax.f32 %v4567, %v4662
      %v4708 = vmax.f32 %v4568, %v4661
      %v4709 = vmax.f32 %v4569, %v4660
      %v4710 = vmax.f32 %v4570, %v4659
      %v4711 = vmax.f32 %v4571, %v4658
      %v4712 = vmax.f32 %v4572, %v4657
      %v4713 = vmax.f32 %v4573, %v4656
      %v4714 = vmax.f32 %v4574, %v4655
      %v4715 = vmax.f32 %v4575, %v4654
      %v4716 = vmax.f32 %v4576, %v4653
      %v4717 = vmax.f32 %v4577, %v4652
      %v4718 = vmax.f32 %v4578, %v4651
      %v4719 = vmax.f32 %v4579, %v4650
      %v4720 = vmax.f32 %v4580, %v4649
      %v4721 = vmax.f32 %v4581, %v4648
      %v4722 = vmax.f32 %v4582, %v4647
      %v4723 = vmax.f32 %v4583, %v4646
      %v4724 = vmax.f32 %v4584, %v4645
      %v4725 = vmax.f32 %v4689, %v4691
      %v4726 = vmax.f32 %v4690, %v4692
      %v4727 = vmax.f32 %v4691, %v4693
      %v4728 = vmax.f32 %v4692, %v4694
      %v4729 = vmax.f32 %v4693, %v4695
      %v4730 = vmax.f32 %v4694, %v4696
      %v4731 = vmax.f32 %v4695, %v4697
      %v4732 = vmax.f32 %v4696, %v4698
      %v4733 = vmax.f32 %v4697, %v4699
      %v4734 = vmax.f32 %v4698, %v4700
      %v4735 = vmax.f32 %v4699, %v4701
      %v4736 = vmax.f32 %v4700, %v4702
      %v4737 = vmax.f32 %v4701, %v4703
      %v4738 = vmax.f32 %v4702, %v4704
      %v4739 = vmax.f32 %v4703, %v4705
      %v4740 = vmax.f32 %v4704, %v4706
      %v4741 = vmax.f32 %v4705, %v4707
      %v4742 = vmax.f32 %v4706, %v4708
      %v4743 = vmax.f32 %v4707, %v4709
      %v4744 = vmax.f32 %v4708, %v4710
      %v4745 = vmax.f32 %v4709, %v4711
      %v4746 = vmax.f32 %v4710, %v4712
      %v4747 = vmax.f32 %v4711, %v4713
      %v4748 = vmax.f32 %v4712, %v4714
      %v4749 = vmax.f32 %v4713, %v4715
      %v4750 = vmax.f32 %v4714, %v4716
      %v4751 = vmax.f32 %v4715, %v4717
      %v4752 = vmax.f32 %v4716, %v4718
      %v4753 = vmax.f32 %v4717, %v4719
      %v4754 = vmax.f32 %v4718, %v4720
      %v4755 = vmax.f32 %v4719, %v4721
      %v4756 = vmax.f32 %v4720, %v4722
      %v4757 = vmax.f32 %v4725, %v4687
      %v4758 = vmax.f32 %v4726, %v4688
      %v4759 = vmax.f32 %v4727, %v4689
      %v4760 = vmax.f32 %v4728, %v4690
      %v4761 = vmax.f32 %v4729, %v4691
      %v4762 = vmax.f32 %v4730, %v4692
      %v4763 = vmax.f32 %v4731, %v4693
      %v4764 = vmax.f32 %v4732, %v4694
      %v4765 = vmax.f32 %v4733, %v4695
      %v4766 = vmax.f32 %v4734, %v4696
      %v4767 = vmax.f32 %v4735, %v4697
      %v4768 = vmax.f32 %v4736, %v4698
      %v4769 = vmax.f32 %v4737, %v4699
      %v4770 = vmax.f32 %v4738, %v4700
      %v4771 = vmax.f32 %v4739, %v4701
      %v4772 = vmax.f32 %v4740, %v4702
      %v4773 = vmax.f32 %v4741, %v4703
      %v4774 = vmax.f32 %v4742, %v4704
      %v4775 = vmax.f32 %v4743, %v4705
      %v4776 = vmax.f32 %v4744, %v4706
      %v4777 = vmax.f32 %v4745, %v4707
      %v4778 = vmax.f32 %v4746, %v4708
      %v4779 = vmax.f32 %v4747, %v4709
      %v4780 = vmax.f32 %v4748, %v4710
      %v4781 = vmax.f32 %v4749, %v4711
      %v4782 = vmax.f32 %v4750, %v4712
      %v4783 = vmax.f32 %v4751, %v4713
      %v4784 = vmax.f32 %v4752, %v4714
      %v4785 = vmax.f32 %v4753, %v4715
      %v4786 = vmax.f32 %v4754, %v4716
      %v4787 = vmax.f32 %v4755, %v4717
      %v4788 = vmax.f32 %v4756, %v4718
      %v4789 = vmax.f32 %v4757, %v4693
      %v4790 = vmax.f32 %v4758, %v4694
      %v4791 = vmax.f32 %v4759, %v4695
      %v4792 = vmax.f32 %v4760, %v4696
      %v4793 = vmax.f32 %v4761, %v4697
      %v4794 = vmax.f32 %v4762, %v4698
      %v4795 = vmax.f32 %v4763, %v4699
      %v4796 = vmax.f32 %v4764, %v4700
      %v4797 = vmax.f32 %v4765, %v4701
      %v4798 = vmax.f32 %v4766, %v4702
      %v4799 = vmax.f32 %v4767, %v4703
      %v4800 = vmax.f32 %v4768, %v4704
      %v4801 = vmax.f32 %v4769, %v4705
      %v4802 = vmax.f32 %v4770, %v4706
      %v4803 = vmax.f32 %v4771, %v4707
      %v4804 = vmax.f32 %v4772, %v4708
      %v4805 = vmax.f32 %v4773, %v4709
      %v4806 = vmax.f32 %v4774, %v4710
      %v4807 = vmax.f32 %v4775, %v4711
      %v4808 = vmax.f32 %v4776, %v4712
      %v4809 = vmax.f32 %v4777, %v4713
      %v4810 = vmax.f32 %v4778, %v4714
      %v4811 = vmax.f32 %v4779, %v4715
      %v4812 = vmax.f32 %v4780, %v4716
      %v4813 = vmax.f32 %v4781, %v4717
      %v4814 = vmax.f32 %v4782, %v4718
      %v4815 = vmax.f32 %v4783, %v4719
      %v4816 = vmax.f32 %v4784, %v4720
      %v4817 = vmax.f32 %v4785, %v4721
      %v4818 = vmax.f32 %v4786, %v4722
      %v4819 = vmax.f32 %v4787, %v4723
      %v4820 = vmax.f32 %v4788, %v4724
      %v4821 = vmax.f32 %v4789, %v4685
      %v4822 = vmax.f32 %v4790, %v4686
      %v4823 = vmax.f32 %v4791, %v4687
      %v4824 = vmax.f32 %v4792, %v4688
      %v4825 = vmax.f32 %v4793, %v4689
      %v4826 = vmax.f32 %v4794, %v4690
      %v4827 = vmax.f32 %v4795, %v4691
      %v4828 = vmax.f32 %v4796, %v4692
      %v4829 = vmax.f32 %v4797, %v4693
      %v4830 = vmax.f32 %v4798, %v4694
      %v4831 = vmax.f32 %v4799, %v4695
      %v4832 = vmax.f32 %v4800, %v4696
      %v4833 = vmax.f32 %v4801, %v4697
      %v4834 = vmax.f32 %v4802, %v4698
      %v4835 = vmax.f32 %v4803, %v4699
      %v4836 = vmax.f32 %v4804, %v4700
      %v4837 = vmax.f32 %v4805, %v4701
      %v4838 = vmax.f32 %v4806, %v4702
      %v4839 = vmax.f32 %v4807, %v4703
      %v4840 = vmax.f32 %v4808, %v4704
      %v4841 = vmax.f32 %v4809, %v4705
      %v4842 = vmax.f32 %v4810, %v4706
      %v4843 = vmax.f32 %v4811, %v4707
      %v4844 = vmax.f32 %v4812, %v4708
      %v4845 = vmax.f32 %v4813, %v4709
      %v4846 = vmax.f32 %v4814, %v4710
      %v4847 = vmax.f32 %v4815, %v4711
      %v4848 = vmax.f32 %v4816, %v4712
      %v4849 = vmax.f32 %v4817, %v4713
      %v4850 = vmax.f32 %v4818, %v4714
      %v4851 = vmax.f32 %v4819, %v4715
      %v4852 = vmax.f32 %v4820, %v4716
      %v4853 = vpack.c.bf16 %v610, %v609
      %v4854 = vpack.c.bf16 %v612, %v611
      %v4855 = vpack.c.bf16 %v614, %v613
      %v4856 = vpack.c.bf16 %v616, %v615
      %v4857 = vpack.c.bf16 %v618, %v617
      %v4858 = vpack.c.bf16 %v620, %v619
      %v4859 = vpack.c.bf16 %v622, %v621
      %v4860 = vpack.c.bf16 %v624, %v623
      %v4861 = vpack.c.bf16 %v626, %v625
      %v4862 = vpack.c.bf16 %v628, %v627
      %v4863 = vpack.c.bf16 %v630, %v629
      %v4864 = vpack.c.bf16 %v632, %v631
      %v4865 = vpack.c.bf16 %v634, %v633
      %v4866 = vpack.c.bf16 %v636, %v635
      %v4867 = vpack.c.bf16 %v638, %v637
      %v4868 = vpack.c.bf16 %v640, %v639
      %v4869 = vld [vmem:[%s3] sm:$0x1]
      %v4870 = vpack.c.bf16 %v2610, %v2609
      %v4871 = vpack.c.bf16 %v2614, %v2613
      %v4872 = vpack.c.bf16 %v2618, %v2617
      %v4873 = vpack.c.bf16 %v2622, %v2621
      %v4874 = vpack.c.bf16 %v2626, %v2625
      %v4875 = vpack.c.bf16 %v2630, %v2629
      %v4876 = vpack.c.bf16 %v2634, %v2633
      %v4877 = vpack.c.bf16 %v2638, %v2637
      %v4878 = vpack.c.bf16 %v2642, %v2641
      %v4879 = vpack.c.bf16 %v2646, %v2645
      %v4880 = vpack.c.bf16 %v2650, %v2649
      %v4881 = vpack.c.bf16 %v2654, %v2653
      %v4882 = vpack.c.bf16 %v2658, %v2657
      %v4883 = vpack.c.bf16 %v2662, %v2661
      %v4884 = vpack.c.bf16 %v2666, %v2665
      %v4885 = vpack.c.bf16 %v2670, %v2669
      %v4886 = vld [vmem:[%s4] sm:$0x1]
      %v4888 = vsel %vm641, %v4870, 0
      %v4891 = vsel %vm641, %v4871, 0
      %v4894 = vsel %vm641, %v4872, 0
      %v4897 = vsel %vm641, %v4873, 0
      %v4900 = vsel %vm641, %v4874, 0
      %v4903 = vsel %vm641, %v4875, 0
      %v4906 = vsel %vm641, %v4876, 0
      %v4909 = vsel %vm641, %v4877, 0
      %v4912 = vsel %vm641, %v4878, 0
      %v4915 = vsel %vm641, %v4879, 0
      %v4918 = vsel %vm641, %v4880, 0
      %v4921 = vsel %vm641, %v4881, 0
      %v4924 = vsel %vm641, %v4882, 0
      %v4927 = vsel %vm641, %v4883, 0
      %v4930 = vsel %vm641, %v4884, 0
      %v4933 = vsel %vm641, %v4885, 0
      %vm4935 = vcmask 1040384
      %v4937 = vsel %vm4935, %v4886, 0
      %4939 = vmatprep.subr.bf16.mxu0 0
      %4940 = vmatpush1.bf16.msra.mxu0 %v4937
      %4941 = vmatprep.subr.bf16.mxu0 0
      %4942 = vmatpush1.bf16.msra.mxu0 0
      %4943 = vmatprep.subr.bf16.mxu0 0
      %4944 = vmatpush1.bf16.msra.mxu0 0
      %4945 = vmatprep.subr.bf16.mxu0 0
      %4946 = vmatpush1.bf16.msra.mxu0 0
      %4947 = vmatprep.subr.bf16.mxu0 0
      %4948 = vmatpush1.bf16.msra.mxu0 0
      %4949 = vmatprep.subr.bf16.mxu0 0
      %4950 = vmatpush1.bf16.msra.mxu0 0
      %4951 = vmatprep.subr.bf16.mxu0 0
      %4952 = vmatpush1.bf16.msra.mxu0 0
      %4953 = vmatprep.subr.bf16.mxu0 0
      %4954 = vmatpush1.bf16.msra.mxu0 0
      %4955 = vmatprep.subr.bf16.mxu0 0
      %4956 = vmatpush1.bf16.msra.mxu0 0
      %4957 = vmatprep.subr.bf16.mxu0 0
      %4958 = vmatpush1.bf16.msra.mxu0 0
      %4959 = vmatprep.subr.bf16.mxu0 0
      %4960 = vmatpush1.bf16.msra.mxu0 0
      %4961 = vmatprep.subr.bf16.mxu0 0
      %4962 = vmatpush1.bf16.msra.mxu0 0
      %4963 = vmatprep.subr.bf16.mxu0 0
      %4964 = vmatpush1.bf16.msra.mxu0 0
      %4965 = vmatprep.subr.bf16.mxu0 0
      %4966 = vmatpush1.bf16.msra.mxu0 0
      %4967 = vmatprep.subr.bf16.mxu0 0
      %4968 = vmatpush1.bf16.msra.mxu0 0
      %4969 = vmatprep.subr.bf16.mxu0 0
      %4970 = vmatpush1.bf16.msra.mxu0 0
      %4971 = vmatprep.mubr.bf16.mxu0 0
      %4972 = vmatmul.mubr.bf16.gmra.mrb[0].mxu0 %v4888
      %v4973 = vpop.f32.mrb[0].mxu0
      %v4974 = vadd.f32 0.0, %v4973
      %v4975 = vpop.f32.mrb[0].mxu0
      %v4976 = vpop.f32.mrb[0].mxu0
      %v4977 = vadd.f32 0.0, %v4976
      %v4978 = vpop.f32.mrb[0].mxu0
      %4979 = vmatprep.mubr.bf16.mxu0 0
      %4980 = vmatmul.mubr.bf16.gmra.mrb[0].mxu0 %v4891
      %v4981 = vpop.f32.mrb[0].mxu0
      %v4982 = vadd.f32 0.0, %v4981
      %v4983 = vpop.f32.mrb[0].mxu0
      %v4984 = vpop.f32.mrb[0].mxu0
      %v4985 = vadd.f32 0.0, %v4984
      %v4986 = vpop.f32.mrb[0].mxu0
      %4987 = vmatprep.mubr.bf16.mxu0 0
      %4988 = vmatmul.mubr.bf16.gmra.mrb[0].mxu0 %v4894
      %v4989 = vpop.f32.mrb[0].mxu0
      %v4990 = vadd.f32 0.0, %v4989
      %v4991 = vpop.f32.mrb[0].mxu0
      %v4992 = vpop.f32.mrb[0].mxu0
      %v4993 = vadd.f32 0.0, %v4992
      %v4994 = vpop.f32.mrb[0].mxu0
      %4995 = vmatprep.mubr.bf16.mxu0 0
      %4996 = vmatmul.mubr.bf16.gmra.mrb[0].mxu0 %v4897
      %v4997 = vpop.f32.mrb[0].mxu0
      %v4998 = vadd.f32 0.0, %v4997
      %v4999 = vpop.f32.mrb[0].mxu0
      %v5000 = vpop.f32.mrb[0].mxu0
      %v5001 = vadd.f32 0.0, %v5000
      %v5002 = vpop.f32.mrb[0].mxu0
      %5003 = vmatprep.mubr.bf16.mxu0 0
      %5004 = vmatmul.mubr.bf16.gmra.mrb[0].mxu0 %v4900
      %v5005 = vpop.f32.mrb[0].mxu0
      %v5006 = vadd.f32 0.0, %v5005
      %v5007 = vpop.f32.mrb[0].mxu0
      %v5008 = vpop.f32.mrb[0].mxu0
      %v5009 = vadd.f32 0.0, %v5008
      %v5010 = vpop.f32.mrb[0].mxu0
      %5011 = vmatprep.mubr.bf16.mxu0 0
      %5012 = vmatmul.mubr.bf16.gmra.mrb[0].mxu0 %v4903
      %v5013 = vpop.f32.mrb[0].mxu0
      %v5014 = vadd.f32 0.0, %v5013
      %v5015 = vpop.f32.mrb[0].mxu0
      %v5016 = vpop.f32.mrb[0].mxu0
      %v5017 = vadd.f32 0.0, %v5016
      %v5018 = vpop.f32.mrb[0].mxu0
      %5019 = vmatprep.mubr.bf16.mxu0 0
      %5020 = vmatmul.mubr.bf16.gmra.mrb[0].mxu0 %v4906
      %v5021 = vpop.f32.mrb[0].mxu0
      %v5022 = vadd.f32 0.0, %v5021
      %v5023 = vpop.f32.mrb[0].mxu0
      %v5024 = vpop.f32.mrb[0].mxu0
      %v5025 = vadd.f32 0.0, %v5024
      %v5026 = vpop.f32.mrb[0].mxu0
      %5027 = vmatprep.mubr.bf16.mxu0 0
      %5028 = vmatmul.mubr.bf16.gmra.mrb[0].mxu0 %v4909
      %v5029 = vpop.f32.mrb[0].mxu0
      %v5030 = vadd.f32 0.0, %v5029
      %v5031 = vpop.f32.mrb[0].mxu0
      %v5032 = vpop.f32.mrb[0].mxu0
      %v5033 = vadd.f32 0.0, %v5032
      %v5034 = vpop.f32.mrb[0].mxu0
      %5035 = vmatprep.mubr.bf16.mxu0 0
      %5036 = vmatmul.mubr.bf16.gmra.mrb[0].mxu0 %v4912
      %v5037 = vpop.f32.mrb[0].mxu0
      %v5038 = vadd.f32 0.0, %v5037
      %v5039 = vpop.f32.mrb[0].mxu0
      %v5040 = vpop.f32.mrb[0].mxu0
      %v5041 = vadd.f32 0.0, %v5040
      %v5042 = vpop.f32.mrb[0].mxu0
      %5043 = vmatprep.mubr.bf16.mxu0 0
      %5044 = vmatmul.mubr.bf16.gmra.mrb[0].mxu0 %v4915
      %v5045 = vpop.f32.mrb[0].mxu0
      %v5046 = vadd.f32 0.0, %v5045
      %v5047 = vpop.f32.mrb[0].mxu0
      %v5048 = vpop.f32.mrb[0].mxu0
      %v5049 = vadd.f32 0.0, %v5048
      %v5050 = vpop.f32.mrb[0].mxu0
      %5051 = vmatprep.mubr.bf16.mxu0 0
      %5052 = vmatmul.mubr.bf16.gmra.mrb[0].mxu0 %v4918
      %v5053 = vpop.f32.mrb[0].mxu0
      %v5054 = vadd.f32 0.0, %v5053
      %v5055 = vpop.f32.mrb[0].mxu0
      %v5056 = vpop.f32.mrb[0].mxu0
      %v5057 = vadd.f32 0.0, %v5056
      %v5058 = vpop.f32.mrb[0].mxu0
      %5059 = vmatprep.mubr.bf16.mxu0 0
      %5060 = vmatmul.mubr.bf16.gmra.mrb[0].mxu0 %v4921
      %v5061 = vpop.f32.mrb[0].mxu0
      %v5062 = vadd.f32 0.0, %v5061
      %v5063 = vpop.f32.mrb[0].mxu0
      %v5064 = vpop.f32.mrb[0].mxu0
      %v5065 = vadd.f32 0.0, %v5064
      %v5066 = vpop.f32.mrb[0].mxu0
      %5067 = vmatprep.mubr.bf16.mxu0 0
      %5068 = vmatmul.mubr.bf16.gmra.mrb[0].mxu0 %v4924
      %v5069 = vpop.f32.mrb[0].mxu0
      %v5070 = vadd.f32 0.0, %v5069
      %v5071 = vpop.f32.mrb[0].mxu0
      %v5072 = vpop.f32.mrb[0].mxu0
      %v5073 = vadd.f32 0.0, %v5072
      %v5074 = vpop.f32.mrb[0].mxu0
      %5075 = vmatprep.mubr.bf16.mxu0 0
      %5076 = vmatmul.mubr.bf16.gmra.mrb[0].mxu0 %v4927
      %v5077 = vpop.f32.mrb[0].mxu0
      %v5078 = vadd.f32 0.0, %v5077
      %v5079 = vpop.f32.mrb[0].mxu0
      %v5080 = vpop.f32.mrb[0].mxu0
      %v5081 = vadd.f32 0.0, %v5080
      %v5082 = vpop.f32.mrb[0].mxu0
      %5083 = vmatprep.mubr.bf16.mxu0 0
      %5084 = vmatmul.mubr.bf16.gmra.mrb[0].mxu0 %v4930
      %v5085 = vpop.f32.mrb[0].mxu0
      %v5086 = vadd.f32 0.0, %v5085
      %v5087 = vpop.f32.mrb[0].mxu0
      %v5088 = vpop.f32.mrb[0].mxu0
      %v5089 = vadd.f32 0.0, %v5088
      %v5090 = vpop.f32.mrb[0].mxu0
      %5091 = vmatprep.mubr.bf16.mxu0 0
      %5092 = vmatmul.mubr.bf16.gmra.mrb[0].mxu0 %v4933
      %v5093 = vpop.f32.mrb[0].mxu0
      %v5094 = vadd.f32 0.0, %v5093
      %v5095 = vpop.f32.mrb[0].mxu0
      %v5096 = vpop.f32.mrb[0].mxu0
      %v5097 = vadd.f32 0.0, %v5096
      %v5098 = vpop.f32.mrb[0].mxu0
      %5099 = vdwg.mxu0
      %v5101 = vsel %vm641, %v4853, 0
      %v5104 = vsel %vm641, %v4854, 0
      %v5107 = vsel %vm641, %v4855, 0
      %v5110 = vsel %vm641, %v4856, 0
      %v5113 = vsel %vm641, %v4857, 0
      %v5116 = vsel %vm641, %v4858, 0
      %v5119 = vsel %vm641, %v4859, 0
      %v5122 = vsel %vm641, %v4860, 0
      %v5125 = vsel %vm641, %v4861, 0
      %v5128 = vsel %vm641, %v4862, 0
      %v5131 = vsel %vm641, %v4863, 0
      %v5134 = vsel %vm641, %v4864, 0
      %v5137 = vsel %vm641, %v4865, 0
      %v5140 = vsel %vm641, %v4866, 0
      %v5143 = vsel %vm641, %v4867, 0
      %v5146 = vsel %vm641, %v4868, 0
      %v5149 = vsel %vm4935, %v4869, 0
      %5151 = vmatprep.subr.bf16.mxu0 0
      %5152 = vmatpush1.bf16.msra.mxu0 %v5149
      %5153 = vmatprep.subr.bf16.mxu0 0
      %5154 = vmatpush1.bf16.msra.mxu0 0
      %5155 = vmatprep.subr.bf16.mxu0 0
      %5156 = vmatpush1.bf16.msra.mxu0 0
      %5157 = vmatprep.subr.bf16.mxu0 0
      %5158 = vmatpush1.bf16.msra.mxu0 0
      %5159 = vmatprep.subr.bf16.mxu0 0
      %5160 = vmatpush1.bf16.msra.mxu0 0
      %5161 = vmatprep.subr.bf16.mxu0 0
      %5162 = vmatpush1.bf16.msra.mxu0 0
      %5163 = vmatprep.subr.bf16.mxu0 0
      %5164 = vmatpush1.bf16.msra.mxu0 0
      %5165 = vmatprep.subr.bf16.mxu0 0
      %5166 = vmatpush1.bf16.msra.mxu0 0
      %5167 = vmatprep.subr.bf16.mxu0 0
      %5168 = vmatpush1.bf16.msra.mxu0 0
      %5169 = vmatprep.subr.bf16.mxu0 0
      %5170 = vmatpush1.bf16.msra.mxu0 0
      %5171 = vmatprep.subr.bf16.mxu0 0
      %5172 = vmatpush1.bf16.msra.mxu0 0
      %5173 = vmatprep.subr.bf16.mxu0 0
      %5174 = vmatpush1.bf16.msra.mxu0 0
      %5175 = vmatprep.subr.bf16.mxu0 0
      %5176 = vmatpush1.bf16.msra.mxu0 0
      %5177 = vmatprep.subr.bf16.mxu0 0
      %5178 = vmatpush1.bf16.msra.mxu0 0
      %5179 = vmatprep.subr.bf16.mxu0 0
      %5180 = vmatpush1.bf16.msra.mxu0 0
      %5181 = vmatprep.subr.bf16.mxu0 0
      %5182 = vmatpush1.bf16.msra.mxu0 0
      %5183 = vmatprep.mubr.bf16.mxu0 0
      %5184 = vmatmul.mubr.bf16.gmra.mrb[0].mxu0 %v5101
      %v5185 = vpop.f32.mrb[0].mxu0
      %v5186 = vadd.f32 %v4974, %v5185
      %v5187 = vpop.f32.mrb[0].mxu0
      %v5188 = vpop.f32.mrb[0].mxu0
      %v5189 = vadd.f32 %v4977, %v5188
      %v5190 = vpop.f32.mrb[0].mxu0
      %5191 = vmatprep.mubr.bf16.mxu0 0
      %5192 = vmatmul.mubr.bf16.gmra.mrb[0].mxu0 %v5104
      %v5193 = vpop.f32.mrb[0].mxu0
      %v5194 = vadd.f32 %v4982, %v5193
      %v5195 = vpop.f32.mrb[0].mxu0
      %v5196 = vpop.f32.mrb[0].mxu0
      %v5197 = vadd.f32 %v4985, %v5196
      %v5198 = vpop.f32.mrb[0].mxu0
      %5199 = vmatprep.mubr.bf16.mxu0 0
      %5200 = vmatmul.mubr.bf16.gmra.mrb[0].mxu0 %v5107
      %v5201 = vpop.f32.mrb[0].mxu0
      %v5202 = vadd.f32 %v4990, %v5201
      %v5203 = vpop.f32.mrb[0].mxu0
      %v5204 = vpop.f32.mrb[0].mxu0
      %v5205 = vadd.f32 %v4993, %v5204
      %v5206 = vpop.f32.mrb[0].mxu0
      %5207 = vmatprep.mubr.bf16.mxu0 0
      %5208 = vmatmul.mubr.bf16.gmra.mrb[0].mxu0 %v5110
      %v5209 = vpop.f32.mrb[0].mxu0
      %v5210 = vadd.f32 %v4998, %v5209
      %v5211 = vpop.f32.mrb[0].mxu0
      %v5212 = vpop.f32.mrb[0].mxu0
      %v5213 = vadd.f32 %v5001, %v5212
      %v5214 = vpop.f32.mrb[0].mxu0
      %5215 = vmatprep.mubr.bf16.mxu0 0
      %5216 = vmatmul.mubr.bf16.gmra.mrb[0].mxu0 %v5113
      %v5217 = vpop.f32.mrb[0].mxu0
      %v5218 = vadd.f32 %v5006, %v5217
      %v5219 = vpop.f32.mrb[0].mxu0
      %v5220 = vpop.f32.mrb[0].mxu0
      %v5221 = vadd.f32 %v5009, %v5220
      %v5222 = vpop.f32.mrb[0].mxu0
      %5223 = vmatprep.mubr.bf16.mxu0 0
      %5224 = vmatmul.mubr.bf16.gmra.mrb[0].mxu0 %v5116
      %v5225 = vpop.f32.mrb[0].mxu0
      %v5226 = vadd.f32 %v5014, %v5225
      %v5227 = vpop.f32.mrb[0].mxu0
      %v5228 = vpop.f32.mrb[0].mxu0
      %v5229 = vadd.f32 %v5017, %v5228
      %v5230 = vpop.f32.mrb[0].mxu0
      %5231 = vmatprep.mubr.bf16.mxu0 0
      %5232 = vmatmul.mubr.bf16.gmra.mrb[0].mxu0 %v5119
      %v5233 = vpop.f32.mrb[0].mxu0
      %v5234 = vadd.f32 %v5022, %v5233
      %v5235 = vpop.f32.mrb[0].mxu0
      %v5236 = vpop.f32.mrb[0].mxu0
      %v5237 = vadd.f32 %v5025, %v5236
      %v5238 = vpop.f32.mrb[0].mxu0
      %5239 = vmatprep.mubr.bf16.mxu0 0
      %5240 = vmatmul.mubr.bf16.gmra.mrb[0].mxu0 %v5122
      %v5241 = vpop.f32.mrb[0].mxu0
      %v5242 = vadd.f32 %v5030, %v5241
      %v5243 = vpop.f32.mrb[0].mxu0
      %v5244 = vpop.f32.mrb[0].mxu0
      %v5245 = vadd.f32 %v5033, %v5244
      %v5246 = vpop.f32.mrb[0].mxu0
      %5247 = vmatprep.mubr.bf16.mxu0 0
      %5248 = vmatmul.mubr.bf16.gmra.mrb[0].mxu0 %v5125
      %v5249 = vpop.f32.mrb[0].mxu0
      %v5250 = vadd.f32 %v5038, %v5249
      %v5251 = vpop.f32.mrb[0].mxu0
      %v5252 = vpop.f32.mrb[0].mxu0
      %v5253 = vadd.f32 %v5041, %v5252
      %v5254 = vpop.f32.mrb[0].mxu0
      %5255 = vmatprep.mubr.bf16.mxu0 0
      %5256 = vmatmul.mubr.bf16.gmra.mrb[0].mxu0 %v5128
      %v5257 = vpop.f32.mrb[0].mxu0
      %v5258 = vadd.f32 %v5046, %v5257
      %v5259 = vpop.f32.mrb[0].mxu0
      %v5260 = vpop.f32.mrb[0].mxu0
      %v5261 = vadd.f32 %v5049, %v5260
      %v5262 = vpop.f32.mrb[0].mxu0
      %5263 = vmatprep.mubr.bf16.mxu0 0
      %5264 = vmatmul.mubr.bf16.gmra.mrb[0].mxu0 %v5131
      %v5265 = vpop.f32.mrb[0].mxu0
      %v5266 = vadd.f32 %v5054, %v5265
      %v5267 = vpop.f32.mrb[0].mxu0
      %v5268 = vpop.f32.mrb[0].mxu0
      %v5269 = vadd.f32 %v5057, %v5268
      %v5270 = vpop.f32.mrb[0].mxu0
      %5271 = vmatprep.mubr.bf16.mxu0 0
      %5272 = vmatmul.mubr.bf16.gmra.mrb[0].mxu0 %v5134
      %v5273 = vpop.f32.mrb[0].mxu0
      %v5274 = vadd.f32 %v5062, %v5273
      %v5275 = vpop.f32.mrb[0].mxu0
      %v5276 = vpop.f32.mrb[0].mxu0
      %v5277 = vadd.f32 %v5065, %v5276
      %v5278 = vpop.f32.mrb[0].mxu0
      %5279 = vmatprep.mubr.bf16.mxu0 0
      %5280 = vmatmul.mubr.bf16.gmra.mrb[0].mxu0 %v5137
      %v5281 = vpop.f32.mrb[0].mxu0
      %v5282 = vadd.f32 %v5070, %v5281
      %v5283 = vpop.f32.mrb[0].mxu0
      %v5284 = vpop.f32.mrb[0].mxu0
      %v5285 = vadd.f32 %v5073, %v5284
      %v5286 = vpop.f32.mrb[0].mxu0
      %5287 = vmatprep.mubr.bf16.mxu0 0
      %5288 = vmatmul.mubr.bf16.gmra.mrb[0].mxu0 %v5140
      %v5289 = vpop.f32.mrb[0].mxu0
      %v5290 = vadd.f32 %v5078, %v5289
      %v5291 = vpop.f32.mrb[0].mxu0
      %v5292 = vpop.f32.mrb[0].mxu0
      %v5293 = vadd.f32 %v5081, %v5292
      %v5294 = vpop.f32.mrb[0].mxu0
      %5295 = vmatprep.mubr.bf16.mxu0 0
      %5296 = vmatmul.mubr.bf16.gmra.mrb[0].mxu0 %v5143
      %v5297 = vpop.f32.mrb[0].mxu0
      %v5298 = vadd.f32 %v5086, %v5297
      %v5299 = vpop.f32.mrb[0].mxu0
      %v5300 = vpop.f32.mrb[0].mxu0
      %v5301 = vadd.f32 %v5089, %v5300
      %v5302 = vpop.f32.mrb[0].mxu0
      %5303 = vmatprep.mubr.bf16.mxu0 0
      %5304 = vmatmul.mubr.bf16.gmra.mrb[0].mxu0 %v5146
      %v5305 = vpop.f32.mrb[0].mxu0
      %v5306 = vadd.f32 %v5094, %v5305
      %v5307 = vpop.f32.mrb[0].mxu0
      %v5308 = vpop.f32.mrb[0].mxu0
      %v5309 = vadd.f32 %v5097, %v5308
      %v5310 = vpop.f32.mrb[0].mxu0
      %5311 = vdwg.mxu0
      %v5312 = vpack.c.bf16 %v4095, %v4094
      %v5313 = vpack.c.bf16 %v4099, %v4098
      %v5314 = vpack.c.bf16 %v4103, %v4102
      %v5315 = vpack.c.bf16 %v4107, %v4106
      %v5316 = vpack.c.bf16 %v4111, %v4110
      %v5317 = vpack.c.bf16 %v4115, %v4114
      %v5318 = vpack.c.bf16 %v4119, %v4118
      %v5319 = vpack.c.bf16 %v4123, %v4122
      %v5320 = vpack.c.bf16 %v4127, %v4126
      %v5321 = vpack.c.bf16 %v4131, %v4130
      %v5322 = vpack.c.bf16 %v4135, %v4134
      %v5323 = vpack.c.bf16 %v4139, %v4138
      %v5324 = vpack.c.bf16 %v4143, %v4142
      %v5325 = vpack.c.bf16 %v4147, %v4146
      %v5326 = vpack.c.bf16 %v4151, %v4150
      %v5327 = vpack.c.bf16 %v4155, %v4154
      %v5328 = vld [vmem:[%s5] sm:$0x1]
      %v5330 = vsel %vm641, %v5312, 0
      %v5333 = vsel %vm641, %v5313, 0
      %v5336 = vsel %vm641, %v5314, 0
      %v5339 = vsel %vm641, %v5315, 0
      %v5342 = vsel %vm641, %v5316, 0
      %v5345 = vsel %vm641, %v5317, 0
      %v5348 = vsel %vm641, %v5318, 0
      %v5351 = vsel %vm641, %v5319, 0
      %v5354 = vsel %vm641, %v5320, 0
      %v5357 = vsel %vm641, %v5321, 0
      %v5360 = vsel %vm641, %v5322, 0
      %v5363 = vsel %vm641, %v5323, 0
      %v5366 = vsel %vm641, %v5324, 0
      %v5369 = vsel %vm641, %v5325, 0
      %v5372 = vsel %vm641, %v5326, 0
      %v5375 = vsel %vm641, %v5327, 0
      %v5378 = vsel %vm4935, %v5328, 0
      %5380 = vmatprep.subr.bf16.mxu0 0
      %5381 = vmatpush1.bf16.msra.mxu0 %v5378
      %5382 = vmatprep.subr.bf16.mxu0 0
      %5383 = vmatpush1.bf16.msra.mxu0 0
      %5384 = vmatprep.subr.bf16.mxu0 0
      %5385 = vmatpush1.bf16.msra.mxu0 0
      %5386 = vmatprep.subr.bf16.mxu0 0
      %5387 = vmatpush1.bf16.msra.mxu0 0
      %5388 = vmatprep.subr.bf16.mxu0 0
      %5389 = vmatpush1.bf16.msra.mxu0 0
      %5390 = vmatprep.subr.bf16.mxu0 0
      %5391 = vmatpush1.bf16.msra.mxu0 0
      %5392 = vmatprep.subr.bf16.mxu0 0
      %5393 = vmatpush1.bf16.msra.mxu0 0
      %5394 = vmatprep.subr.bf16.mxu0 0
      %5395 = vmatpush1.bf16.msra.mxu0 0
      %5396 = vmatprep.subr.bf16.mxu0 0
      %5397 = vmatpush1.bf16.msra.mxu0 0
      %5398 = vmatprep.subr.bf16.mxu0 0
      %5399 = vmatpush1.bf16.msra.mxu0 0
      %5400 = vmatprep.subr.bf16.mxu0 0
      %5401 = vmatpush1.bf16.msra.mxu0 0
      %5402 = vmatprep.subr.bf16.mxu0 0
      %5403 = vmatpush1.bf16.msra.mxu0 0
      %5404 = vmatprep.subr.bf16.mxu0 0
      %5405 = vmatpush1.bf16.msra.mxu0 0
      %5406 = vmatprep.subr.bf16.mxu0 0
      %5407 = vmatpush1.bf16.msra.mxu0 0
      %5408 = vmatprep.subr.bf16.mxu0 0
      %5409 = vmatpush1.bf16.msra.mxu0 0
      %5410 = vmatprep.subr.bf16.mxu0 0
      %5411 = vmatpush1.bf16.msra.mxu0 0
      %5412 = vmatprep.mubr.bf16.mxu0 0
      %5413 = vmatmul.mubr.bf16.gmra.mrb[0].mxu0 %v5330
      %v5414 = vpop.f32.mrb[0].mxu0
      %v5415 = vadd.f32 0.0, %v5414
      %v5416 = vpop.f32.mrb[0].mxu0
      %v5417 = vpop.f32.mrb[0].mxu0
      %v5418 = vadd.f32 0.0, %v5417
      %v5419 = vpop.f32.mrb[0].mxu0
      %5420 = vmatprep.mubr.bf16.mxu0 0
      %5421 = vmatmul.mubr.bf16.gmra.mrb[0].mxu0 %v5333
      %v5422 = vpop.f32.mrb[0].mxu0
      %v5423 = vadd.f32 0.0, %v5422
      %v5424 = vpop.f32.mrb[0].mxu0
      %v5425 = vpop.f32.mrb[0].mxu0
      %v5426 = vadd.f32 0.0, %v5425
      %v5427 = vpop.f32.mrb[0].mxu0
      %5428 = vmatprep.mubr.bf16.mxu0 0
      %5429 = vmatmul.mubr.bf16.gmra.mrb[0].mxu0 %v5336
      %v5430 = vpop.f32.mrb[0].mxu0
      %v5431 = vadd.f32 0.0, %v5430
      %v5432 = vpop.f32.mrb[0].mxu0
      %v5433 = vpop.f32.mrb[0].mxu0
      %v5434 = vadd.f32 0.0, %v5433
      %v5435 = vpop.f32.mrb[0].mxu0
      %5436 = vmatprep.mubr.bf16.mxu0 0
      %5437 = vmatmul.mubr.bf16.gmra.mrb[0].mxu0 %v5339
      %v5438 = vpop.f32.mrb[0].mxu0
      %v5439 = vadd.f32 0.0, %v5438
      %v5440 = vpop.f32.mrb[0].mxu0
      %v5441 = vpop.f32.mrb[0].mxu0
      %v5442 = vadd.f32 0.0, %v5441
      %v5443 = vpop.f32.mrb[0].mxu0
      %5444 = vmatprep.mubr.bf16.mxu0 0
      %5445 = vmatmul.mubr.bf16.gmra.mrb[0].mxu0 %v5342
      %v5446 = vpop.f32.mrb[0].mxu0
      %v5447 = vadd.f32 0.0, %v5446
      %v5448 = vpop.f32.mrb[0].mxu0
      %v5449 = vpop.f32.mrb[0].mxu0
      %v5450 = vadd.f32 0.0, %v5449
      %v5451 = vpop.f32.mrb[0].mxu0
      %5452 = vmatprep.mubr.bf16.mxu0 0
      %5453 = vmatmul.mubr.bf16.gmra.mrb[0].mxu0 %v5345
      %v5454 = vpop.f32.mrb[0].mxu0
      %v5455 = vadd.f32 0.0, %v5454
      %v5456 = vpop.f32.mrb[0].mxu0
      %v5457 = vpop.f32.mrb[0].mxu0
      %v5458 = vadd.f32 0.0, %v5457
      %v5459 = vpop.f32.mrb[0].mxu0
      %5460 = vmatprep.mubr.bf16.mxu0 0
      %5461 = vmatmul.mubr.bf16.gmra.mrb[0].mxu0 %v5348
      %v5462 = vpop.f32.mrb[0].mxu0
      %v5463 = vadd.f32 0.0, %v5462
      %v5464 = vpop.f32.mrb[0].mxu0
      %v5465 = vpop.f32.mrb[0].mxu0
      %v5466 = vadd.f32 0.0, %v5465
      %v5467 = vpop.f32.mrb[0].mxu0
      %5468 = vmatprep.mubr.bf16.mxu0 0
      %5469 = vmatmul.mubr.bf16.gmra.mrb[0].mxu0 %v5351
      %v5470 = vpop.f32.mrb[0].mxu0
      %v5471 = vadd.f32 0.0, %v5470
      %v5472 = vpop.f32.mrb[0].mxu0
      %v5473 = vpop.f32.mrb[0].mxu0
      %v5474 = vadd.f32 0.0, %v5473
      %v5475 = vpop.f32.mrb[0].mxu0
      %5476 = vmatprep.mubr.bf16.mxu0 0
      %5477 = vmatmul.mubr.bf16.gmra.mrb[0].mxu0 %v5354
      %v5478 = vpop.f32.mrb[0].mxu0
      %v5479 = vadd.f32 0.0, %v5478
      %v5480 = vpop.f32.mrb[0].mxu0
      %v5481 = vpop.f32.mrb[0].mxu0
      %v5482 = vadd.f32 0.0, %v5481
      %v5483 = vpop.f32.mrb[0].mxu0
      %5484 = vmatprep.mubr.bf16.mxu0 0
      %5485 = vmatmul.mubr.bf16.gmra.mrb[0].mxu0 %v5357
      %v5486 = vpop.f32.mrb[0].mxu0
      %v5487 = vadd.f32 0.0, %v5486
      %v5488 = vpop.f32.mrb[0].mxu0
      %v5489 = vpop.f32.mrb[0].mxu0
      %v5490 = vadd.f32 0.0, %v5489
      %v5491 = vpop.f32.mrb[0].mxu0
      %5492 = vmatprep.mubr.bf16.mxu0 0
      %5493 = vmatmul.mubr.bf16.gmra.mrb[0].mxu0 %v5360
      %v5494 = vpop.f32.mrb[0].mxu0
      %v5495 = vadd.f32 0.0, %v5494
      %v5496 = vpop.f32.mrb[0].mxu0
      %v5497 = vpop.f32.mrb[0].mxu0
      %v5498 = vadd.f32 0.0, %v5497
      %v5499 = vpop.f32.mrb[0].mxu0
      %5500 = vmatprep.mubr.bf16.mxu0 0
      %5501 = vmatmul.mubr.bf16.gmra.mrb[0].mxu0 %v5363
      %v5502 = vpop.f32.mrb[0].mxu0
      %v5503 = vadd.f32 0.0, %v5502
      %v5504 = vpop.f32.mrb[0].mxu0
      %v5505 = vpop.f32.mrb[0].mxu0
      %v5506 = vadd.f32 0.0, %v5505
      %v5507 = vpop.f32.mrb[0].mxu0
      %5508 = vmatprep.mubr.bf16.mxu0 0
      %5509 = vmatmul.mubr.bf16.gmra.mrb[0].mxu0 %v5366
      %v5510 = vpop.f32.mrb[0].mxu0
      %v5511 = vadd.f32 0.0, %v5510
      %v5512 = vpop.f32.mrb[0].mxu0
      %v5513 = vpop.f32.mrb[0].mxu0
      %v5514 = vadd.f32 0.0, %v5513
      %v5515 = vpop.f32.mrb[0].mxu0
      %5516 = vmatprep.mubr.bf16.mxu0 0
      %5517 = vmatmul.mubr.bf16.gmra.mrb[0].mxu0 %v5369
      %v5518 = vpop.f32.mrb[0].mxu0
      %v5519 = vadd.f32 0.0, %v5518
      %v5520 = vpop.f32.mrb[0].mxu0
      %v5521 = vpop.f32.mrb[0].mxu0
      %v5522 = vadd.f32 0.0, %v5521
      %v5523 = vpop.f32.mrb[0].mxu0
      %5524 = vmatprep.mubr.bf16.mxu0 0
      %5525 = vmatmul.mubr.bf16.gmra.mrb[0].mxu0 %v5372
      %v5526 = vpop.f32.mrb[0].mxu0
      %v5527 = vadd.f32 0.0, %v5526
      %v5528 = vpop.f32.mrb[0].mxu0
      %v5529 = vpop.f32.mrb[0].mxu0
      %v5530 = vadd.f32 0.0, %v5529
      %v5531 = vpop.f32.mrb[0].mxu0
      %5532 = vmatprep.mubr.bf16.mxu0 0
      %5533 = vmatmul.mubr.bf16.gmra.mrb[0].mxu0 %v5375
      %v5534 = vpop.f32.mrb[0].mxu0
      %v5535 = vadd.f32 0.0, %v5534
      %v5536 = vpop.f32.mrb[0].mxu0
      %v5537 = vpop.f32.mrb[0].mxu0
      %v5538 = vadd.f32 0.0, %v5537
      %v5539 = vpop.f32.mrb[0].mxu0
      %5540 = vdwg.mxu0
      %v5541 = vadd.f32 %v5186, %v5415
      %v5542 = vadd.f32 %v5189, %v5418
      %v5543 = vadd.f32 %v5194, %v5423
      %v5544 = vadd.f32 %v5197, %v5426
      %v5545 = vadd.f32 %v5202, %v5431
      %v5546 = vadd.f32 %v5205, %v5434
      %v5547 = vadd.f32 %v5210, %v5439
      %v5548 = vadd.f32 %v5213, %v5442
      %v5549 = vadd.f32 %v5218, %v5447
      %v5550 = vadd.f32 %v5221, %v5450
      %v5551 = vadd.f32 %v5226, %v5455
      %v5552 = vadd.f32 %v5229, %v5458
      %v5553 = vadd.f32 %v5234, %v5463
      %v5554 = vadd.f32 %v5237, %v5466
      %v5555 = vadd.f32 %v5242, %v5471
      %v5556 = vadd.f32 %v5245, %v5474
      %v5557 = vadd.f32 %v5250, %v5479
      %v5558 = vadd.f32 %v5253, %v5482
      %v5559 = vadd.f32 %v5258, %v5487
      %v5560 = vadd.f32 %v5261, %v5490
      %v5561 = vadd.f32 %v5266, %v5495
      %v5562 = vadd.f32 %v5269, %v5498
      %v5563 = vadd.f32 %v5274, %v5503
      %v5564 = vadd.f32 %v5277, %v5506
      %v5565 = vadd.f32 %v5282, %v5511
      %v5566 = vadd.f32 %v5285, %v5514
      %v5567 = vadd.f32 %v5290, %v5519
      %v5568 = vadd.f32 %v5293, %v5522
      %v5569 = vadd.f32 %v5298, %v5527
      %v5570 = vadd.f32 %v5301, %v5530
      %v5571 = vadd.f32 %v5306, %v5535
      %v5572 = vadd.f32 %v5309, %v5538
      %v5573 = vpack.c.bf16 %v4822, %v4821
      %v5574 = vpack.c.bf16 %v4824, %v4823
      %v5575 = vpack.c.bf16 %v4826, %v4825
      %v5576 = vpack.c.bf16 %v4828, %v4827
      %v5577 = vpack.c.bf16 %v4830, %v4829
      %v5578 = vpack.c.bf16 %v4832, %v4831
      %v5579 = vpack.c.bf16 %v4834, %v4833
      %v5580 = vpack.c.bf16 %v4836, %v4835
      %v5581 = vpack.c.bf16 %v4838, %v4837
      %v5582 = vpack.c.bf16 %v4840, %v4839
      %v5583 = vpack.c.bf16 %v4842, %v4841
      %v5584 = vpack.c.bf16 %v4844, %v4843
      %v5585 = vpack.c.bf16 %v4846, %v4845
      %v5586 = vpack.c.bf16 %v4848, %v4847
      %v5587 = vpack.c.bf16 %v4850, %v4849
      %v5588 = vpack.c.bf16 %v4852, %v4851
      %v5589 = vld [vmem:[%s6] sm:$0x1]
      %v5591 = vsel %vm641, %v5573, 0
      %v5594 = vsel %vm641, %v5574, 0
      %v5597 = vsel %vm641, %v5575, 0
      %v5600 = vsel %vm641, %v5576, 0
      %v5603 = vsel %vm641, %v5577, 0
      %v5606 = vsel %vm641, %v5578, 0
      %v5609 = vsel %vm641, %v5579, 0
      %v5612 = vsel %vm641, %v5580, 0
      %v5615 = vsel %vm641, %v5581, 0
      %v5618 = vsel %vm641, %v5582, 0
      %v5621 = vsel %vm641, %v5583, 0
      %v5624 = vsel %vm641, %v5584, 0
      %v5627 = vsel %vm641, %v5585, 0
      %v5630 = vsel %vm641, %v5586, 0
      %v5633 = vsel %vm641, %v5587, 0
      %v5636 = vsel %vm641, %v5588, 0
      %v5639 = vsel %vm4935, %v5589, 0
      %5641 = vmatprep.subr.bf16.mxu0 0
      %5642 = vmatpush1.bf16.msra.mxu0 %v5639
      %5643 = vmatprep.subr.bf16.mxu0 0
      %5644 = vmatpush1.bf16.msra.mxu0 0
      %5645 = vmatprep.subr.bf16.mxu0 0
      %5646 = vmatpush1.bf16.msra.mxu0 0
      %5647 = vmatprep.subr.bf16.mxu0 0
      %5648 = vmatpush1.bf16.msra.mxu0 0
      %5649 = vmatprep.subr.bf16.mxu0 0
      %5650 = vmatpush1.bf16.msra.mxu0 0
      %5651 = vmatprep.subr.bf16.mxu0 0
      %5652 = vmatpush1.bf16.msra.mxu0 0
      %5653 = vmatprep.subr.bf16.mxu0 0
      %5654 = vmatpush1.bf16.msra.mxu0 0
      %5655 = vmatprep.subr.bf16.mxu0 0
      %5656 = vmatpush1.bf16.msra.mxu0 0
      %5657 = vmatprep.subr.bf16.mxu0 0
      %5658 = vmatpush1.bf16.msra.mxu0 0
      %5659 = vmatprep.subr.bf16.mxu0 0
      %5660 = vmatpush1.bf16.msra.mxu0 0
      %5661 = vmatprep.subr.bf16.mxu0 0
      %5662 = vmatpush1.bf16.msra.mxu0 0
      %5663 = vmatprep.subr.bf16.mxu0 0
      %5664 = vmatpush1.bf16.msra.mxu0 0
      %5665 = vmatprep.subr.bf16.mxu0 0
      %5666 = vmatpush1.bf16.msra.mxu0 0
      %5667 = vmatprep.subr.bf16.mxu0 0
      %5668 = vmatpush1.bf16.msra.mxu0 0
      %5669 = vmatprep.subr.bf16.mxu0 0
      %5670 = vmatpush1.bf16.msra.mxu0 0
      %5671 = vmatprep.subr.bf16.mxu0 0
      %5672 = vmatpush1.bf16.msra.mxu0 0
      %5673 = vmatprep.mubr.bf16.mxu0 0
      %5674 = vmatmul.mubr.bf16.gmra.mrb[0].mxu0 %v5591
      %v5675 = vpop.f32.mrb[0].mxu0
      %v5676 = vadd.f32 0.0, %v5675
      %v5677 = vpop.f32.mrb[0].mxu0
      %v5678 = vpop.f32.mrb[0].mxu0
      %v5679 = vadd.f32 0.0, %v5678
      %v5680 = vpop.f32.mrb[0].mxu0
      %5681 = vmatprep.mubr.bf16.mxu0 0
      %5682 = vmatmul.mubr.bf16.gmra.mrb[0].mxu0 %v5594
      %v5683 = vpop.f32.mrb[0].mxu0
      %v5684 = vadd.f32 0.0, %v5683
      %v5685 = vpop.f32.mrb[0].mxu0
      %v5686 = vpop.f32.mrb[0].mxu0
      %v5687 = vadd.f32 0.0, %v5686
      %v5688 = vpop.f32.mrb[0].mxu0
      %5689 = vmatprep.mubr.bf16.mxu0 0
      %5690 = vmatmul.mubr.bf16.gmra.mrb[0].mxu0 %v5597
      %v5691 = vpop.f32.mrb[0].mxu0
      %v5692 = vadd.f32 0.0, %v5691
      %v5693 = vpop.f32.mrb[0].mxu0
      %v5694 = vpop.f32.mrb[0].mxu0
      %v5695 = vadd.f32 0.0, %v5694
      %v5696 = vpop.f32.mrb[0].mxu0
      %5697 = vmatprep.mubr.bf16.mxu0 0
      %5698 = vmatmul.mubr.bf16.gmra.mrb[0].mxu0 %v5600
      %v5699 = vpop.f32.mrb[0].mxu0
      %v5700 = vadd.f32 0.0, %v5699
      %v5701 = vpop.f32.mrb[0].mxu0
      %v5702 = vpop.f32.mrb[0].mxu0
      %v5703 = vadd.f32 0.0, %v5702
      %v5704 = vpop.f32.mrb[0].mxu0
      %5705 = vmatprep.mubr.bf16.mxu0 0
      %5706 = vmatmul.mubr.bf16.gmra.mrb[0].mxu0 %v5603
      %v5707 = vpop.f32.mrb[0].mxu0
      %v5708 = vadd.f32 0.0, %v5707
      %v5709 = vpop.f32.mrb[0].mxu0
      %v5710 = vpop.f32.mrb[0].mxu0
      %v5711 = vadd.f32 0.0, %v5710
      %v5712 = vpop.f32.mrb[0].mxu0
      %5713 = vmatprep.mubr.bf16.mxu0 0
      %5714 = vmatmul.mubr.bf16.gmra.mrb[0].mxu0 %v5606
      %v5715 = vpop.f32.mrb[0].mxu0
      %v5716 = vadd.f32 0.0, %v5715
      %v5717 = vpop.f32.mrb[0].mxu0
      %v5718 = vpop.f32.mrb[0].mxu0
      %v5719 = vadd.f32 0.0, %v5718
      %v5720 = vpop.f32.mrb[0].mxu0
      %5721 = vmatprep.mubr.bf16.mxu0 0
      %5722 = vmatmul.mubr.bf16.gmra.mrb[0].mxu0 %v5609
      %v5723 = vpop.f32.mrb[0].mxu0
      %v5724 = vadd.f32 0.0, %v5723
      %v5725 = vpop.f32.mrb[0].mxu0
      %v5726 = vpop.f32.mrb[0].mxu0
      %v5727 = vadd.f32 0.0, %v5726
      %v5728 = vpop.f32.mrb[0].mxu0
      %5729 = vmatprep.mubr.bf16.mxu0 0
      %5730 = vmatmul.mubr.bf16.gmra.mrb[0].mxu0 %v5612
      %v5731 = vpop.f32.mrb[0].mxu0
      %v5732 = vadd.f32 0.0, %v5731
      %v5733 = vpop.f32.mrb[0].mxu0
      %v5734 = vpop.f32.mrb[0].mxu0
      %v5735 = vadd.f32 0.0, %v5734
      %v5736 = vpop.f32.mrb[0].mxu0
      %5737 = vmatprep.mubr.bf16.mxu0 0
      %5738 = vmatmul.mubr.bf16.gmra.mrb[0].mxu0 %v5615
      %v5739 = vpop.f32.mrb[0].mxu0
      %v5740 = vadd.f32 0.0, %v5739
      %v5741 = vpop.f32.mrb[0].mxu0
      %v5742 = vpop.f32.mrb[0].mxu0
      %v5743 = vadd.f32 0.0, %v5742
      %v5744 = vpop.f32.mrb[0].mxu0
      %5745 = vmatprep.mubr.bf16.mxu0 0
      %5746 = vmatmul.mubr.bf16.gmra.mrb[0].mxu0 %v5618
      %v5747 = vpop.f32.mrb[0].mxu0
      %v5748 = vadd.f32 0.0, %v5747
      %v5749 = vpop.f32.mrb[0].mxu0
      %v5750 = vpop.f32.mrb[0].mxu0
      %v5751 = vadd.f32 0.0, %v5750
      %v5752 = vpop.f32.mrb[0].mxu0
      %5753 = vmatprep.mubr.bf16.mxu0 0
      %5754 = vmatmul.mubr.bf16.gmra.mrb[0].mxu0 %v5621
      %v5755 = vpop.f32.mrb[0].mxu0
      %v5756 = vadd.f32 0.0, %v5755
      %v5757 = vpop.f32.mrb[0].mxu0
      %v5758 = vpop.f32.mrb[0].mxu0
      %v5759 = vadd.f32 0.0, %v5758
      %v5760 = vpop.f32.mrb[0].mxu0
      %5761 = vmatprep.mubr.bf16.mxu0 0
      %5762 = vmatmul.mubr.bf16.gmra.mrb[0].mxu0 %v5624
      %v5763 = vpop.f32.mrb[0].mxu0
      %v5764 = vadd.f32 0.0, %v5763
      %v5765 = vpop.f32.mrb[0].mxu0
      %v5766 = vpop.f32.mrb[0].mxu0
      %v5767 = vadd.f32 0.0, %v5766
      %v5768 = vpop.f32.mrb[0].mxu0
      %5769 = vmatprep.mubr.bf16.mxu0 0
      %5770 = vmatmul.mubr.bf16.gmra.mrb[0].mxu0 %v5627
      %v5771 = vpop.f32.mrb[0].mxu0
      %v5772 = vadd.f32 0.0, %v5771
      %v5773 = vpop.f32.mrb[0].mxu0
      %v5774 = vpop.f32.mrb[0].mxu0
      %v5775 = vadd.f32 0.0, %v5774
      %v5776 = vpop.f32.mrb[0].mxu0
      %5777 = vmatprep.mubr.bf16.mxu0 0
      %5778 = vmatmul.mubr.bf16.gmra.mrb[0].mxu0 %v5630
      %v5779 = vpop.f32.mrb[0].mxu0
      %v5780 = vadd.f32 0.0, %v5779
      %v5781 = vpop.f32.mrb[0].mxu0
      %v5782 = vpop.f32.mrb[0].mxu0
      %v5783 = vadd.f32 0.0, %v5782
      %v5784 = vpop.f32.mrb[0].mxu0
      %5785 = vmatprep.mubr.bf16.mxu0 0
      %5786 = vmatmul.mubr.bf16.gmra.mrb[0].mxu0 %v5633
      %v5787 = vpop.f32.mrb[0].mxu0
      %v5788 = vadd.f32 0.0, %v5787
      %v5789 = vpop.f32.mrb[0].mxu0
      %v5790 = vpop.f32.mrb[0].mxu0
      %v5791 = vadd.f32 0.0, %v5790
      %v5792 = vpop.f32.mrb[0].mxu0
      %5793 = vmatprep.mubr.bf16.mxu0 0
      %5794 = vmatmul.mubr.bf16.gmra.mrb[0].mxu0 %v5636
      %v5795 = vpop.f32.mrb[0].mxu0
      %v5796 = vadd.f32 0.0, %v5795
      %v5797 = vpop.f32.mrb[0].mxu0
      %v5798 = vpop.f32.mrb[0].mxu0
      %v5799 = vadd.f32 0.0, %v5798
      %v5800 = vpop.f32.mrb[0].mxu0
      %5801 = vdwg.mxu0
      %v5802 = vadd.f32 %v5541, %v5676
      %v5803 = vadd.f32 %v5542, %v5679
      %v5804 = vadd.f32 %v5543, %v5684
      %v5805 = vadd.f32 %v5544, %v5687
      %v5806 = vadd.f32 %v5545, %v5692
      %v5807 = vadd.f32 %v5546, %v5695
      %v5808 = vadd.f32 %v5547, %v5700
      %v5809 = vadd.f32 %v5548, %v5703
      %v5810 = vadd.f32 %v5549, %v5708
      %v5811 = vadd.f32 %v5550, %v5711
      %v5812 = vadd.f32 %v5551, %v5716
      %v5813 = vadd.f32 %v5552, %v5719
      %v5814 = vadd.f32 %v5553, %v5724
      %v5815 = vadd.f32 %v5554, %v5727
      %v5816 = vadd.f32 %v5555, %v5732
      %v5817 = vadd.f32 %v5556, %v5735
      %v5818 = vadd.f32 %v5557, %v5740
      %v5819 = vadd.f32 %v5558, %v5743
      %v5820 = vadd.f32 %v5559, %v5748
      %v5821 = vadd.f32 %v5560, %v5751
      %v5822 = vadd.f32 %v5561, %v5756
      %v5823 = vadd.f32 %v5562, %v5759
      %v5824 = vadd.f32 %v5563, %v5764
      %v5825 = vadd.f32 %v5564, %v5767
      %v5826 = vadd.f32 %v5565, %v5772
      %v5827 = vadd.f32 %v5566, %v5775
      %v5828 = vadd.f32 %v5567, %v5780
      %v5829 = vadd.f32 %v5568, %v5783
      %v5830 = vadd.f32 %v5569, %v5788
      %v5831 = vadd.f32 %v5570, %v5791
      %v5832 = vadd.f32 %v5571, %v5796
      %v5833 = vadd.f32 %v5572, %v5799
      %v5834 = vld [vmem:[%s7] sm:$0x1]
      %v5836 = vlaneseq
      %v5837 = vshrl.u32 %v5836, 7
      %v5838 = vsub.s32 0, %v5837
      %v5839 = vrot.slane %v5834, %v5838
      %v5841 = vadd.f32 %v5802, %v5839
      %v5842 = vadd.f32 %v5803, %v5839
      %v5843 = vadd.f32 %v5804, %v5839
      %v5844 = vadd.f32 %v5805, %v5839
      %v5845 = vadd.f32 %v5806, %v5839
      %v5846 = vadd.f32 %v5807, %v5839
      %v5847 = vadd.f32 %v5808, %v5839
      %v5848 = vadd.f32 %v5809, %v5839
      %v5849 = vadd.f32 %v5810, %v5839
      %v5850 = vadd.f32 %v5811, %v5839
      %v5851 = vadd.f32 %v5812, %v5839
      %v5852 = vadd.f32 %v5813, %v5839
      %v5853 = vadd.f32 %v5814, %v5839
      %v5854 = vadd.f32 %v5815, %v5839
      %v5855 = vadd.f32 %v5816, %v5839
      %v5856 = vadd.f32 %v5817, %v5839
      %v5857 = vadd.f32 %v5818, %v5839
      %v5858 = vadd.f32 %v5819, %v5839
      %v5859 = vadd.f32 %v5820, %v5839
      %v5860 = vadd.f32 %v5821, %v5839
      %v5861 = vadd.f32 %v5822, %v5839
      %v5862 = vadd.f32 %v5823, %v5839
      %v5863 = vadd.f32 %v5824, %v5839
      %v5864 = vadd.f32 %v5825, %v5839
      %v5865 = vadd.f32 %v5826, %v5839
      %v5866 = vadd.f32 %v5827, %v5839
      %v5867 = vadd.f32 %v5828, %v5839
      %v5868 = vadd.f32 %v5829, %v5839
      %v5869 = vadd.f32 %v5830, %v5839
      %v5870 = vadd.f32 %v5831, %v5839
      %v5871 = vadd.f32 %v5832, %v5839
      %v5872 = vadd.f32 %v5833, %v5839
      %v5873 = vmul.f32 %v5841, 0.1
      %v5874 = vmul.f32 %v5842, 0.1
      %v5875 = vmul.f32 %v5843, 0.1
      %v5876 = vmul.f32 %v5844, 0.1
      %v5877 = vmul.f32 %v5845, 0.1
      %v5878 = vmul.f32 %v5846, 0.1
      %v5879 = vmul.f32 %v5847, 0.1
      %v5880 = vmul.f32 %v5848, 0.1
      %v5881 = vmul.f32 %v5849, 0.1
      %v5882 = vmul.f32 %v5850, 0.1
      %v5883 = vmul.f32 %v5851, 0.1
      %v5884 = vmul.f32 %v5852, 0.1
      %v5885 = vmul.f32 %v5853, 0.1
      %v5886 = vmul.f32 %v5854, 0.1
      %v5887 = vmul.f32 %v5855, 0.1
      %v5888 = vmul.f32 %v5856, 0.1
      %v5889 = vmul.f32 %v5857, 0.1
      %v5890 = vmul.f32 %v5858, 0.1
      %v5891 = vmul.f32 %v5859, 0.1
      %v5892 = vmul.f32 %v5860, 0.1
      %v5893 = vmul.f32 %v5861, 0.1
      %v5894 = vmul.f32 %v5862, 0.1
      %v5895 = vmul.f32 %v5863, 0.1
      %v5896 = vmul.f32 %v5864, 0.1
      %v5897 = vmul.f32 %v5865, 0.1
      %v5898 = vmul.f32 %v5866, 0.1
      %v5899 = vmul.f32 %v5867, 0.1
      %v5900 = vmul.f32 %v5868, 0.1
      %v5901 = vmul.f32 %v5869, 0.1
      %v5902 = vmul.f32 %v5870, 0.1
      %v5903 = vmul.f32 %v5871, 0.1
      %v5904 = vmul.f32 %v5872, 0.1
      %v5905 = vmax.f32 %v5841, %v5873
      %v5906 = vmax.f32 %v5842, %v5874
      %v5907 = vmax.f32 %v5843, %v5875
      %v5908 = vmax.f32 %v5844, %v5876
      %v5909 = vmax.f32 %v5845, %v5877
      %v5910 = vmax.f32 %v5846, %v5878
      %v5911 = vmax.f32 %v5847, %v5879
      %v5912 = vmax.f32 %v5848, %v5880
      %v5913 = vmax.f32 %v5849, %v5881
      %v5914 = vmax.f32 %v5850, %v5882
      %v5915 = vmax.f32 %v5851, %v5883
      %v5916 = vmax.f32 %v5852, %v5884
      %v5917 = vmax.f32 %v5853, %v5885
      %v5918 = vmax.f32 %v5854, %v5886
      %v5919 = vmax.f32 %v5855, %v5887
      %v5920 = vmax.f32 %v5856, %v5888
      %v5921 = vmax.f32 %v5857, %v5889
      %v5922 = vmax.f32 %v5858, %v5890
      %v5923 = vmax.f32 %v5859, %v5891
      %v5924 = vmax.f32 %v5860, %v5892
      %v5925 = vmax.f32 %v5861, %v5893
      %v5926 = vmax.f32 %v5862, %v5894
      %v5927 = vmax.f32 %v5863, %v5895
      %v5928 = vmax.f32 %v5864, %v5896
      %v5929 = vmax.f32 %v5865, %v5897
      %v5930 = vmax.f32 %v5866, %v5898
      %v5931 = vmax.f32 %v5867, %v5899
      %v5932 = vmax.f32 %v5868, %v5900
      %v5933 = vmax.f32 %v5869, %v5901
      %v5934 = vmax.f32 %v5870, %v5902
      %v5935 = vmax.f32 %v5871, %v5903
      %v5936 = vmax.f32 %v5872, %v5904
      %vm5937 = vcmask 64512
      %5938 = vst.msk [vmem:[%s305] sm:$0xff] %vm5937, %v5905
      %5939 = vst.msk [vmem:[%s305 + $0x8] sm:$0xff] %vm5937, %v5906
      %5940 = vst.msk [vmem:[%s305 + $0x10] sm:$0xff] %vm5937, %v5907
      %5941 = vst.msk [vmem:[%s305 + $0x18] sm:$0xff] %vm5937, %v5908
      %5942 = vst.msk [vmem:[%s305 + $0x20] sm:$0xff] %vm5937, %v5909
      %5943 = vst.msk [vmem:[%s305 + $0x28] sm:$0xff] %vm5937, %v5910
      %5944 = vst.msk [vmem:[%s305 + $0x30] sm:$0xff] %vm5937, %v5911
      %5945 = vst.msk [vmem:[%s305 + $0x38] sm:$0xff] %vm5937, %v5912
      %5946 = vst.msk [vmem:[%s305 + $0x40] sm:$0xff] %vm5937, %v5913
      %5947 = vst.msk [vmem:[%s305 + $0x48] sm:$0xff] %vm5937, %v5914
      %5948 = vst.msk [vmem:[%s305 + $0x50] sm:$0xff] %vm5937, %v5915
      %5949 = vst.msk [vmem:[%s305 + $0x58] sm:$0xff] %vm5937, %v5916
      %5950 = vst.msk [vmem:[%s305 + $0x60] sm:$0xff] %vm5937, %v5917
      %5951 = vst.msk [vmem:[%s305 + $0x68] sm:$0xff] %vm5937, %v5918
      %5952 = vst.msk [vmem:[%s305 + $0x70] sm:$0xff] %vm5937, %v5919
      %5953 = vst.msk [vmem:[%s305 + $0x78] sm:$0xff] %vm5937, %v5920
      %5954 = vst.msk [vmem:[%s305 + $0x80] sm:$0xff] %vm5937, %v5921
      %5955 = vst.msk [vmem:[%s305 + $0x88] sm:$0xff] %vm5937, %v5922
      %5956 = vst.msk [vmem:[%s305 + $0x90] sm:$0xff] %vm5937, %v5923
      %5957 = vst.msk [vmem:[%s305 + $0x98] sm:$0xff] %vm5937, %v5924
      %5958 = vst.msk [vmem:[%s305 + $0xa0] sm:$0xff] %vm5937, %v5925
      %5959 = vst.msk [vmem:[%s305 + $0xa8] sm:$0xff] %vm5937, %v5926
      %5960 = vst.msk [vmem:[%s305 + $0xb0] sm:$0xff] %vm5937, %v5927
      %5961 = vst.msk [vmem:[%s305 + $0xb8] sm:$0xff] %vm5937, %v5928
      %5962 = vst.msk [vmem:[%s305 + $0xc0] sm:$0xff] %vm5937, %v5929
      %5963 = vst.msk [vmem:[%s305 + $0xc8] sm:$0xff] %vm5937, %v5930
      %5964 = vst.msk [vmem:[%s305 + $0xd0] sm:$0xff] %vm5937, %v5931
      %5965 = vst.msk [vmem:[%s305 + $0xd8] sm:$0xff] %vm5937, %v5932
      %5966 = vst.msk [vmem:[%s305 + $0xe0] sm:$0xff] %vm5937, %v5933
      %5967 = vst.msk [vmem:[%s305 + $0xe8] sm:$0xff] %vm5937, %v5934
      %5968 = vst.msk [vmem:[%s305 + $0xf0] sm:$0xff] %vm5937, %v5935
      %5969 = vst.msk [vmem:[%s305 + $0xf8] sm:$0xff] %vm5937, %v5936
      %p5970 = scmp.lt.s32.totalorder %s19, 1
      %s5971 = scalar_select %p5970, %s19, 1
      %s5972 = smul.addr %s5971, 32
      %s5973 = smul.addr %s5972, 8
      %s5974 = scalar_lea.vmem %s8, %s5973
      // Predicated region
      $region53: #{spp_forward.1} parent=51 // pred_check
        %p5975 = pneg %p210
      $region54: #{spp_forward.1} parent=51 // pred_check_branch
        %5977 = sbr.rel (%p5975) target = $region56
      $region55: #{spp_forward.1} parent=51 // pred_region
        _
      $region56: #{spp_forward.1} parent=51 // pred_fallthru
        _
    $region52: #{spp_forward.1} parent=5 // pred_fallthru
      _
    %p5978 = scmp.le.s32.totalorder 2, %s14
    // Predicated region
    $region57: #{spp_forward.1} parent=5 // pred_check
      %p5979 = pneg %p5978
    $region58: #{spp_forward.1} parent=5 // pred_check_branch
      %5981 = sbr.rel (%p5979) target = $region60
    $region59: #{spp_forward.1} parent=5 // pred_region
      %s5982 = ssub.s32 %s14, 2
      // Predicated region
      $region61: #{spp_forward.1} parent=59 // pred_check
        %p5983 = pneg %p216
      $region62: #{spp_forward.1} parent=59 // pred_check_branch
        %5985 = sbr.rel (%p5983) target = $region64
      $region63: #{spp_forward.1} parent=59 // pred_region
        %p5986 = scmp.lt.s32.totalorder %s20, 1
        %s5987 = scalar_select %p5986, %s20, 1
        %s5988 = smul.addr %s5987, 32
        %s5989 = smul.addr %s5988, 8
        %s5990 = scalar_lea.vmem %s8, %s5989
      $region64: #{spp_forward.1} parent=59 // pred_fallthru
        _
    $region60: #{spp_forward.1} parent=5 // pred_fallthru
      _
  $region6: #{spp_forward.1} parent=0 // loop_footer
    %s18 = sadd.s32 1, %s14
  $region7: #{spp_forward.1} parent=0 // loop_footer_branch
    %13 = sbr.rel target = $region3
  $region8: #{spp_forward.1} parent=0 // loop_exit
    _

</llo_original>
